<compile_context>
chip_gen: v7x
topology: tpu7x:2x2x1
jax: 0.10.0
libtpu: 0.0.40
codegen_flags: <defaults>
</compile_context>

<pallas_src>
import math
import functools

import jax
import jax.numpy as jnp
from jax import lax
from jax.experimental import pallas as pl
from jax.experimental.pallas import tpu as pltpu


# ----------------------------- kernel ---------------------------------------


def _layernorm(z, g, b, eps=1e-5):
    mu = jnp.mean(z, axis=-1, keepdims=True)
    var = jnp.mean((z - mu) ** 2, axis=-1, keepdims=True)
    return (z - mu) * lax.rsqrt(var + eps) * g + b


def _gelu_exact(z):
    # nn.GELU() default is the exact erf-based GELU.
    return 0.5 * z * (1.0 + lax.erf(z * 0.7071067811865476))


def block_kernel(
    x_ref,
    ln1g_ref, ln1b_ref,
    wq_ref, bq_ref, wk_ref, bk_ref, wv_ref, bv_ref, wp_ref, bp_ref,
    ln2g_ref, ln2b_ref,
    w1_ref, b1_ref, w2_ref, b2_ref,
    o_ref,
    *, n_head, joined_dim,
):
    # TODO(synk): the PyTorch module stashes `self._attn_map` (a clone of the
    # softmaxed scores) as a training-time side effect; it is not emitted here.
    x = x_ref[0].astype(jnp.float32)                       # (T, C)
    T, C = x.shape
    hd = C // n_head
    scale = 1.0 / math.sqrt(hd)

    # Small params loaded once; kept f32 (elementwise / VPU path).
    g1 = ln1g_ref[...]
    be1 = ln1b_ref[...]
    g2 = ln2g_ref[...]
    be2 = ln2b_ref[...]
    bq = bq_ref[...]
    bk = bk_ref[...]
    bv = bv_ref[...]
    bp = bp_ref[...]
    bm1 = b1_ref[...]
    bm2 = b2_ref[...]

    # ---- attention branch ----
    h = _layernorm(x, g1, be1)                             # f32
    h_b = h.astype(jnp.bfloat16)                           # bf16 into the MXU

    q = jnp.dot(h_b, wq_ref[...], preferred_element_type=jnp.float32) + bq
    k = jnp.dot(h_b, wk_ref[...], preferred_element_type=jnp.float32) + bk
    v = jnp.dot(h_b, wv_ref[...], preferred_element_type=jnp.float32) + bv

    # Fold the 1/sqrt(hd) scale once into q instead of scaling every score tile.
    q = q * scale

    # Heads-batched layout: (T, C) -> (n_head, T, hd), bf16 for the MXU.
    qh = q.astype(jnp.bfloat16).reshape(T, n_head, hd).transpose(1, 0, 2)
    kh = k.astype(jnp.bfloat16).reshape(T, n_head, hd).transpose(1, 0, 2)
    vh = v.astype(jnp.bfloat16).reshape(T, n_head, hd).transpose(1, 0, 2)

    # Causal + strided-column-kill mask built in-kernel (no (T,T) HBM operand).
    rows = lax.broadcasted_iota(jnp.int32, (T, T), 0)
    cols = lax.broadcasted_iota(jnp.int32, (T, T), 1)
    keep = (rows >= cols) & ((cols % joined_dim) != (joined_dim - 1))
    # Additive finite bias: avoids inf - inf -> NaN on heavily-masked rows.
    neg_bias = jnp.where(keep, 0.0, -1e30).astype(jnp.float32)      # (T, T)

    s = jnp.einsum("htd,hsd->hts", qh, kh,
                   preferred_element_type=jnp.float32)              # (H, T, T) f32
    s = s + neg_bias[None, :, :]

    s_max = jnp.max(s, axis=-1, keepdims=True)
    p = jnp.exp(s - s_max)
    denom = jnp.sum(p, axis=-1, keepdims=True)
    p = p * pl.reciprocal(denom, approx=True)                        # EUP, ~free

    yh = jnp.einsum("hts,hsd->htd", p.astype(jnp.bfloat16), vh,
                    preferred_element_type=jnp.float32)              # (H, T, hd)
    y = yh.transpose(1, 0, 2).reshape(T, C)                          # (T, C) f32

    attn_out = jnp.dot(y.astype(jnp.bfloat16), wp_ref[...],
                       preferred_element_type=jnp.float32) + bp

    x = x + attn_out                                                 # residual 1 (f32)

    # ---- MLP branch ----
    h2 = _layernorm(x, g2, be2)
    m = jnp.dot(h2.astype(jnp.bfloat16), w1_ref[...],
                preferred_element_type=jnp.float32) + bm1
    m = _gelu_exact(m)
    m = jnp.dot(m.astype(jnp.bfloat16), w2_ref[...],
                preferred_element_type=jnp.float32) + bm2

    o_ref[0] = (x + m).astype(o_ref.dtype)                           # residual 2


# ----------------------------- wrapper ---------------------------------------


def _build_block_call(B, T, C, H, n_head, joined_dim, out_dtype,
                      single_buffer_weights):
    """Construct the pallas_call; optionally single-buffer grid-invariant operands."""
    if single_buffer_weights:
        def const2d(shape):
            # Constant index_map across the batch grid -> one VMEM copy is enough.
            return pl.BlockSpec(shape, lambda b: (0, 0),
                                pipeline_mode=pl.Buffered(1))
    else:
        def const2d(shape):
            return pl.BlockSpec(shape, lambda b: (0, 0))

    in_specs = [
        pl.BlockSpec((1, T, C), lambda b: (b, 0, 0)),   # x (per-batch block)
        const2d((1, C)), const2d((1, C)),               # ln1 gamma / beta
        const2d((C, C)), const2d((1, C)),               # Wq, bq
        const2d((C, C)), const2d((1, C)),               # Wk, bk
        const2d((C, C)), const2d((1, C)),               # Wv, bv
        const2d((C, C)), const2d((1, C)),               # Wproj, bproj
        const2d((1, C)), const2d((1, C)),               # ln2 gamma / beta
        const2d((C, H)), const2d((1, H)),               # W1, b1
        const2d((H, C)), const2d((1, C)),               # W2, b2
    ]

    return pl.pallas_call(
        functools.partial(block_kernel, n_head=n_head, joined_dim=joined_dim),
        out_shape=jax.ShapeDtypeStruct((B, T, C), out_dtype),
        grid=(B,),
        in_specs=in_specs,
        out_specs=pl.BlockSpec((1, T, C), lambda b: (b, 0, 0)),
        compiler_params=pltpu.CompilerParams(
            dimension_semantics=("parallel",),
            vmem_limit_bytes=32 * 1024 * 1024,
        ),
    )


def block_forward(x, params, n_head, joined_dim):
    B, T, C = x.shape
    H = 4 * C

    bf16 = lambda w: w.astype(jnp.bfloat16)   # weights -> bf16 (MXU inputs);
                                              # biases / LN params stay f32.
    args = (
        x,
        params["ln1_g"], params["ln1_b"],
        bf16(params["wq"]), params["bq"],
        bf16(params["wk"]), params["bk"],
        bf16(params["wv"]), params["bv"],
        bf16(params["wp"]), params["bp"],
        params["ln2_g"], params["ln2_b"],
        bf16(params["w1"]), params["b1"],
        bf16(params["w2"]), params["b2"],
    )

    try:
        # Preferred: grid-invariant operands single-buffered (halves weight VMEM).
        return _build_block_call(B, T, C, H, n_head, joined_dim, x.dtype,
                                 single_buffer_weights=True)(*args)
    except Exception:
        # Fallback if this jax build rejects pipeline_mode=pl.Buffered(1).
        return _build_block_call(B, T, C, H, n_head, joined_dim, x.dtype,
                                 single_buffer_weights=False)(*args)


# ----------------------------- pure-JAX reference -----------------------------


def block_reference(x, params, mask, n_head):
    B, T, C = x.shape
    hd = C // n_head

    def ln(z, g, b):
        mu = jnp.mean(z, axis=-1, keepdims=True)
        var = jnp.mean((z - mu) ** 2, axis=-1, keepdims=True)
        return (z - mu) / jnp.sqrt(var + 1e-5) * g + b

    h = ln(x, params["ln1_g"], params["ln1_b"])
    q = h @ params["wq"] + params["bq"]
    k = h @ params["wk"] + params["bk"]
    v = h @ params["wv"] + params["bv"]
    q = q.reshape(B, T, n_head, hd).transpose(0, 2, 1, 3)
    k = k.reshape(B, T, n_head, hd).transpose(0, 2, 1, 3)
    v = v.reshape(B, T, n_head, hd).transpose(0, 2, 1, 3)
    att = (q @ k.transpose(0, 1, 3, 2)) / math.sqrt(hd)
    att = jnp.where(mask[None, None, :, :] == 0.0, -jnp.inf, att)
    att = jax.nn.softmax(att, axis=-1)
    y = (att @ v).transpose(0, 2, 1, 3).reshape(B, T, C)
    x = x + (y @ params["wp"] + params["bp"])

    h2 = ln(x, params["ln2_g"], params["ln2_b"])
    m = h2 @ params["w1"] + params["b1"]
    m = 0.5 * m * (1.0 + lax.erf(m / math.sqrt(2.0)))
    m = m @ params["w2"] + params["b2"]
    return x + m


# ----------------------------- main -------------------------------------------


if __name__ == "__main__":
    # small config consistent with the module
    B, T = 2, 8
    n_embd, n_head = 32, 4
    block_size = 8
    observation_dim, action_dim = 2, 1
    joined_dim = observation_dim + action_dim + 2   # = 5

    key = jax.random.PRNGKey(0)
    keys = jax.random.split(key, 12)

    def lin(kw, fan_in, fan_out):
        bound = 1.0 / math.sqrt(fan_in)
        return jax.random.uniform(kw, (fan_in, fan_out), jnp.float32, -bound, bound)

    H = 4 * n_embd
    params = {
        "ln1_g": jnp.ones((1, n_embd), jnp.float32),
        "ln1_b": jnp.zeros((1, n_embd), jnp.float32),
        "wq": lin(keys[0], n_embd, n_embd),
        "bq": jax.random.uniform(keys[1], (1, n_embd), jnp.float32, -0.1, 0.1),
        "wk": lin(keys[2], n_embd, n_embd),
        "bk": jax.random.uniform(keys[3], (1, n_embd), jnp.float32, -0.1, 0.1),
        "wv": lin(keys[4], n_embd, n_embd),
        "bv": jax.random.uniform(keys[5], (1, n_embd), jnp.float32, -0.1, 0.1),
        "wp": lin(keys[6], n_embd, n_embd),
        "bp": jax.random.uniform(keys[7], (1, n_embd), jnp.float32, -0.1, 0.1),
        "ln2_g": jnp.ones((1, n_embd), jnp.float32),
        "ln2_b": jnp.zeros((1, n_embd), jnp.float32),
        "w1": lin(keys[8], n_embd, H),
        "b1": jax.random.uniform(keys[9], (1, H), jnp.float32, -0.1, 0.1),
        "w2": lin(keys[10], H, n_embd),
        "b2": jax.random.uniform(keys[11], (1, n_embd), jnp.float32, -0.1, 0.1),
    }

    # Reference mask, built exactly as the PyTorch buffer (causal + strided kill).
    full_mask = jnp.tril(jnp.ones((block_size, block_size), jnp.float32))
    cols = jnp.arange(block_size)
    kill = (cols % joined_dim) == (joined_dim - 1)
    full_mask = full_mask * (~kill)[None, :].astype(jnp.float32)
    mask = full_mask[:T, :T]

    x = jax.random.normal(jax.random.PRNGKey(42), (B, T, n_embd), jnp.float32)

    out = block_forward(x, params, n_head, joined_dim)
    out = jax.block_until_ready(out)

    ref = block_reference(x, params, mask, n_head)
    # bf16 MXU inputs + approx reciprocal vs. f32 reference -> loosened tolerance.
    assert jnp.allclose(out, ref, atol=5e-2, rtol=5e-2), "mismatch vs reference"

    print("KERNEL_OK")
</pallas_src>

<mosaic_0001>
module attributes {stable_mosaic.version = 11 : i64} {
  func.func @block_kernel(%arg0: i32, %arg1: memref<1x8x32xf32, #tpu.memory_space<vmem>>, %arg2: memref<1x32xf32, #tpu.memory_space<vmem>>, %arg3: memref<1x32xf32, #tpu.memory_space<vmem>>, %arg4: memref<32x32xbf16, #tpu.memory_space<vmem>>, %arg5: memref<1x32xf32, #tpu.memory_space<vmem>>, %arg6: memref<32x32xbf16, #tpu.memory_space<vmem>>, %arg7: memref<1x32xf32, #tpu.memory_space<vmem>>, %arg8: memref<32x32xbf16, #tpu.memory_space<vmem>>, %arg9: memref<1x32xf32, #tpu.memory_space<vmem>>, %arg10: memref<32x32xbf16, #tpu.memory_space<vmem>>, %arg11: memref<1x32xf32, #tpu.memory_space<vmem>>, %arg12: memref<1x32xf32, #tpu.memory_space<vmem>>, %arg13: memref<1x32xf32, #tpu.memory_space<vmem>>, %arg14: memref<32x128xbf16, #tpu.memory_space<vmem>>, %arg15: memref<1x128xf32, #tpu.memory_space<vmem>>, %arg16: memref<128x32xbf16, #tpu.memory_space<vmem>>, %arg17: memref<1x32xf32, #tpu.memory_space<vmem>>, %arg18: memref<1x8x32xf32, #tpu.memory_space<vmem>>) attributes {dimension_semantics = [#tpu.dimension_semantics<parallel>], iteration_bounds = array<i64: 2>, scalar_prefetch = 0 : i64, scratch_operands = 0 : i64, tpu.core_type = #tpu.core_type<tc>, window_params = [{transform_indices = @transform_0, window_bounds = array<i64: 1, 8, 32>}, {pipeline_mode = #tpu.pipeline_mode<synchronous>, transform_indices = @transform_1, window_bounds = array<i64: 1, 32>}, {pipeline_mode = #tpu.pipeline_mode<synchronous>, transform_indices = @transform_2, window_bounds = array<i64: 1, 32>}, {pipeline_mode = #tpu.pipeline_mode<synchronous>, transform_indices = @transform_3, window_bounds = array<i64: 32, 32>}, {pipeline_mode = #tpu.pipeline_mode<synchronous>, transform_indices = @transform_4, window_bounds = array<i64: 1, 32>}, {pipeline_mode = #tpu.pipeline_mode<synchronous>, transform_indices = @transform_5, window_bounds = array<i64: 32, 32>}, {pipeline_mode = #tpu.pipeline_mode<synchronous>, transform_indices = @transform_6, window_bounds = array<i64: 1, 32>}, {pipeline_mode = #tpu.pipeline_mode<synchronous>, transform_indices = @transform_7, window_bounds = array<i64: 32, 32>}, {pipeline_mode = #tpu.pipeline_mode<synchronous>, transform_indices = @transform_8, window_bounds = array<i64: 1, 32>}, {pipeline_mode = #tpu.pipeline_mode<synchronous>, transform_indices = @transform_9, window_bounds = array<i64: 32, 32>}, {pipeline_mode = #tpu.pipeline_mode<synchronous>, transform_indices = @transform_10, window_bounds = array<i64: 1, 32>}, {pipeline_mode = #tpu.pipeline_mode<synchronous>, transform_indices = @transform_11, window_bounds = array<i64: 1, 32>}, {pipeline_mode = #tpu.pipeline_mode<synchronous>, transform_indices = @transform_12, window_bounds = array<i64: 1, 32>}, {pipeline_mode = #tpu.pipeline_mode<synchronous>, transform_indices = @transform_13, window_bounds = array<i64: 32, 128>}, {pipeline_mode = #tpu.pipeline_mode<synchronous>, transform_indices = @transform_14, window_bounds = array<i64: 1, 128>}, {pipeline_mode = #tpu.pipeline_mode<synchronous>, transform_indices = @transform_15, window_bounds = array<i64: 128, 32>}, {pipeline_mode = #tpu.pipeline_mode<synchronous>, transform_indices = @transform_16, window_bounds = array<i64: 1, 32>}, {transform_indices = @transform_17, window_bounds = array<i64: 1, 8, 32>}]} {
    %c0 = arith.constant 0 : index
    %c0_0 = arith.constant 0 : index
    %c0_1 = arith.constant 0 : index
    %0 = vector.load %arg1[%c0, %c0_0, %c0_1] : memref<1x8x32xf32, #tpu.memory_space<vmem>>, vector<1x8x32xf32>
    %1 = vector.shape_cast %0 : vector<1x8x32xf32> to vector<8x32xf32>
    %c0_2 = arith.constant 0 : index
    %c0_3 = arith.constant 0 : index
    %2 = vector.load %arg2[%c0_2, %c0_3] : memref<1x32xf32, #tpu.memory_space<vmem>>, vector<1x32xf32>
    %c0_4 = arith.constant 0 : index
    %c0_5 = arith.constant 0 : index
    %3 = vector.load %arg3[%c0_4, %c0_5] : memref<1x32xf32, #tpu.memory_space<vmem>>, vector<1x32xf32>
    %c0_6 = arith.constant 0 : index
    %c0_7 = arith.constant 0 : index
    %4 = vector.load %arg12[%c0_6, %c0_7] : memref<1x32xf32, #tpu.memory_space<vmem>>, vector<1x32xf32>
    %c0_8 = arith.constant 0 : index
    %c0_9 = arith.constant 0 : index
    %5 = vector.load %arg13[%c0_8, %c0_9] : memref<1x32xf32, #tpu.memory_space<vmem>>, vector<1x32xf32>
    %c0_10 = arith.constant 0 : index
    %c0_11 = arith.constant 0 : index
    %6 = vector.load %arg5[%c0_10, %c0_11] : memref<1x32xf32, #tpu.memory_space<vmem>>, vector<1x32xf32>
    %c0_12 = arith.constant 0 : index
    %c0_13 = arith.constant 0 : index
    %7 = vector.load %arg7[%c0_12, %c0_13] : memref<1x32xf32, #tpu.memory_space<vmem>>, vector<1x32xf32>
    %c0_14 = arith.constant 0 : index
    %c0_15 = arith.constant 0 : index
    %8 = vector.load %arg9[%c0_14, %c0_15] : memref<1x32xf32, #tpu.memory_space<vmem>>, vector<1x32xf32>
    %c0_16 = arith.constant 0 : index
    %c0_17 = arith.constant 0 : index
    %9 = vector.load %arg11[%c0_16, %c0_17] : memref<1x32xf32, #tpu.memory_space<vmem>>, vector<1x32xf32>
    %c0_18 = arith.constant 0 : index
    %c0_19 = arith.constant 0 : index
    %10 = vector.load %arg15[%c0_18, %c0_19] : memref<1x128xf32, #tpu.memory_space<vmem>>, vector<1x128xf32>
    %c0_20 = arith.constant 0 : index
    %c0_21 = arith.constant 0 : index
    %11 = vector.load %arg17[%c0_20, %c0_21] : memref<1x32xf32, #tpu.memory_space<vmem>>, vector<1x32xf32>
    %cst = arith.constant dense<0.000000e+00> : vector<8xf32>
    %12 = vector.multi_reduction <add>, %1, %cst [1] : vector<8x32xf32> to vector<8xf32>
    %13 = vector.shape_cast %12 : vector<8xf32> to vector<8x1xf32>
    %cst_22 = arith.constant 3.200000e+01 : f32
    %14 = vector.broadcast %cst_22 : f32 to vector<8x1xf32>
    %15 = arith.divf %13, %14 : vector<8x1xf32>
    %16 = vector.broadcast %15 : vector<8x1xf32> to vector<8x32xf32>
    %17 = arith.subf %1, %16 : vector<8x32xf32>
    %18 = arith.mulf %17, %17 : vector<8x32xf32>
    %cst_23 = arith.constant dense<0.000000e+00> : vector<8xf32>
    %19 = vector.multi_reduction <add>, %18, %cst_23 [1] : vector<8x32xf32> to vector<8xf32>
    %20 = vector.shape_cast %19 : vector<8xf32> to vector<8x1xf32>
    %cst_24 = arith.constant 3.200000e+01 : f32
    %21 = vector.broadcast %cst_24 : f32 to vector<8x1xf32>
    %22 = arith.divf %20, %21 : vector<8x1xf32>
    %23 = vector.broadcast %15 : vector<8x1xf32> to vector<8x32xf32>
    %24 = arith.subf %1, %23 : vector<8x32xf32>
    %cst_25 = arith.constant 9.99999974E-6 : f32
    %25 = vector.broadcast %cst_25 : f32 to vector<8x1xf32>
    %26 = arith.addf %22, %25 : vector<8x1xf32>
    %27 = math.rsqrt %26 : vector<8x1xf32>
    %28 = vector.broadcast %27 : vector<8x1xf32> to vector<8x32xf32>
    %29 = arith.mulf %24, %28 : vector<8x32xf32>
    %30 = vector.broadcast %2 : vector<1x32xf32> to vector<8x32xf32>
    %31 = arith.mulf %29, %30 : vector<8x32xf32>
    %32 = vector.broadcast %3 : vector<1x32xf32> to vector<8x32xf32>
    %33 = arith.addf %31, %32 : vector<8x32xf32>
    %34 = arith.truncf %33 : vector<8x32xf32> to vector<8x32xbf16>
    %c0_26 = arith.constant 0 : index
    %c0_27 = arith.constant 0 : index
    %35 = vector.load %arg4[%c0_26, %c0_27] : memref<32x32xbf16, #tpu.memory_space<vmem>>, vector<32x32xbf16>
    %cst_28 = arith.constant dense<0.000000e+00> : vector<8x32xf32>
    %36 = tpu.matmul %34, %35, %cst_28 {dimension_numbers = #tpu.dot_dimension_numbers<[1], [0], [0], [1], [0, 0, 1, 1], [], []>} : vector<8x32xbf16>, vector<32x32xbf16>, vector<8x32xf32> -> vector<8x32xf32>
    %37 = vector.broadcast %6 : vector<1x32xf32> to vector<8x32xf32>
    %38 = arith.addf %36, %37 : vector<8x32xf32>
    %c0_29 = arith.constant 0 : index
    %c0_30 = arith.constant 0 : index
    %39 = vector.load %arg6[%c0_29, %c0_30] : memref<32x32xbf16, #tpu.memory_space<vmem>>, vector<32x32xbf16>
    %cst_31 = arith.constant dense<0.000000e+00> : vector<8x32xf32>
    %40 = tpu.matmul %34, %39, %cst_31 {dimension_numbers = #tpu.dot_dimension_numbers<[1], [0], [0], [1], [0, 0, 1, 1], [], []>} : vector<8x32xbf16>, vector<32x32xbf16>, vector<8x32xf32> -> vector<8x32xf32>
    %41 = vector.broadcast %7 : vector<1x32xf32> to vector<8x32xf32>
    %42 = arith.addf %40, %41 : vector<8x32xf32>
    %c0_32 = arith.constant 0 : index
    %c0_33 = arith.constant 0 : index
    %43 = vector.load %arg8[%c0_32, %c0_33] : memref<32x32xbf16, #tpu.memory_space<vmem>>, vector<32x32xbf16>
    %cst_34 = arith.constant dense<0.000000e+00> : vector<8x32xf32>
    %44 = tpu.matmul %34, %43, %cst_34 {dimension_numbers = #tpu.dot_dimension_numbers<[1], [0], [0], [1], [0, 0, 1, 1], [], []>} : vector<8x32xbf16>, vector<32x32xbf16>, vector<8x32xf32> -> vector<8x32xf32>
    %45 = vector.broadcast %8 : vector<1x32xf32> to vector<8x32xf32>
    %46 = arith.addf %44, %45 : vector<8x32xf32>
    %cst_35 = arith.constant 0.353553385 : f32
    %47 = vector.broadcast %cst_35 : f32 to vector<8x32xf32>
    %48 = arith.mulf %38, %47 : vector<8x32xf32>
    %49 = arith.truncf %48 : vector<8x32xf32> to vector<8x32xbf16>
    %50 = vector.shape_cast %49 : vector<8x32xbf16> to vector<8x4x8xbf16>
    %51 = tpu.transpose %50, [1, 0, 2] : vector<8x4x8xbf16> -> vector<4x8x8xbf16>
    %52 = arith.truncf %42 : vector<8x32xf32> to vector<8x32xbf16>
    %53 = vector.shape_cast %52 : vector<8x32xbf16> to vector<8x4x8xbf16>
    %54 = tpu.transpose %53, [1, 0, 2] : vector<8x4x8xbf16> -> vector<4x8x8xbf16>
    %55 = arith.truncf %46 : vector<8x32xf32> to vector<8x32xbf16>
    %56 = vector.shape_cast %55 : vector<8x32xbf16> to vector<8x4x8xbf16>
    %57 = tpu.transpose %56, [1, 0, 2] : vector<8x4x8xbf16> -> vector<4x8x8xbf16>
    %58 = tpu.iota {dimensions = array<i32: 0>} : vector<8x8xi32>
    %59 = tpu.iota {dimensions = array<i32: 1>} : vector<8x8xi32>
    %60 = arith.cmpi sge, %58, %59 : vector<8x8xi32>
    %c5_i32 = arith.constant 5 : i32
    %c0_i32 = arith.constant 0 : i32
    %61 = arith.cmpi eq, %c5_i32, %c0_i32 : i32
    %c1_i32 = arith.constant 1 : i32
    %62 = arith.select %61, %c1_i32, %c5_i32 : i32
    %63 = vector.broadcast %62 : i32 to vector<8x8xi32>
    %64 = arith.remsi %59, %63 : vector<8x8xi32>
    %c0_i32_36 = arith.constant 0 : i32
    %65 = vector.broadcast %c0_i32_36 : i32 to vector<8x8xi32>
    %66 = arith.cmpi ne, %64, %65 : vector<8x8xi32>
    %c0_i32_37 = arith.constant 0 : i32
    %67 = vector.broadcast %c0_i32_37 : i32 to vector<8x8xi32>
    %68 = arith.cmpi slt, %64, %67 : vector<8x8xi32>
    %c0_i32_38 = arith.constant 0 : i32
    %69 = arith.cmpi slt, %62, %c0_i32_38 : i32
    %70 = vector.broadcast %69 : i1 to vector<8x8xi1>
    %71 = vector.broadcast %70 : vector<8x8xi1> to vector<8x8xi1>
    %72 = arith.xori %68, %71 : vector<8x8xi1>
    %73 = arith.andi %72, %66 : vector<8x8xi1>
    %74 = vector.broadcast %62 : i32 to vector<8x8xi32>
    %75 = arith.addi %64, %74 : vector<8x8xi32>
    %76 = arith.select %73, %75, %64 : vector<8x8xi1>, vector<8x8xi32>
    %c4_i32 = arith.constant 4 : i32
    %77 = vector.broadcast %c4_i32 : i32 to vector<8x8xi32>
    %78 = arith.cmpi ne, %76, %77 : vector<8x8xi32>
    %79 = arith.andi %60, %78 : vector<8x8xi1>
    %cst_39 = arith.constant 0.000000e+00 : f32
    %cst_40 = arith.constant -1.000000e+30 : f32
    %80 = vector.broadcast %cst_39 : f32 to vector<8x8xf32>
    %81 = vector.broadcast %cst_40 : f32 to vector<8x8xf32>
    %82 = arith.select %79, %80, %81 : vector<8x8xi1>, vector<8x8xf32>
    "tpu.trace_start"() <{level = 10 : i32, message = "htd,hsd->hts"}> : () -> ()
    %cst_41 = arith.constant dense<0.000000e+00> : vector<4x8x8xf32>
    %83 = tpu.matmul %51, %54, %cst_41 {dimension_numbers = #tpu.dot_dimension_numbers<[2], [2], [1], [1], [0, 0, 0, 1, 1, 1], [0], [0]>} : vector<4x8x8xbf16>, vector<4x8x8xbf16>, vector<4x8x8xf32> -> vector<4x8x8xf32>
    "tpu.trace_stop"() : () -> ()
    %84 = vector.shape_cast %82 : vector<8x8xf32> to vector<1x8x8xf32>
    %85 = vector.broadcast %84 : vector<1x8x8xf32> to vector<4x8x8xf32>
    %86 = arith.addf %83, %85 : vector<4x8x8xf32>
    %cst_42 = arith.constant dense<0xFF800000> : vector<4x8xf32>
    %87 = vector.multi_reduction <maximumf>, %86, %cst_42 [2] : vector<4x8x8xf32> to vector<4x8xf32>
    %88 = vector.shape_cast %87 : vector<4x8xf32> to vector<4x8x1xf32>
    %89 = vector.broadcast %88 : vector<4x8x1xf32> to vector<4x8x8xf32>
    %90 = arith.subf %86, %89 : vector<4x8x8xf32>
    %91 = math.exp %90 : vector<4x8x8xf32>
    %cst_43 = arith.constant dense<0.000000e+00> : vector<4x8xf32>
    %92 = vector.multi_reduction <add>, %91, %cst_43 [2] : vector<4x8x8xf32> to vector<4x8xf32>
    %93 = vector.shape_cast %92 : vector<4x8xf32> to vector<4x8x1xf32>
    %94 = tpu.reciprocal %93 {approx = true} : vector<4x8x1xf32> -> vector<4x8x1xf32>
    %95 = vector.broadcast %94 : vector<4x8x1xf32> to vector<4x8x8xf32>
    %96 = arith.mulf %91, %95 : vector<4x8x8xf32>
    %97 = arith.truncf %96 : vector<4x8x8xf32> to vector<4x8x8xbf16>
    "tpu.trace_start"() <{level = 10 : i32, message = "hts,hsd->htd"}> : () -> ()
    %cst_44 = arith.constant dense<0.000000e+00> : vector<4x8x8xf32>
    %98 = tpu.matmul %97, %57, %cst_44 {dimension_numbers = #tpu.dot_dimension_numbers<[2], [1], [1], [2], [0, 0, 0, 1, 1, 2], [0], [0]>} : vector<4x8x8xbf16>, vector<4x8x8xbf16>, vector<4x8x8xf32> -> vector<4x8x8xf32>
    "tpu.trace_stop"() : () -> ()
    %99 = tpu.transpose %98, [1, 0, 2] : vector<4x8x8xf32> -> vector<8x4x8xf32>
    %100 = vector.shape_cast %99 : vector<8x4x8xf32> to vector<8x32xf32>
    %101 = arith.truncf %100 : vector<8x32xf32> to vector<8x32xbf16>
    %c0_45 = arith.constant 0 : index
    %c0_46 = arith.constant 0 : index
    %102 = vector.load %arg10[%c0_45, %c0_46] : memref<32x32xbf16, #tpu.memory_space<vmem>>, vector<32x32xbf16>
    %cst_47 = arith.constant dense<0.000000e+00> : vector<8x32xf32>
    %103 = tpu.matmul %101, %102, %cst_47 {dimension_numbers = #tpu.dot_dimension_numbers<[1], [0], [0], [1], [0, 0, 1, 1], [], []>} : vector<8x32xbf16>, vector<32x32xbf16>, vector<8x32xf32> -> vector<8x32xf32>
    %104 = vector.broadcast %9 : vector<1x32xf32> to vector<8x32xf32>
    %105 = arith.addf %103, %104 : vector<8x32xf32>
    %106 = arith.addf %1, %105 : vector<8x32xf32>
    %cst_48 = arith.constant dense<0.000000e+00> : vector<8xf32>
    %107 = vector.multi_reduction <add>, %106, %cst_48 [1] : vector<8x32xf32> to vector<8xf32>
    %108 = vector.shape_cast %107 : vector<8xf32> to vector<8x1xf32>
    %cst_49 = arith.constant 3.200000e+01 : f32
    %109 = vector.broadcast %cst_49 : f32 to vector<8x1xf32>
    %110 = arith.divf %108, %109 : vector<8x1xf32>
    %111 = vector.broadcast %110 : vector<8x1xf32> to vector<8x32xf32>
    %112 = arith.subf %106, %111 : vector<8x32xf32>
    %113 = arith.mulf %112, %112 : vector<8x32xf32>
    %cst_50 = arith.constant dense<0.000000e+00> : vector<8xf32>
    %114 = vector.multi_reduction <add>, %113, %cst_50 [1] : vector<8x32xf32> to vector<8xf32>
    %115 = vector.shape_cast %114 : vector<8xf32> to vector<8x1xf32>
    %cst_51 = arith.constant 3.200000e+01 : f32
    %116 = vector.broadcast %cst_51 : f32 to vector<8x1xf32>
    %117 = arith.divf %115, %116 : vector<8x1xf32>
    %118 = vector.broadcast %110 : vector<8x1xf32> to vector<8x32xf32>
    %119 = arith.subf %106, %118 : vector<8x32xf32>
    %cst_52 = arith.constant 9.99999974E-6 : f32
    %120 = vector.broadcast %cst_52 : f32 to vector<8x1xf32>
    %121 = arith.addf %117, %120 : vector<8x1xf32>
    %122 = math.rsqrt %121 : vector<8x1xf32>
    %123 = vector.broadcast %122 : vector<8x1xf32> to vector<8x32xf32>
    %124 = arith.mulf %119, %123 : vector<8x32xf32>
    %125 = vector.broadcast %4 : vector<1x32xf32> to vector<8x32xf32>
    %126 = arith.mulf %124, %125 : vector<8x32xf32>
    %127 = vector.broadcast %5 : vector<1x32xf32> to vector<8x32xf32>
    %128 = arith.addf %126, %127 : vector<8x32xf32>
    %129 = arith.truncf %128 : vector<8x32xf32> to vector<8x32xbf16>
    %c0_53 = arith.constant 0 : index
    %c0_54 = arith.constant 0 : index
    %130 = vector.load %arg14[%c0_53, %c0_54] : memref<32x128xbf16, #tpu.memory_space<vmem>>, vector<32x128xbf16>
    %cst_55 = arith.constant dense<0.000000e+00> : vector<8x128xf32>
    %131 = tpu.matmul %129, %130, %cst_55 {dimension_numbers = #tpu.dot_dimension_numbers<[1], [0], [0], [1], [0, 0, 1, 1], [], []>} : vector<8x32xbf16>, vector<32x128xbf16>, vector<8x128xf32> -> vector<8x128xf32>
    %132 = vector.broadcast %10 : vector<1x128xf32> to vector<8x128xf32>
    %133 = arith.addf %131, %132 : vector<8x128xf32>
    %cst_56 = arith.constant 5.000000e-01 : f32
    %134 = vector.broadcast %cst_56 : f32 to vector<8x128xf32>
    %135 = arith.mulf %134, %133 : vector<8x128xf32>
    %cst_57 = arith.constant 0.707106769 : f32
    %136 = vector.broadcast %cst_57 : f32 to vector<8x128xf32>
    %137 = arith.mulf %133, %136 : vector<8x128xf32>
    %138 = math.erf %137 : vector<8x128xf32>
    %cst_58 = arith.constant 1.000000e+00 : f32
    %139 = vector.broadcast %cst_58 : f32 to vector<8x128xf32>
    %140 = arith.addf %139, %138 : vector<8x128xf32>
    %141 = arith.mulf %135, %140 : vector<8x128xf32>
    %142 = arith.truncf %141 : vector<8x128xf32> to vector<8x128xbf16>
    %c0_59 = arith.constant 0 : index
    %c0_60 = arith.constant 0 : index
    %143 = vector.load %arg16[%c0_59, %c0_60] : memref<128x32xbf16, #tpu.memory_space<vmem>>, vector<128x32xbf16>
    %cst_61 = arith.constant dense<0.000000e+00> : vector<8x32xf32>
    %144 = tpu.matmul %142, %143, %cst_61 {dimension_numbers = #tpu.dot_dimension_numbers<[1], [0], [0], [1], [0, 0, 1, 1], [], []>} : vector<8x128xbf16>, vector<128x32xbf16>, vector<8x32xf32> -> vector<8x32xf32>
    %145 = vector.broadcast %11 : vector<1x32xf32> to vector<8x32xf32>
    %146 = arith.addf %144, %145 : vector<8x32xf32>
    %147 = arith.addf %106, %146 : vector<8x32xf32>
    %c0_62 = arith.constant 0 : index
    %c0_63 = arith.constant 0 : index
    %c0_64 = arith.constant 0 : index
    %148 = vector.load %arg18[%c0_62, %c0_63, %c0_64] : memref<1x8x32xf32, #tpu.memory_space<vmem>>, vector<1x8x32xf32>
    %149 = vector.shape_cast %148 : vector<1x8x32xf32> to vector<8x32xf32>
    %150 = vector.shape_cast %147 : vector<8x32xf32> to vector<1x8x32xf32>
    tpu.vector_store %arg18[%c0_62, %c0_63, %c0_64], %150 {strides = array<i32>} : memref<1x8x32xf32, #tpu.memory_space<vmem>>, vector<1x8x32xf32>,
    return
  }
  func.func @transform_0(%arg0: i32) -> (i32, i32, i32) {
    %c0_i32 = arith.constant 0 : i32
    %c0_i32_0 = arith.constant 0 : i32
    %c0_i32_1 = arith.constant 0 : i32
    return %arg0, %c0_i32, %c0_i32_0 : i32, i32, i32
  }
  func.func @transform_1(%arg0: i32) -> (i32, i32) {
    %c0_i32 = arith.constant 0 : i32
    %c0_i32_0 = arith.constant 0 : i32
    %c0_i32_1 = arith.constant 0 : i32
    return %c0_i32, %c0_i32_0 : i32, i32
  }
  func.func @transform_2(%arg0: i32) -> (i32, i32) {
    %c0_i32 = arith.constant 0 : i32
    %c0_i32_0 = arith.constant 0 : i32
    %c0_i32_1 = arith.constant 0 : i32
    return %c0_i32, %c0_i32_0 : i32, i32
  }
  func.func @transform_3(%arg0: i32) -> (i32, i32) {
    %c0_i32 = arith.constant 0 : i32
    %c0_i32_0 = arith.constant 0 : i32
    %c0_i32_1 = arith.constant 0 : i32
    return %c0_i32, %c0_i32_0 : i32, i32
  }
  func.func @transform_4(%arg0: i32) -> (i32, i32) {
    %c0_i32 = arith.constant 0 : i32
    %c0_i32_0 = arith.constant 0 : i32
    %c0_i32_1 = arith.constant 0 : i32
    return %c0_i32, %c0_i32_0 : i32, i32
  }
  func.func @transform_5(%arg0: i32) -> (i32, i32) {
    %c0_i32 = arith.constant 0 : i32
    %c0_i32_0 = arith.constant 0 : i32
    %c0_i32_1 = arith.constant 0 : i32
    return %c0_i32, %c0_i32_0 : i32, i32
  }
  func.func @transform_6(%arg0: i32) -> (i32, i32) {
    %c0_i32 = arith.constant 0 : i32
    %c0_i32_0 = arith.constant 0 : i32
    %c0_i32_1 = arith.constant 0 : i32
    return %c0_i32, %c0_i32_0 : i32, i32
  }
  func.func @transform_7(%arg0: i32) -> (i32, i32) {
    %c0_i32 = arith.constant 0 : i32
    %c0_i32_0 = arith.constant 0 : i32
    %c0_i32_1 = arith.constant 0 : i32
    return %c0_i32, %c0_i32_0 : i32, i32
  }
  func.func @transform_8(%arg0: i32) -> (i32, i32) {
    %c0_i32 = arith.constant 0 : i32
    %c0_i32_0 = arith.constant 0 : i32
    %c0_i32_1 = arith.constant 0 : i32
    return %c0_i32, %c0_i32_0 : i32, i32
  }
  func.func @transform_9(%arg0: i32) -> (i32, i32) {
    %c0_i32 = arith.constant 0 : i32
    %c0_i32_0 = arith.constant 0 : i32
    %c0_i32_1 = arith.constant 0 : i32
    return %c0_i32, %c0_i32_0 : i32, i32
  }
  func.func @transform_10(%arg0: i32) -> (i32, i32) {
    %c0_i32 = arith.constant 0 : i32
    %c0_i32_0 = arith.constant 0 : i32
    %c0_i32_1 = arith.constant 0 : i32
    return %c0_i32, %c0_i32_0 : i32, i32
  }
  func.func @transform_11(%arg0: i32) -> (i32, i32) {
    %c0_i32 = arith.constant 0 : i32
    %c0_i32_0 = arith.constant 0 : i32
    %c0_i32_1 = arith.constant 0 : i32
    return %c0_i32, %c0_i32_0 : i32, i32
  }
  func.func @transform_12(%arg0: i32) -> (i32, i32) {
    %c0_i32 = arith.constant 0 : i32
    %c0_i32_0 = arith.constant 0 : i32
    %c0_i32_1 = arith.constant 0 : i32
    return %c0_i32, %c0_i32_0 : i32, i32
  }
  func.func @transform_13(%arg0: i32) -> (i32, i32) {
    %c0_i32 = arith.constant 0 : i32
    %c0_i32_0 = arith.constant 0 : i32
    %c0_i32_1 = arith.constant 0 : i32
    return %c0_i32, %c0_i32_0 : i32, i32
  }
  func.func @transform_14(%arg0: i32) -> (i32, i32) {
    %c0_i32 = arith.constant 0 : i32
    %c0_i32_0 = arith.constant 0 : i32
    %c0_i32_1 = arith.constant 0 : i32
    return %c0_i32, %c0_i32_0 : i32, i32
  }
  func.func @transform_15(%arg0: i32) -> (i32, i32) {
    %c0_i32 = arith.constant 0 : i32
    %c0_i32_0 = arith.constant 0 : i32
    %c0_i32_1 = arith.constant 0 : i32
    return %c0_i32, %c0_i32_0 : i32, i32
  }
  func.func @transform_16(%arg0: i32) -> (i32, i32) {
    %c0_i32 = arith.constant 0 : i32
    %c0_i32_0 = arith.constant 0 : i32
    %c0_i32_1 = arith.constant 0 : i32
    return %c0_i32, %c0_i32_0 : i32, i32
  }
  func.func @transform_17(%arg0: i32) -> (i32, i32, i32) {
    %c0_i32 = arith.constant 0 : i32
    %c0_i32_0 = arith.constant 0 : i32
    %c0_i32_1 = arith.constant 0 : i32
    return %arg0, %c0_i32, %c0_i32_0 : i32, i32, i32
  }
}

module attributes {stable_mosaic.version = 11 : i64} {
  func.func @block_kernel(%arg0: i32, %arg1: memref<1x8x32xf32, #tpu.memory_space<vmem>>, %arg2: memref<1x32xf32, #tpu.memory_space<vmem>>, %arg3: memref<1x32xf32, #tpu.memory_space<vmem>>, %arg4: memref<32x32xbf16, #tpu.memory_space<vmem>>, %arg5: memref<1x32xf32, #tpu.memory_space<vmem>>, %arg6: memref<32x32xbf16, #tpu.memory_space<vmem>>, %arg7: memref<1x32xf32, #tpu.memory_space<vmem>>, %arg8: memref<32x32xbf16, #tpu.memory_space<vmem>>, %arg9: memref<1x32xf32, #tpu.memory_space<vmem>>, %arg10: memref<32x32xbf16, #tpu.memory_space<vmem>>, %arg11: memref<1x32xf32, #tpu.memory_space<vmem>>, %arg12: memref<1x32xf32, #tpu.memory_space<vmem>>, %arg13: memref<1x32xf32, #tpu.memory_space<vmem>>, %arg14: memref<32x128xbf16, #tpu.memory_space<vmem>>, %arg15: memref<1x128xf32, #tpu.memory_space<vmem>>, %arg16: memref<128x32xbf16, #tpu.memory_space<vmem>>, %arg17: memref<1x32xf32, #tpu.memory_space<vmem>>, %arg18: memref<1x8x32xf32, #tpu.memory_space<vmem>>) attributes {dimension_semantics = [#tpu.dimension_semantics<parallel>], iteration_bounds = array<i64: 2>, scalar_prefetch = 0 : i64, scratch_operands = 0 : i64, tpu.core_type = #tpu.core_type<tc>, window_params = [{transform_indices = @transform_0, window_bounds = array<i64: 1, 8, 32>}, {pipeline_mode = #tpu.pipeline_mode<synchronous>, transform_indices = @transform_1, window_bounds = array<i64: 1, 32>}, {pipeline_mode = #tpu.pipeline_mode<synchronous>, transform_indices = @transform_2, window_bounds = array<i64: 1, 32>}, {pipeline_mode = #tpu.pipeline_mode<synchronous>, transform_indices = @transform_3, window_bounds = array<i64: 32, 32>}, {pipeline_mode = #tpu.pipeline_mode<synchronous>, transform_indices = @transform_4, window_bounds = array<i64: 1, 32>}, {pipeline_mode = #tpu.pipeline_mode<synchronous>, transform_indices = @transform_5, window_bounds = array<i64: 32, 32>}, {pipeline_mode = #tpu.pipeline_mode<synchronous>, transform_indices = @transform_6, window_bounds = array<i64: 1, 32>}, {pipeline_mode = #tpu.pipeline_mode<synchronous>, transform_indices = @transform_7, window_bounds = array<i64: 32, 32>}, {pipeline_mode = #tpu.pipeline_mode<synchronous>, transform_indices = @transform_8, window_bounds = array<i64: 1, 32>}, {pipeline_mode = #tpu.pipeline_mode<synchronous>, transform_indices = @transform_9, window_bounds = array<i64: 32, 32>}, {pipeline_mode = #tpu.pipeline_mode<synchronous>, transform_indices = @transform_10, window_bounds = array<i64: 1, 32>}, {pipeline_mode = #tpu.pipeline_mode<synchronous>, transform_indices = @transform_11, window_bounds = array<i64: 1, 32>}, {pipeline_mode = #tpu.pipeline_mode<synchronous>, transform_indices = @transform_12, window_bounds = array<i64: 1, 32>}, {pipeline_mode = #tpu.pipeline_mode<synchronous>, transform_indices = @transform_13, window_bounds = array<i64: 32, 128>}, {pipeline_mode = #tpu.pipeline_mode<synchronous>, transform_indices = @transform_14, window_bounds = array<i64: 1, 128>}, {pipeline_mode = #tpu.pipeline_mode<synchronous>, transform_indices = @transform_15, window_bounds = array<i64: 128, 32>}, {pipeline_mode = #tpu.pipeline_mode<synchronous>, transform_indices = @transform_16, window_bounds = array<i64: 1, 32>}, {transform_indices = @transform_17, window_bounds = array<i64: 1, 8, 32>}]} {
    %c0 = arith.constant 0 : index
    %c0_0 = arith.constant 0 : index
    %c0_1 = arith.constant 0 : index
    %0 = vector.load %arg1[%c0, %c0_0, %c0_1] : memref<1x8x32xf32, #tpu.memory_space<vmem>>, vector<1x8x32xf32>
    %1 = vector.shape_cast %0 : vector<1x8x32xf32> to vector<8x32xf32>
    %c0_2 = arith.constant 0 : index
    %c0_3 = arith.constant 0 : index
    %2 = vector.load %arg2[%c0_2, %c0_3] : memref<1x32xf32, #tpu.memory_space<vmem>>, vector<1x32xf32>
    %c0_4 = arith.constant 0 : index
    %c0_5 = arith.constant 0 : index
    %3 = vector.load %arg3[%c0_4, %c0_5] : memref<1x32xf32, #tpu.memory_space<vmem>>, vector<1x32xf32>
    %c0_6 = arith.constant 0 : index
    %c0_7 = arith.constant 0 : index
    %4 = vector.load %arg12[%c0_6, %c0_7] : memref<1x32xf32, #tpu.memory_space<vmem>>, vector<1x32xf32>
    %c0_8 = arith.constant 0 : index
    %c0_9 = arith.constant 0 : index
    %5 = vector.load %arg13[%c0_8, %c0_9] : memref<1x32xf32, #tpu.memory_space<vmem>>, vector<1x32xf32>
    %c0_10 = arith.constant 0 : index
    %c0_11 = arith.constant 0 : index
    %6 = vector.load %arg5[%c0_10, %c0_11] : memref<1x32xf32, #tpu.memory_space<vmem>>, vector<1x32xf32>
    %c0_12 = arith.constant 0 : index
    %c0_13 = arith.constant 0 : index
    %7 = vector.load %arg7[%c0_12, %c0_13] : memref<1x32xf32, #tpu.memory_space<vmem>>, vector<1x32xf32>
    %c0_14 = arith.constant 0 : index
    %c0_15 = arith.constant 0 : index
    %8 = vector.load %arg9[%c0_14, %c0_15] : memref<1x32xf32, #tpu.memory_space<vmem>>, vector<1x32xf32>
    %c0_16 = arith.constant 0 : index
    %c0_17 = arith.constant 0 : index
    %9 = vector.load %arg11[%c0_16, %c0_17] : memref<1x32xf32, #tpu.memory_space<vmem>>, vector<1x32xf32>
    %c0_18 = arith.constant 0 : index
    %c0_19 = arith.constant 0 : index
    %10 = vector.load %arg15[%c0_18, %c0_19] : memref<1x128xf32, #tpu.memory_space<vmem>>, vector<1x128xf32>
    %c0_20 = arith.constant 0 : index
    %c0_21 = arith.constant 0 : index
    %11 = vector.load %arg17[%c0_20, %c0_21] : memref<1x32xf32, #tpu.memory_space<vmem>>, vector<1x32xf32>
    %cst = arith.constant dense<0.000000e+00> : vector<8xf32>
    %12 = vector.multi_reduction <add>, %1, %cst [1] : vector<8x32xf32> to vector<8xf32>
    %13 = vector.shape_cast %12 : vector<8xf32> to vector<8x1xf32>
    %cst_22 = arith.constant 3.200000e+01 : f32
    %14 = vector.broadcast %cst_22 : f32 to vector<8x1xf32>
    %15 = arith.divf %13, %14 : vector<8x1xf32>
    %16 = vector.broadcast %15 : vector<8x1xf32> to vector<8x32xf32>
    %17 = arith.subf %1, %16 : vector<8x32xf32>
    %18 = arith.mulf %17, %17 : vector<8x32xf32>
    %cst_23 = arith.constant dense<0.000000e+00> : vector<8xf32>
    %19 = vector.multi_reduction <add>, %18, %cst_23 [1] : vector<8x32xf32> to vector<8xf32>
    %20 = vector.shape_cast %19 : vector<8xf32> to vector<8x1xf32>
    %cst_24 = arith.constant 3.200000e+01 : f32
    %21 = vector.broadcast %cst_24 : f32 to vector<8x1xf32>
    %22 = arith.divf %20, %21 : vector<8x1xf32>
    %23 = vector.broadcast %15 : vector<8x1xf32> to vector<8x32xf32>
    %24 = arith.subf %1, %23 : vector<8x32xf32>
    %cst_25 = arith.constant 9.99999974E-6 : f32
    %25 = vector.broadcast %cst_25 : f32 to vector<8x1xf32>
    %26 = arith.addf %22, %25 : vector<8x1xf32>
    %27 = math.rsqrt %26 : vector<8x1xf32>
    %28 = vector.broadcast %27 : vector<8x1xf32> to vector<8x32xf32>
    %29 = arith.mulf %24, %28 : vector<8x32xf32>
    %30 = vector.broadcast %2 : vector<1x32xf32> to vector<8x32xf32>
    %31 = arith.mulf %29, %30 : vector<8x32xf32>
    %32 = vector.broadcast %3 : vector<1x32xf32> to vector<8x32xf32>
    %33 = arith.addf %31, %32 : vector<8x32xf32>
    %34 = arith.truncf %33 : vector<8x32xf32> to vector<8x32xbf16>
    %c0_26 = arith.constant 0 : index
    %c0_27 = arith.constant 0 : index
    %35 = vector.load %arg4[%c0_26, %c0_27] : memref<32x32xbf16, #tpu.memory_space<vmem>>, vector<32x32xbf16>
    %cst_28 = arith.constant dense<0.000000e+00> : vector<8x32xf32>
    %36 = tpu.matmul %34, %35, %cst_28 {dimension_numbers = #tpu.dot_dimension_numbers<[1], [0], [0], [1], [0, 0, 1, 1], [], []>} : vector<8x32xbf16>, vector<32x32xbf16>, vector<8x32xf32> -> vector<8x32xf32>
    %37 = vector.broadcast %6 : vector<1x32xf32> to vector<8x32xf32>
    %38 = arith.addf %36, %37 : vector<8x32xf32>
    %c0_29 = arith.constant 0 : index
    %c0_30 = arith.constant 0 : index
    %39 = vector.load %arg6[%c0_29, %c0_30] : memref<32x32xbf16, #tpu.memory_space<vmem>>, vector<32x32xbf16>
    %cst_31 = arith.constant dense<0.000000e+00> : vector<8x32xf32>
    %40 = tpu.matmul %34, %39, %cst_31 {dimension_numbers = #tpu.dot_dimension_numbers<[1], [0], [0], [1], [0, 0, 1, 1], [], []>} : vector<8x32xbf16>, vector<32x32xbf16>, vector<8x32xf32> -> vector<8x32xf32>
    %41 = vector.broadcast %7 : vector<1x32xf32> to vector<8x32xf32>
    %42 = arith.addf %40, %41 : vector<8x32xf32>
    %c0_32 = arith.constant 0 : index
    %c0_33 = arith.constant 0 : index
    %43 = vector.load %arg8[%c0_32, %c0_33] : memref<32x32xbf16, #tpu.memory_space<vmem>>, vector<32x32xbf16>
    %cst_34 = arith.constant dense<0.000000e+00> : vector<8x32xf32>
    %44 = tpu.matmul %34, %43, %cst_34 {dimension_numbers = #tpu.dot_dimension_numbers<[1], [0], [0], [1], [0, 0, 1, 1], [], []>} : vector<8x32xbf16>, vector<32x32xbf16>, vector<8x32xf32> -> vector<8x32xf32>
    %45 = vector.broadcast %8 : vector<1x32xf32> to vector<8x32xf32>
    %46 = arith.addf %44, %45 : vector<8x32xf32>
    %cst_35 = arith.constant 0.353553385 : f32
    %47 = vector.broadcast %cst_35 : f32 to vector<8x32xf32>
    %48 = arith.mulf %38, %47 : vector<8x32xf32>
    %49 = arith.truncf %48 : vector<8x32xf32> to vector<8x32xbf16>
    %50 = vector.shape_cast %49 : vector<8x32xbf16> to vector<8x4x8xbf16>
    %51 = tpu.transpose %50, [1, 0, 2] : vector<8x4x8xbf16> -> vector<4x8x8xbf16>
    %52 = arith.truncf %42 : vector<8x32xf32> to vector<8x32xbf16>
    %53 = vector.shape_cast %52 : vector<8x32xbf16> to vector<8x4x8xbf16>
    %54 = tpu.transpose %53, [1, 0, 2] : vector<8x4x8xbf16> -> vector<4x8x8xbf16>
    %55 = arith.truncf %46 : vector<8x32xf32> to vector<8x32xbf16>
    %56 = vector.shape_cast %55 : vector<8x32xbf16> to vector<8x4x8xbf16>
    %57 = tpu.transpose %56, [1, 0, 2] : vector<8x4x8xbf16> -> vector<4x8x8xbf16>
    %58 = tpu.iota {dimensions = array<i32: 0>} : vector<8x8xi32>
    %59 = tpu.iota {dimensions = array<i32: 1>} : vector<8x8xi32>
    %60 = arith.cmpi sge, %58, %59 : vector<8x8xi32>
    %c5_i32 = arith.constant 5 : i32
    %c0_i32 = arith.constant 0 : i32
    %61 = arith.cmpi eq, %c5_i32, %c0_i32 : i32
    %c1_i32 = arith.constant 1 : i32
    %62 = arith.select %61, %c1_i32, %c5_i32 : i32
    %63 = vector.broadcast %62 : i32 to vector<8x8xi32>
    %64 = arith.remsi %59, %63 : vector<8x8xi32>
    %c0_i32_36 = arith.constant 0 : i32
    %65 = vector.broadcast %c0_i32_36 : i32 to vector<8x8xi32>
    %66 = arith.cmpi ne, %64, %65 : vector<8x8xi32>
    %c0_i32_37 = arith.constant 0 : i32
    %67 = vector.broadcast %c0_i32_37 : i32 to vector<8x8xi32>
    %68 = arith.cmpi slt, %64, %67 : vector<8x8xi32>
    %c0_i32_38 = arith.constant 0 : i32
    %69 = arith.cmpi slt, %62, %c0_i32_38 : i32
    %70 = vector.broadcast %69 : i1 to vector<8x8xi1>
    %71 = vector.broadcast %70 : vector<8x8xi1> to vector<8x8xi1>
    %72 = arith.xori %68, %71 : vector<8x8xi1>
    %73 = arith.andi %72, %66 : vector<8x8xi1>
    %74 = vector.broadcast %62 : i32 to vector<8x8xi32>
    %75 = arith.addi %64, %74 : vector<8x8xi32>
    %76 = arith.select %73, %75, %64 : vector<8x8xi1>, vector<8x8xi32>
    %c4_i32 = arith.constant 4 : i32
    %77 = vector.broadcast %c4_i32 : i32 to vector<8x8xi32>
    %78 = arith.cmpi ne, %76, %77 : vector<8x8xi32>
    %79 = arith.andi %60, %78 : vector<8x8xi1>
    %cst_39 = arith.constant 0.000000e+00 : f32
    %cst_40 = arith.constant -1.000000e+30 : f32
    %80 = vector.broadcast %cst_39 : f32 to vector<8x8xf32>
    %81 = vector.broadcast %cst_40 : f32 to vector<8x8xf32>
    %82 = arith.select %79, %80, %81 : vector<8x8xi1>, vector<8x8xf32>
    "tpu.trace_start"() <{level = 10 : i32, message = "htd,hsd->hts"}> : () -> ()
    %cst_41 = arith.constant dense<0.000000e+00> : vector<4x8x8xf32>
    %83 = tpu.matmul %51, %54, %cst_41 {dimension_numbers = #tpu.dot_dimension_numbers<[2], [2], [1], [1], [0, 0, 0, 1, 1, 1], [0], [0]>} : vector<4x8x8xbf16>, vector<4x8x8xbf16>, vector<4x8x8xf32> -> vector<4x8x8xf32>
    "tpu.trace_stop"() : () -> ()
    %84 = vector.shape_cast %82 : vector<8x8xf32> to vector<1x8x8xf32>
    %85 = vector.broadcast %84 : vector<1x8x8xf32> to vector<4x8x8xf32>
    %86 = arith.addf %83, %85 : vector<4x8x8xf32>
    %cst_42 = arith.constant dense<0xFF800000> : vector<4x8xf32>
    %87 = vector.multi_reduction <maximumf>, %86, %cst_42 [2] : vector<4x8x8xf32> to vector<4x8xf32>
    %88 = vector.shape_cast %87 : vector<4x8xf32> to vector<4x8x1xf32>
    %89 = vector.broadcast %88 : vector<4x8x1xf32> to vector<4x8x8xf32>
    %90 = arith.subf %86, %89 : vector<4x8x8xf32>
    %91 = math.exp %90 : vector<4x8x8xf32>
    %cst_43 = arith.constant dense<0.000000e+00> : vector<4x8xf32>
    %92 = vector.multi_reduction <add>, %91, %cst_43 [2] : vector<4x8x8xf32> to vector<4x8xf32>
    %93 = vector.shape_cast %92 : vector<4x8xf32> to vector<4x8x1xf32>
    %94 = tpu.reciprocal %93 {approx = true} : vector<4x8x1xf32> -> vector<4x8x1xf32>
    %95 = vector.broadcast %94 : vector<4x8x1xf32> to vector<4x8x8xf32>
    %96 = arith.mulf %91, %95 : vector<4x8x8xf32>
    %97 = arith.truncf %96 : vector<4x8x8xf32> to vector<4x8x8xbf16>
    "tpu.trace_start"() <{level = 10 : i32, message = "hts,hsd->htd"}> : () -> ()
    %cst_44 = arith.constant dense<0.000000e+00> : vector<4x8x8xf32>
    %98 = tpu.matmul %97, %57, %cst_44 {dimension_numbers = #tpu.dot_dimension_numbers<[2], [1], [1], [2], [0, 0, 0, 1, 1, 2], [0], [0]>} : vector<4x8x8xbf16>, vector<4x8x8xbf16>, vector<4x8x8xf32> -> vector<4x8x8xf32>
    "tpu.trace_stop"() : () -> ()
    %99 = tpu.transpose %98, [1, 0, 2] : vector<4x8x8xf32> -> vector<8x4x8xf32>
    %100 = vector.shape_cast %99 : vector<8x4x8xf32> to vector<8x32xf32>
    %101 = arith.truncf %100 : vector<8x32xf32> to vector<8x32xbf16>
    %c0_45 = arith.constant 0 : index
    %c0_46 = arith.constant 0 : index
    %102 = vector.load %arg10[%c0_45, %c0_46] : memref<32x32xbf16, #tpu.memory_space<vmem>>, vector<32x32xbf16>
    %cst_47 = arith.constant dense<0.000000e+00> : vector<8x32xf32>
    %103 = tpu.matmul %101, %102, %cst_47 {dimension_numbers = #tpu.dot_dimension_numbers<[1], [0], [0], [1], [0, 0, 1, 1], [], []>} : vector<8x32xbf16>, vector<32x32xbf16>, vector<8x32xf32> -> vector<8x32xf32>
    %104 = vector.broadcast %9 : vector<1x32xf32> to vector<8x32xf32>
    %105 = arith.addf %103, %104 : vector<8x32xf32>
    %106 = arith.addf %1, %105 : vector<8x32xf32>
    %cst_48 = arith.constant dense<0.000000e+00> : vector<8xf32>
    %107 = vector.multi_reduction <add>, %106, %cst_48 [1] : vector<8x32xf32> to vector<8xf32>
    %108 = vector.shape_cast %107 : vector<8xf32> to vector<8x1xf32>
    %cst_49 = arith.constant 3.200000e+01 : f32
    %109 = vector.broadcast %cst_49 : f32 to vector<8x1xf32>
    %110 = arith.divf %108, %109 : vector<8x1xf32>
    %111 = vector.broadcast %110 : vector<8x1xf32> to vector<8x32xf32>
    %112 = arith.subf %106, %111 : vector<8x32xf32>
    %113 = arith.mulf %112, %112 : vector<8x32xf32>
    %cst_50 = arith.constant dense<0.000000e+00> : vector<8xf32>
    %114 = vector.multi_reduction <add>, %113, %cst_50 [1] : vector<8x32xf32> to vector<8xf32>
    %115 = vector.shape_cast %114 : vector<8xf32> to vector<8x1xf32>
    %cst_51 = arith.constant 3.200000e+01 : f32
    %116 = vector.broadcast %cst_51 : f32 to vector<8x1xf32>
    %117 = arith.divf %115, %116 : vector<8x1xf32>
    %118 = vector.broadcast %110 : vector<8x1xf32> to vector<8x32xf32>
    %119 = arith.subf %106, %118 : vector<8x32xf32>
    %cst_52 = arith.constant 9.99999974E-6 : f32
    %120 = vector.broadcast %cst_52 : f32 to vector<8x1xf32>
    %121 = arith.addf %117, %120 : vector<8x1xf32>
    %122 = math.rsqrt %121 : vector<8x1xf32>
    %123 = vector.broadcast %122 : vector<8x1xf32> to vector<8x32xf32>
    %124 = arith.mulf %119, %123 : vector<8x32xf32>
    %125 = vector.broadcast %4 : vector<1x32xf32> to vector<8x32xf32>
    %126 = arith.mulf %124, %125 : vector<8x32xf32>
    %127 = vector.broadcast %5 : vector<1x32xf32> to vector<8x32xf32>
    %128 = arith.addf %126, %127 : vector<8x32xf32>
    %129 = arith.truncf %128 : vector<8x32xf32> to vector<8x32xbf16>
    %c0_53 = arith.constant 0 : index
    %c0_54 = arith.constant 0 : index
    %130 = vector.load %arg14[%c0_53, %c0_54] : memref<32x128xbf16, #tpu.memory_space<vmem>>, vector<32x128xbf16>
    %cst_55 = arith.constant dense<0.000000e+00> : vector<8x128xf32>
    %131 = tpu.matmul %129, %130, %cst_55 {dimension_numbers = #tpu.dot_dimension_numbers<[1], [0], [0], [1], [0, 0, 1, 1], [], []>} : vector<8x32xbf16>, vector<32x128xbf16>, vector<8x128xf32> -> vector<8x128xf32>
    %132 = vector.broadcast %10 : vector<1x128xf32> to vector<8x128xf32>
    %133 = arith.addf %131, %132 : vector<8x128xf32>
    %cst_56 = arith.constant 5.000000e-01 : f32
    %134 = vector.broadcast %cst_56 : f32 to vector<8x128xf32>
    %135 = arith.mulf %134, %133 : vector<8x128xf32>
    %cst_57 = arith.constant 0.707106769 : f32
    %136 = vector.broadcast %cst_57 : f32 to vector<8x128xf32>
    %137 = arith.mulf %133, %136 : vector<8x128xf32>
    %138 = math.erf %137 : vector<8x128xf32>
    %cst_58 = arith.constant 1.000000e+00 : f32
    %139 = vector.broadcast %cst_58 : f32 to vector<8x128xf32>
    %140 = arith.addf %139, %138 : vector<8x128xf32>
    %141 = arith.mulf %135, %140 : vector<8x128xf32>
    %142 = arith.truncf %141 : vector<8x128xf32> to vector<8x128xbf16>
    %c0_59 = arith.constant 0 : index
    %c0_60 = arith.constant 0 : index
    %143 = vector.load %arg16[%c0_59, %c0_60] : memref<128x32xbf16, #tpu.memory_space<vmem>>, vector<128x32xbf16>
    %cst_61 = arith.constant dense<0.000000e+00> : vector<8x32xf32>
    %144 = tpu.matmul %142, %143, %cst_61 {dimension_numbers = #tpu.dot_dimension_numbers<[1], [0], [0], [1], [0, 0, 1, 1], [], []>} : vector<8x128xbf16>, vector<128x32xbf16>, vector<8x32xf32> -> vector<8x32xf32>
    %145 = vector.broadcast %11 : vector<1x32xf32> to vector<8x32xf32>
    %146 = arith.addf %144, %145 : vector<8x32xf32>
    %147 = arith.addf %106, %146 : vector<8x32xf32>
    %c0_62 = arith.constant 0 : index
    %c0_63 = arith.constant 0 : index
    %c0_64 = arith.constant 0 : index
    %148 = vector.load %arg18[%c0_62, %c0_63, %c0_64] : memref<1x8x32xf32, #tpu.memory_space<vmem>>, vector<1x8x32xf32>
    %149 = vector.shape_cast %148 : vector<1x8x32xf32> to vector<8x32xf32>
    %150 = vector.shape_cast %147 : vector<8x32xf32> to vector<1x8x32xf32>
    tpu.vector_store %arg18[%c0_62, %c0_63, %c0_64], %150 {strides = array<i32>} : memref<1x8x32xf32, #tpu.memory_space<vmem>>, vector<1x8x32xf32>,
    return
  }
  func.func @transform_0(%arg0: i32) -> (i32, i32, i32) {
    %c0_i32 = arith.constant 0 : i32
    %c0_i32_0 = arith.constant 0 : i32
    %c0_i32_1 = arith.constant 0 : i32
    return %arg0, %c0_i32, %c0_i32_0 : i32, i32, i32
  }
  func.func @transform_1(%arg0: i32) -> (i32, i32) {
    %c0_i32 = arith.constant 0 : i32
    %c0_i32_0 = arith.constant 0 : i32
    %c0_i32_1 = arith.constant 0 : i32
    return %c0_i32, %c0_i32_0 : i32, i32
  }
  func.func @transform_2(%arg0: i32) -> (i32, i32) {
    %c0_i32 = arith.constant 0 : i32
    %c0_i32_0 = arith.constant 0 : i32
    %c0_i32_1 = arith.constant 0 : i32
    return %c0_i32, %c0_i32_0 : i32, i32
  }
  func.func @transform_3(%arg0: i32) -> (i32, i32) {
    %c0_i32 = arith.constant 0 : i32
    %c0_i32_0 = arith.constant 0 : i32
    %c0_i32_1 = arith.constant 0 : i32
    return %c0_i32, %c0_i32_0 : i32, i32
  }
  func.func @transform_4(%arg0: i32) -> (i32, i32) {
    %c0_i32 = arith.constant 0 : i32
    %c0_i32_0 = arith.constant 0 : i32
    %c0_i32_1 = arith.constant 0 : i32
    return %c0_i32, %c0_i32_0 : i32, i32
  }
  func.func @transform_5(%arg0: i32) -> (i32, i32) {
    %c0_i32 = arith.constant 0 : i32
    %c0_i32_0 = arith.constant 0 : i32
    %c0_i32_1 = arith.constant 0 : i32
    return %c0_i32, %c0_i32_0 : i32, i32
  }
  func.func @transform_6(%arg0: i32) -> (i32, i32) {
    %c0_i32 = arith.constant 0 : i32
    %c0_i32_0 = arith.constant 0 : i32
    %c0_i32_1 = arith.constant 0 : i32
    return %c0_i32, %c0_i32_0 : i32, i32
  }
  func.func @transform_7(%arg0: i32) -> (i32, i32) {
    %c0_i32 = arith.constant 0 : i32
    %c0_i32_0 = arith.constant 0 : i32
    %c0_i32_1 = arith.constant 0 : i32
    return %c0_i32, %c0_i32_0 : i32, i32
  }
  func.func @transform_8(%arg0: i32) -> (i32, i32) {
    %c0_i32 = arith.constant 0 : i32
    %c0_i32_0 = arith.constant 0 : i32
    %c0_i32_1 = arith.constant 0 : i32
    return %c0_i32, %c0_i32_0 : i32, i32
  }
  func.func @transform_9(%arg0: i32) -> (i32, i32) {
    %c0_i32 = arith.constant 0 : i32
    %c0_i32_0 = arith.constant 0 : i32
    %c0_i32_1 = arith.constant 0 : i32
    return %c0_i32, %c0_i32_0 : i32, i32
  }
  func.func @transform_10(%arg0: i32) -> (i32, i32) {
    %c0_i32 = arith.constant 0 : i32
    %c0_i32_0 = arith.constant 0 : i32
    %c0_i32_1 = arith.constant 0 : i32
    return %c0_i32, %c0_i32_0 : i32, i32
  }
  func.func @transform_11(%arg0: i32) -> (i32, i32) {
    %c0_i32 = arith.constant 0 : i32
    %c0_i32_0 = arith.constant 0 : i32
    %c0_i32_1 = arith.constant 0 : i32
    return %c0_i32, %c0_i32_0 : i32, i32
  }
  func.func @transform_12(%arg0: i32) -> (i32, i32) {
    %c0_i32 = arith.constant 0 : i32
    %c0_i32_0 = arith.constant 0 : i32
    %c0_i32_1 = arith.constant 0 : i32
    return %c0_i32, %c0_i32_0 : i32, i32
  }
  func.func @transform_13(%arg0: i32) -> (i32, i32) {
    %c0_i32 = arith.constant 0 : i32
    %c0_i32_0 = arith.constant 0 : i32
    %c0_i32_1 = arith.constant 0 : i32
    return %c0_i32, %c0_i32_0 : i32, i32
  }
  func.func @transform_14(%arg0: i32) -> (i32, i32) {
    %c0_i32 = arith.constant 0 : i32
    %c0_i32_0 = arith.constant 0 : i32
    %c0_i32_1 = arith.constant 0 : i32
    return %c0_i32, %c0_i32_0 : i32, i32
  }
  func.func @transform_15(%arg0: i32) -> (i32, i32) {
    %c0_i32 = arith.constant 0 : i32
    %c0_i32_0 = arith.constant 0 : i32
    %c0_i32_1 = arith.constant 0 : i32
    return %c0_i32, %c0_i32_0 : i32, i32
  }
  func.func @transform_16(%arg0: i32) -> (i32, i32) {
    %c0_i32 = arith.constant 0 : i32
    %c0_i32_0 = arith.constant 0 : i32
    %c0_i32_1 = arith.constant 0 : i32
    return %c0_i32, %c0_i32_0 : i32, i32
  }
  func.func @transform_17(%arg0: i32) -> (i32, i32, i32) {
    %c0_i32 = arith.constant 0 : i32
    %c0_i32_0 = arith.constant 0 : i32
    %c0_i32_1 = arith.constant 0 : i32
    return %arg0, %c0_i32, %c0_i32_0 : i32, i32, i32
  }
}

</mosaic_0001>

<llo_original>
// kernel: tpu_custom_call.1
$region0: #{tpu_custom_call.1}
  #allocation0 [shape = 'u32[]', space=smem, size = 0x4, offset = 0x4, fixed_abs, tag = 'smem constant byte address 0x4 - core index']
  #allocation1 [shape = 'u32[144,128]{1,0:T(1,128)}', space=vmem, size = 0x12000, scoped, tag = 'internal scratch']
  %s0 = inlined_call_operand.vmem [shape: f32[2,8,32], index: 0, kind: input, shape index: {}]
  %s1 = inlined_call_operand.vmem [shape: f32[1,32], index: 1, kind: input, shape index: {}]
  %s2 = inlined_call_operand.vmem [shape: f32[1,32], index: 2, kind: input, shape index: {}]
  %s3 = inlined_call_operand.vmem [shape: bf16[32,32], index: 3, kind: input, shape index: {}]
  %s4 = inlined_call_operand.hbm [shape: f32[1,32], index: 4, kind: input, shape index: {}]
  %s5 = inlined_call_operand.vmem [shape: bf16[32,32], index: 5, kind: input, shape index: {}]
  %s6 = inlined_call_operand.hbm [shape: f32[1,32], index: 6, kind: input, shape index: {}]
  %s7 = inlined_call_operand.vmem [shape: bf16[32,32], index: 7, kind: input, shape index: {}]
  %s8 = inlined_call_operand.hbm [shape: f32[1,32], index: 8, kind: input, shape index: {}]
  %s9 = inlined_call_operand.vmem [shape: bf16[32,32], index: 9, kind: input, shape index: {}]
  %s10 = inlined_call_operand.vmem [shape: f32[1,32], index: 10, kind: input, shape index: {}]
  %s11 = inlined_call_operand.vmem [shape: f32[1,32], index: 11, kind: input, shape index: {}]
  %s12 = inlined_call_operand.vmem [shape: f32[1,32], index: 12, kind: input, shape index: {}]
  %s13 = inlined_call_operand.vmem [shape: bf16[32,128], index: 13, kind: input, shape index: {}]
  %s14 = inlined_call_operand.vmem [shape: f32[1,128], index: 14, kind: input, shape index: {}]
  %s15 = inlined_call_operand.vmem [shape: bf16[128,32], index: 15, kind: input, shape index: {}]
  %s16 = inlined_call_operand.vmem [shape: f32[1,32], index: 16, kind: input, shape index: {}]
  %s17 = inlined_call_operand.hbm [shape: f32[2,8,32], index: 17, kind: output, shape index: {}]
  %s18 = sld [smem:[#allocation0]]
  $region113: #{tpu_custom_call.1} parent=0
    _
  %s20 = ssub.s32 1, %s18
  %s21 = scalar_select 0, %s20, %s18
  $region1: #{tpu_custom_call.1} parent=0
    #allocation2 [shape = 'u8[512]{0}', space=vmem, size = 0x400, scoped, tag = 'input window, operand 4, single buffered']
    #allocation3 [shape = 's32[2]{0}', space=sflag, size = 0x8, scoped, tag = 'scoped memory for tpu_custom_call.1']
    #allocation4 [shape = 's32[2]{0}', space=sflag, size = 0x8, scoped, tag = 'scoped memory for tpu_custom_call.1']
    #allocation5 [shape = 'u8[512]{0}', space=vmem, size = 0x400, scoped, tag = 'input window, operand 6, single buffered']
    #allocation6 [shape = 's32[1]{0}', space=sflag, size = 0x4, scoped, tag = 'scoped memory for tpu_custom_call.1']
    #allocation7 [shape = 'u8[512]{0}', space=vmem, size = 0x400, scoped, tag = 'input window, operand 8, single buffered']
    #allocation8 [shape = 'u8[8192]{0}', space=vmem, size = 0x2000, scoped, tag = 'output window, operand 0']
    %22 = vsyncpa [#allocation3], 0
    %23 = vsyncpa [#allocation6], 0
    %24 = vsyncpa [#allocation4], 0
    %s25 = scalar_lea.sflag [#allocation4], 1
    %26 = vsyncpa %s25, 0
    loop: start=0, step=1, limit=4
    $region2: #{tpu_custom_call.1} parent=1 // loop_pre_header
      _
    $region3: #{tpu_custom_call.1} parent=1 // loop_header
      %s28 = sphi 0, %s32
      %p29 = scmp.ge.s32.totalorder %s28, 4
      %s38 = sphi 0, %s40
      %s41 = sphi 0, %s38
      %s42 = sphi 0, %s41
      %s58 = sphi 0, %s42
      %s62 = sphi 0, %s62
      %s64 = sphi 0, %s62
      %s65 = sphi 0, %s64
      %s79 = sphi 0, %s65
      %s83 = sphi 0, %s83
      %s85 = sphi 0, %s83
      %s86 = sphi 0, %s85
      %s100 = sphi 0, %s86
      %s104 = sphi 0, %s104
      %s106 = sphi 0, %s104
      %s107 = sphi 0, %s106
      %s121 = sphi 0, %s107
      %s125 = sphi 0, %s125
      %s127 = sphi 0, %s125
      %s128 = sphi 0, %s127
      %s142 = sphi 0, %s128
      %s146 = sphi 0, %s146
      %s148 = sphi 0, %s146
      %s149 = sphi 0, %s148
      %s163 = sphi 0, %s149
      %s167 = sphi 0, %s167
      %s169 = sphi 0, %s167
      %s170 = sphi 0, %s169
      %s184 = sphi 0, %s170
      %s188 = sphi 0, %s188
      %s190 = sphi 0, %s188
      %s191 = sphi 0, %s190
      %s205 = sphi 0, %s191
      %s209 = sphi 0, %s209
      %s211 = sphi 0, %s209
      %s212 = sphi 0, %s211
      %s226 = sphi 0, %s212
      %s230 = sphi 0, %s230
      %s232 = sphi 0, %s230
      %s233 = sphi 0, %s232
      %s247 = sphi 0, %s233
      %s251 = sphi 0, %s251
      %s253 = sphi 0, %s251
      %s254 = sphi 0, %s253
      %s268 = sphi 0, %s254
      %s272 = sphi 0, %s272
      %s274 = sphi 0, %s272
      %s275 = sphi 0, %s274
      %s289 = sphi 0, %s275
      %s293 = sphi 0, %s293
      %s295 = sphi 0, %s293
      %s296 = sphi 0, %s295
      %s310 = sphi 0, %s296
      %s314 = sphi 0, %s314
      %s316 = sphi 0, %s314
      %s317 = sphi 0, %s316
      %s331 = sphi 0, %s317
      %s335 = sphi 0, %s335
      %s337 = sphi 0, %s335
      %s338 = sphi 0, %s337
      %s352 = sphi 0, %s338
      %s356 = sphi 0, %s356
      %s358 = sphi 0, %s356
      %s359 = sphi 0, %s358
      %s373 = sphi 0, %s359
      %s377 = sphi 0, %s377
      %s379 = sphi 0, %s377
      %s380 = sphi 0, %s379
      %s394 = sphi 0, %s380
      %s400 = sphi 0, %s402
      %s403 = sphi 0, %s400
      %s404 = sphi 0, %s403
      %s420 = sphi 0, %s404
    $region4: #{tpu_custom_call.1} parent=1 // loop_header_branch
      %31 = sbr.rel (%p29) target = $region8
    $region5: #{tpu_custom_call.1} parent=1 // loop_body
      %s33 = ssub.s32 %s28, 1
      %s34 = ssub.s32 %s28, 2
      %s35 = sadd.s32 %s28, 1
      %s36 = ssub.s32 %s28, %s35
      %p37 = scmp.eq.s32.totalorder %s36, 0
      %s39 = sadd.s32 %s38, 1
      %s40 = scalar_select %p37, %s38, %s39
      %p43 = pneg %p37
      %p44 = scmp.eq.s32.totalorder %s28, 1
      %p45 = por %p43, %p44
      %p46 = scmp.ne.s32.totalorder %s38, %s41
      %p47 = scmp.eq.s32.totalorder %s28, 0
      %p48 = por %p46, %p47
      %p49 = scmp.ne.s32.totalorder %s38, %s41
      %p50 = scmp.eq.s32.totalorder %s33, 1
      %p51 = por %p49, %p50
      %p52 = scmp.ne.s32.totalorder %s41, %s42
      %p53 = scmp.eq.s32.totalorder %s33, 0
      %p54 = por %p52, %p53
      %p55 = scmp.ne.s32.totalorder %s41, %s42
      %p56 = scmp.eq.s32.totalorder %s34, 1
      %p57 = por %p55, %p56
      %p59 = scmp.ne.s32.totalorder %s42, %s58
      %p60 = scmp.eq.s32.totalorder %s34, 0
      %p61 = por %p59, %p60
      %s63 = sadd.s32 %s62, 1
      %p66 = scmp.eq.s32.totalorder %s28, 1
      %p67 = scmp.ne.s32.totalorder %s62, %s64
      %p68 = scmp.eq.s32.totalorder %s28, 0
      %p69 = por %p67, %p68
      %p70 = scmp.ne.s32.totalorder %s62, %s64
      %p71 = scmp.eq.s32.totalorder %s33, 1
      %p72 = por %p70, %p71
      %p73 = scmp.ne.s32.totalorder %s64, %s65
      %p74 = scmp.eq.s32.totalorder %s33, 0
      %p75 = por %p73, %p74
      %p76 = scmp.ne.s32.totalorder %s64, %s65
      %p77 = scmp.eq.s32.totalorder %s34, 1
      %p78 = por %p76, %p77
      %p80 = scmp.ne.s32.totalorder %s65, %s79
      %p81 = scmp.eq.s32.totalorder %s34, 0
      %p82 = por %p80, %p81
      %s84 = sadd.s32 %s83, 1
      %p87 = scmp.eq.s32.totalorder %s28, 1
      %p88 = scmp.ne.s32.totalorder %s83, %s85
      %p89 = scmp.eq.s32.totalorder %s28, 0
      %p90 = por %p88, %p89
      %p91 = scmp.ne.s32.totalorder %s83, %s85
      %p92 = scmp.eq.s32.totalorder %s33, 1
      %p93 = por %p91, %p92
      %p94 = scmp.ne.s32.totalorder %s85, %s86
      %p95 = scmp.eq.s32.totalorder %s33, 0
      %p96 = por %p94, %p95
      %p97 = scmp.ne.s32.totalorder %s85, %s86
      %p98 = scmp.eq.s32.totalorder %s34, 1
      %p99 = por %p97, %p98
      %p101 = scmp.ne.s32.totalorder %s86, %s100
      %p102 = scmp.eq.s32.totalorder %s34, 0
      %p103 = por %p101, %p102
      %s105 = sadd.s32 %s104, 1
      %p108 = scmp.eq.s32.totalorder %s28, 1
      %p109 = scmp.ne.s32.totalorder %s104, %s106
      %p110 = scmp.eq.s32.totalorder %s28, 0
      %p111 = por %p109, %p110
      %p112 = scmp.ne.s32.totalorder %s104, %s106
      %p113 = scmp.eq.s32.totalorder %s33, 1
      %p114 = por %p112, %p113
      %p115 = scmp.ne.s32.totalorder %s106, %s107
      %p116 = scmp.eq.s32.totalorder %s33, 0
      %p117 = por %p115, %p116
      %p118 = scmp.ne.s32.totalorder %s106, %s107
      %p119 = scmp.eq.s32.totalorder %s34, 1
      %p120 = por %p118, %p119
      %p122 = scmp.ne.s32.totalorder %s107, %s121
      %p123 = scmp.eq.s32.totalorder %s34, 0
      %p124 = por %p122, %p123
      %s126 = sadd.s32 %s125, 1
      %p129 = scmp.eq.s32.totalorder %s28, 1
      %p130 = scmp.ne.s32.totalorder %s125, %s127
      %p131 = scmp.eq.s32.totalorder %s28, 0
      %p132 = por %p130, %p131
      %p133 = scmp.ne.s32.totalorder %s125, %s127
      %p134 = scmp.eq.s32.totalorder %s33, 1
      %p135 = por %p133, %p134
      %p136 = scmp.ne.s32.totalorder %s127, %s128
      %p137 = scmp.eq.s32.totalorder %s33, 0
      %p138 = por %p136, %p137
      %p139 = scmp.ne.s32.totalorder %s127, %s128
      %p140 = scmp.eq.s32.totalorder %s34, 1
      %p141 = por %p139, %p140
      %p143 = scmp.ne.s32.totalorder %s128, %s142
      %p144 = scmp.eq.s32.totalorder %s34, 0
      %p145 = por %p143, %p144
      %s147 = sadd.s32 %s146, 1
      %p150 = scmp.eq.s32.totalorder %s28, 1
      %p151 = scmp.ne.s32.totalorder %s146, %s148
      %p152 = scmp.eq.s32.totalorder %s28, 0
      %p153 = por %p151, %p152
      %p154 = scmp.ne.s32.totalorder %s146, %s148
      %p155 = scmp.eq.s32.totalorder %s33, 1
      %p156 = por %p154, %p155
      %p157 = scmp.ne.s32.totalorder %s148, %s149
      %p158 = scmp.eq.s32.totalorder %s33, 0
      %p159 = por %p157, %p158
      %p160 = scmp.ne.s32.totalorder %s148, %s149
      %p161 = scmp.eq.s32.totalorder %s34, 1
      %p162 = por %p160, %p161
      %p164 = scmp.ne.s32.totalorder %s149, %s163
      %p165 = scmp.eq.s32.totalorder %s34, 0
      %p166 = por %p164, %p165
      %s168 = sadd.s32 %s167, 1
      %p171 = scmp.eq.s32.totalorder %s28, 1
      %p172 = scmp.ne.s32.totalorder %s167, %s169
      %p173 = scmp.eq.s32.totalorder %s28, 0
      %p174 = por %p172, %p173
      %p175 = scmp.ne.s32.totalorder %s167, %s169
      %p176 = scmp.eq.s32.totalorder %s33, 1
      %p177 = por %p175, %p176
      %p178 = scmp.ne.s32.totalorder %s169, %s170
      %p179 = scmp.eq.s32.totalorder %s33, 0
      %p180 = por %p178, %p179
      %p181 = scmp.ne.s32.totalorder %s169, %s170
      %p182 = scmp.eq.s32.totalorder %s34, 1
      %p183 = por %p181, %p182
      %p185 = scmp.ne.s32.totalorder %s170, %s184
      %p186 = scmp.eq.s32.totalorder %s34, 0
      %p187 = por %p185, %p186
      %s189 = sadd.s32 %s188, 1
      %p192 = scmp.eq.s32.totalorder %s28, 1
      %p193 = scmp.ne.s32.totalorder %s188, %s190
      %p194 = scmp.eq.s32.totalorder %s28, 0
      %p195 = por %p193, %p194
      %p196 = scmp.ne.s32.totalorder %s188, %s190
      %p197 = scmp.eq.s32.totalorder %s33, 1
      %p198 = por %p196, %p197
      %p199 = scmp.ne.s32.totalorder %s190, %s191
      %p200 = scmp.eq.s32.totalorder %s33, 0
      %p201 = por %p199, %p200
      %p202 = scmp.ne.s32.totalorder %s190, %s191
      %p203 = scmp.eq.s32.totalorder %s34, 1
      %p204 = por %p202, %p203
      %p206 = scmp.ne.s32.totalorder %s191, %s205
      %p207 = scmp.eq.s32.totalorder %s34, 0
      %p208 = por %p206, %p207
      %s210 = sadd.s32 %s209, 1
      %p213 = scmp.eq.s32.totalorder %s28, 1
      %p214 = scmp.ne.s32.totalorder %s209, %s211
      %p215 = scmp.eq.s32.totalorder %s28, 0
      %p216 = por %p214, %p215
      %p217 = scmp.ne.s32.totalorder %s209, %s211
      %p218 = scmp.eq.s32.totalorder %s33, 1
      %p219 = por %p217, %p218
      %p220 = scmp.ne.s32.totalorder %s211, %s212
      %p221 = scmp.eq.s32.totalorder %s33, 0
      %p222 = por %p220, %p221
      %p223 = scmp.ne.s32.totalorder %s211, %s212
      %p224 = scmp.eq.s32.totalorder %s34, 1
      %p225 = por %p223, %p224
      %p227 = scmp.ne.s32.totalorder %s212, %s226
      %p228 = scmp.eq.s32.totalorder %s34, 0
      %p229 = por %p227, %p228
      %s231 = sadd.s32 %s230, 1
      %p234 = scmp.eq.s32.totalorder %s28, 1
      %p235 = scmp.ne.s32.totalorder %s230, %s232
      %p236 = scmp.eq.s32.totalorder %s28, 0
      %p237 = por %p235, %p236
      %p238 = scmp.ne.s32.totalorder %s230, %s232
      %p239 = scmp.eq.s32.totalorder %s33, 1
      %p240 = por %p238, %p239
      %p241 = scmp.ne.s32.totalorder %s232, %s233
      %p242 = scmp.eq.s32.totalorder %s33, 0
      %p243 = por %p241, %p242
      %p244 = scmp.ne.s32.totalorder %s232, %s233
      %p245 = scmp.eq.s32.totalorder %s34, 1
      %p246 = por %p244, %p245
      %p248 = scmp.ne.s32.totalorder %s233, %s247
      %p249 = scmp.eq.s32.totalorder %s34, 0
      %p250 = por %p248, %p249
      %s252 = sadd.s32 %s251, 1
      %p255 = scmp.eq.s32.totalorder %s28, 1
      %p256 = scmp.ne.s32.totalorder %s251, %s253
      %p257 = scmp.eq.s32.totalorder %s28, 0
      %p258 = por %p256, %p257
      %p259 = scmp.ne.s32.totalorder %s251, %s253
      %p260 = scmp.eq.s32.totalorder %s33, 1
      %p261 = por %p259, %p260
      %p262 = scmp.ne.s32.totalorder %s253, %s254
      %p263 = scmp.eq.s32.totalorder %s33, 0
      %p264 = por %p262, %p263
      %p265 = scmp.ne.s32.totalorder %s253, %s254
      %p266 = scmp.eq.s32.totalorder %s34, 1
      %p267 = por %p265, %p266
      %p269 = scmp.ne.s32.totalorder %s254, %s268
      %p270 = scmp.eq.s32.totalorder %s34, 0
      %p271 = por %p269, %p270
      %s273 = sadd.s32 %s272, 1
      %p276 = scmp.eq.s32.totalorder %s28, 1
      %p277 = scmp.ne.s32.totalorder %s272, %s274
      %p278 = scmp.eq.s32.totalorder %s28, 0
      %p279 = por %p277, %p278
      %p280 = scmp.ne.s32.totalorder %s272, %s274
      %p281 = scmp.eq.s32.totalorder %s33, 1
      %p282 = por %p280, %p281
      %p283 = scmp.ne.s32.totalorder %s274, %s275
      %p284 = scmp.eq.s32.totalorder %s33, 0
      %p285 = por %p283, %p284
      %p286 = scmp.ne.s32.totalorder %s274, %s275
      %p287 = scmp.eq.s32.totalorder %s34, 1
      %p288 = por %p286, %p287
      %p290 = scmp.ne.s32.totalorder %s275, %s289
      %p291 = scmp.eq.s32.totalorder %s34, 0
      %p292 = por %p290, %p291
      %s294 = sadd.s32 %s293, 1
      %p297 = scmp.eq.s32.totalorder %s28, 1
      %p298 = scmp.ne.s32.totalorder %s293, %s295
      %p299 = scmp.eq.s32.totalorder %s28, 0
      %p300 = por %p298, %p299
      %p301 = scmp.ne.s32.totalorder %s293, %s295
      %p302 = scmp.eq.s32.totalorder %s33, 1
      %p303 = por %p301, %p302
      %p304 = scmp.ne.s32.totalorder %s295, %s296
      %p305 = scmp.eq.s32.totalorder %s33, 0
      %p306 = por %p304, %p305
      %p307 = scmp.ne.s32.totalorder %s295, %s296
      %p308 = scmp.eq.s32.totalorder %s34, 1
      %p309 = por %p307, %p308
      %p311 = scmp.ne.s32.totalorder %s296, %s310
      %p312 = scmp.eq.s32.totalorder %s34, 0
      %p313 = por %p311, %p312
      %s315 = sadd.s32 %s314, 1
      %p318 = scmp.eq.s32.totalorder %s28, 1
      %p319 = scmp.ne.s32.totalorder %s314, %s316
      %p320 = scmp.eq.s32.totalorder %s28, 0
      %p321 = por %p319, %p320
      %p322 = scmp.ne.s32.totalorder %s314, %s316
      %p323 = scmp.eq.s32.totalorder %s33, 1
      %p324 = por %p322, %p323
      %p325 = scmp.ne.s32.totalorder %s316, %s317
      %p326 = scmp.eq.s32.totalorder %s33, 0
      %p327 = por %p325, %p326
      %p328 = scmp.ne.s32.totalorder %s316, %s317
      %p329 = scmp.eq.s32.totalorder %s34, 1
      %p330 = por %p328, %p329
      %p332 = scmp.ne.s32.totalorder %s317, %s331
      %p333 = scmp.eq.s32.totalorder %s34, 0
      %p334 = por %p332, %p333
      %s336 = sadd.s32 %s335, 1
      %p339 = scmp.eq.s32.totalorder %s28, 1
      %p340 = scmp.ne.s32.totalorder %s335, %s337
      %p341 = scmp.eq.s32.totalorder %s28, 0
      %p342 = por %p340, %p341
      %p343 = scmp.ne.s32.totalorder %s335, %s337
      %p344 = scmp.eq.s32.totalorder %s33, 1
      %p345 = por %p343, %p344
      %p346 = scmp.ne.s32.totalorder %s337, %s338
      %p347 = scmp.eq.s32.totalorder %s33, 0
      %p348 = por %p346, %p347
      %p349 = scmp.ne.s32.totalorder %s337, %s338
      %p350 = scmp.eq.s32.totalorder %s34, 1
      %p351 = por %p349, %p350
      %p353 = scmp.ne.s32.totalorder %s338, %s352
      %p354 = scmp.eq.s32.totalorder %s34, 0
      %p355 = por %p353, %p354
      %s357 = sadd.s32 %s356, 1
      %p360 = scmp.eq.s32.totalorder %s28, 1
      %p361 = scmp.ne.s32.totalorder %s356, %s358
      %p362 = scmp.eq.s32.totalorder %s28, 0
      %p363 = por %p361, %p362
      %p364 = scmp.ne.s32.totalorder %s356, %s358
      %p365 = scmp.eq.s32.totalorder %s33, 1
      %p366 = por %p364, %p365
      %p367 = scmp.ne.s32.totalorder %s358, %s359
      %p368 = scmp.eq.s32.totalorder %s33, 0
      %p369 = por %p367, %p368
      %p370 = scmp.ne.s32.totalorder %s358, %s359
      %p371 = scmp.eq.s32.totalorder %s34, 1
      %p372 = por %p370, %p371
      %p374 = scmp.ne.s32.totalorder %s359, %s373
      %p375 = scmp.eq.s32.totalorder %s34, 0
      %p376 = por %p374, %p375
      %s378 = sadd.s32 %s377, 1
      %p381 = scmp.eq.s32.totalorder %s28, 1
      %p382 = scmp.ne.s32.totalorder %s377, %s379
      %p383 = scmp.eq.s32.totalorder %s28, 0
      %p384 = por %p382, %p383
      %p385 = scmp.ne.s32.totalorder %s377, %s379
      %p386 = scmp.eq.s32.totalorder %s33, 1
      %p387 = por %p385, %p386
      %p388 = scmp.ne.s32.totalorder %s379, %s380
      %p389 = scmp.eq.s32.totalorder %s33, 0
      %p390 = por %p388, %p389
      %p391 = scmp.ne.s32.totalorder %s379, %s380
      %p392 = scmp.eq.s32.totalorder %s34, 1
      %p393 = por %p391, %p392
      %p395 = scmp.ne.s32.totalorder %s380, %s394
      %p396 = scmp.eq.s32.totalorder %s34, 0
      %p397 = por %p395, %p396
      %s398 = ssub.s32 %s28, %s35
      %p399 = scmp.eq.s32.totalorder %s398, 0
      %s401 = sadd.s32 %s400, 1
      %s402 = scalar_select %p399, %s400, %s401
      %p405 = pneg %p399
      %p406 = scmp.eq.s32.totalorder %s28, 1
      %p407 = por %p405, %p406
      %p408 = scmp.ne.s32.totalorder %s400, %s403
      %p409 = scmp.eq.s32.totalorder %s28, 0
      %p410 = por %p408, %p409
      %p411 = scmp.ne.s32.totalorder %s400, %s403
      %p412 = scmp.eq.s32.totalorder %s33, 1
      %p413 = por %p411, %p412
      %p414 = scmp.ne.s32.totalorder %s403, %s404
      %p415 = scmp.eq.s32.totalorder %s33, 0
      %p416 = por %p414, %p415
      %p417 = scmp.ne.s32.totalorder %s403, %s404
      %p418 = scmp.eq.s32.totalorder %s34, 1
      %p419 = por %p417, %p418
      %p421 = scmp.ne.s32.totalorder %s404, %s420
      %p422 = scmp.eq.s32.totalorder %s34, 0
      %p423 = por %p421, %p422
      %p424 = scmp.le.s32.totalorder 1, %s28
      %p425 = scmp.lt.s32.totalorder %s28, 3
      %p426 = pnand %p424, %p425
      %p427 = pneg %p426
      // Predicated region
      $region9: #{tpu_custom_call.1} parent=5 // pred_check
        _
      $region10: #{tpu_custom_call.1} parent=5 // pred_check_branch
        %429 = sbr.rel (%p426) target = $region12
      $region11: #{tpu_custom_call.1} parent=5 // pred_region
        %s430 = ssub.s32 %s28, 1
        // Predicated region
        $region13: #{tpu_custom_call.1} parent=11 // pred_check
          %p431 = pneg %p75
        $region14: #{tpu_custom_call.1} parent=11 // pred_check_branch
          %433 = sbr.rel (%p431) target = $region16
        $region15: #{tpu_custom_call.1} parent=11 // pred_region
          _
        $region16: #{tpu_custom_call.1} parent=11 // pred_fallthru
          _
        // Predicated region
        $region17: #{tpu_custom_call.1} parent=11 // pred_check
          %p434 = pneg %p96
        $region18: #{tpu_custom_call.1} parent=11 // pred_check_branch
          %436 = sbr.rel (%p434) target = $region20
        $region19: #{tpu_custom_call.1} parent=11 // pred_region
          _
        $region20: #{tpu_custom_call.1} parent=11 // pred_fallthru
          _
        // Predicated region
        $region21: #{tpu_custom_call.1} parent=11 // pred_check
          %p437 = pneg %p117
        $region22: #{tpu_custom_call.1} parent=11 // pred_check_branch
          %439 = sbr.rel (%p437) target = $region24
        $region23: #{tpu_custom_call.1} parent=11 // pred_region
          _
        $region24: #{tpu_custom_call.1} parent=11 // pred_fallthru
          _
        // Predicated region
        $region25: #{tpu_custom_call.1} parent=11 // pred_check
          %p440 = pneg %p138
        $region26: #{tpu_custom_call.1} parent=11 // pred_check_branch
          %442 = sbr.rel (%p440) target = $region28
        $region27: #{tpu_custom_call.1} parent=11 // pred_region
          %s444 = ssub.s32 16, 16
          %445 = vsyncadd [#allocation3], %s444
          %s447 = sshll.u32 [#allocation2], 4
          %s448 = int_to_ptr.vmem [resolvable:$true] %s447
          %450 = dma.hbm_to_vmem [thread:$0]  %s4, 16, %s448, [#allocation3]
        $region28: #{tpu_custom_call.1} parent=11 // pred_fallthru
          _
        // Predicated region
        $region29: #{tpu_custom_call.1} parent=11 // pred_check
          %p451 = pneg %p159
        $region30: #{tpu_custom_call.1} parent=11 // pred_check_branch
          %453 = sbr.rel (%p451) target = $region32
        $region31: #{tpu_custom_call.1} parent=11 // pred_region
          _
        $region32: #{tpu_custom_call.1} parent=11 // pred_fallthru
          _
        // Predicated region
        $region33: #{tpu_custom_call.1} parent=11 // pred_check
          %p454 = pneg %p180
        $region34: #{tpu_custom_call.1} parent=11 // pred_check_branch
          %456 = sbr.rel (%p454) target = $region36
        $region35: #{tpu_custom_call.1} parent=11 // pred_region
          %s458 = ssub.s32 16, 16
          %459 = vsyncadd [#allocation6], %s458
          %s461 = sshll.u32 [#allocation5], 4
          %s462 = int_to_ptr.vmem [resolvable:$true] %s461
          %464 = dma.hbm_to_vmem [thread:$0]  %s6, 16, %s462, [#allocation6]
        $region36: #{tpu_custom_call.1} parent=11 // pred_fallthru
          _
        // Predicated region
        $region37: #{tpu_custom_call.1} parent=11 // pred_check
          %p465 = pneg %p201
        $region38: #{tpu_custom_call.1} parent=11 // pred_check_branch
          %467 = sbr.rel (%p465) target = $region40
        $region39: #{tpu_custom_call.1} parent=11 // pred_region
          _
        $region40: #{tpu_custom_call.1} parent=11 // pred_fallthru
          _
        // Predicated region
        $region41: #{tpu_custom_call.1} parent=11 // pred_check
          %p468 = pneg %p222
        $region42: #{tpu_custom_call.1} parent=11 // pred_check_branch
          %470 = sbr.rel (%p468) target = $region44
        $region43: #{tpu_custom_call.1} parent=11 // pred_region
          %s472 = ssub.s32 16, 16
          %473 = vsyncadd [#allocation6], %s472
          %s475 = sshll.u32 [#allocation7], 4
          %s476 = int_to_ptr.vmem [resolvable:$true] %s475
          %478 = dma.hbm_to_vmem [thread:$0]  %s8, 16, %s476, [#allocation6]
        $region44: #{tpu_custom_call.1} parent=11 // pred_fallthru
          _
        // Predicated region
        $region45: #{tpu_custom_call.1} parent=11 // pred_check
          %p479 = pneg %p243
        $region46: #{tpu_custom_call.1} parent=11 // pred_check_branch
          %481 = sbr.rel (%p479) target = $region48
        $region47: #{tpu_custom_call.1} parent=11 // pred_region
          _
        $region48: #{tpu_custom_call.1} parent=11 // pred_fallthru
          _
        // Predicated region
        $region49: #{tpu_custom_call.1} parent=11 // pred_check
          %p482 = pneg %p264
        $region50: #{tpu_custom_call.1} parent=11 // pred_check_branch
          %484 = sbr.rel (%p482) target = $region52
        $region51: #{tpu_custom_call.1} parent=11 // pred_region
          _
        $region52: #{tpu_custom_call.1} parent=11 // pred_fallthru
          _
        // Predicated region
        $region53: #{tpu_custom_call.1} parent=11 // pred_check
          %p485 = pneg %p285
        $region54: #{tpu_custom_call.1} parent=11 // pred_check_branch
          %487 = sbr.rel (%p485) target = $region56
        $region55: #{tpu_custom_call.1} parent=11 // pred_region
          _
        $region56: #{tpu_custom_call.1} parent=11 // pred_fallthru
          _
        // Predicated region
        $region57: #{tpu_custom_call.1} parent=11 // pred_check
          %p488 = pneg %p306
        $region58: #{tpu_custom_call.1} parent=11 // pred_check_branch
          %490 = sbr.rel (%p488) target = $region60
        $region59: #{tpu_custom_call.1} parent=11 // pred_region
          _
        $region60: #{tpu_custom_call.1} parent=11 // pred_fallthru
          _
        // Predicated region
        $region61: #{tpu_custom_call.1} parent=11 // pred_check
          %p491 = pneg %p327
        $region62: #{tpu_custom_call.1} parent=11 // pred_check_branch
          %493 = sbr.rel (%p491) target = $region64
        $region63: #{tpu_custom_call.1} parent=11 // pred_region
          _
        $region64: #{tpu_custom_call.1} parent=11 // pred_fallthru
          _
        // Predicated region
        $region65: #{tpu_custom_call.1} parent=11 // pred_check
          %p494 = pneg %p348
        $region66: #{tpu_custom_call.1} parent=11 // pred_check_branch
          %496 = sbr.rel (%p494) target = $region68
        $region67: #{tpu_custom_call.1} parent=11 // pred_region
          _
        $region68: #{tpu_custom_call.1} parent=11 // pred_fallthru
          _
        // Predicated region
        $region69: #{tpu_custom_call.1} parent=11 // pred_check
          %p497 = pneg %p369
        $region70: #{tpu_custom_call.1} parent=11 // pred_check_branch
          %499 = sbr.rel (%p497) target = $region72
        $region71: #{tpu_custom_call.1} parent=11 // pred_region
          _
        $region72: #{tpu_custom_call.1} parent=11 // pred_fallthru
          _
        // Predicated region
        $region73: #{tpu_custom_call.1} parent=11 // pred_check
          %p500 = pneg %p390
        $region74: #{tpu_custom_call.1} parent=11 // pred_check_branch
          %502 = sbr.rel (%p500) target = $region76
        $region75: #{tpu_custom_call.1} parent=11 // pred_region
          _
        $region76: #{tpu_custom_call.1} parent=11 // pred_fallthru
          _
      $region12: #{tpu_custom_call.1} parent=5 // pred_fallthru
        _
      %p503 = scmp.lt.s32.totalorder %s28, 2
      // Predicated region
      $region77: #{tpu_custom_call.1} parent=5 // pred_check
        %p504 = pneg %p503
      $region78: #{tpu_custom_call.1} parent=5 // pred_check_branch
        %506 = sbr.rel (%p504) target = $region80
      $region79: #{tpu_custom_call.1} parent=5 // pred_region
        // Predicated region
        $region81: #{tpu_custom_call.1} parent=79 // pred_check
          %p507 = pneg %p48
        $region82: #{tpu_custom_call.1} parent=79 // pred_check_branch
          %509 = sbr.rel (%p507) target = $region84
        $region83: #{tpu_custom_call.1} parent=79 // pred_region
          %p510 = scmp.lt.s32.totalorder %s28, 1
          %s511 = scalar_select %p510, %s28, 1
          %s512 = smul.addr %s511, 8
          %s513 = scalar_lea.vmem %s0, %s512
        $region84: #{tpu_custom_call.1} parent=79 // pred_fallthru
          _
      $region80: #{tpu_custom_call.1} parent=5 // pred_fallthru
        _
      %p514 = scmp.le.s32.totalorder 1, %s28
      %p515 = scmp.lt.s32.totalorder %s28, 3
      %p516 = pnand %p514, %p515
      %p517 = pneg %p516
      // Predicated region
      $region85: #{tpu_custom_call.1} parent=5 // pred_check
        _
      $region86: #{tpu_custom_call.1} parent=5 // pred_check_branch
        %519 = sbr.rel (%p516) target = $region88
      $region87: #{tpu_custom_call.1} parent=5 // pred_region
        %s520 = ssub.s32 %s28, 1
        // Predicated region
        $region89: #{tpu_custom_call.1} parent=87 // pred_check
          %p521 = pneg %p138
        $region90: #{tpu_custom_call.1} parent=87 // pred_check_branch
          %523 = sbr.rel (%p521) target = $region92
        $region91: #{tpu_custom_call.1} parent=87 // pred_region
          %524 = dma.done [#allocation3], 16
        $region92: #{tpu_custom_call.1} parent=87 // pred_fallthru
          _
        // Predicated region
        $region93: #{tpu_custom_call.1} parent=87 // pred_check
          %p525 = pneg %p180
        $region94: #{tpu_custom_call.1} parent=87 // pred_check_branch
          %527 = sbr.rel (%p525) target = $region96
        $region95: #{tpu_custom_call.1} parent=87 // pred_region
          %528 = dma.done [#allocation6], 16
        $region96: #{tpu_custom_call.1} parent=87 // pred_fallthru
          _
        // Predicated region
        $region97: #{tpu_custom_call.1} parent=87 // pred_check
          %p529 = pneg %p222
        $region98: #{tpu_custom_call.1} parent=87 // pred_check_branch
          %531 = sbr.rel (%p529) target = $region100
        $region99: #{tpu_custom_call.1} parent=87 // pred_region
          %532 = dma.done [#allocation6], 16
        $region100: #{tpu_custom_call.1} parent=87 // pred_fallthru
          _
        %p533 = scmp.lt.s32.totalorder %s33, 1
        %s534 = scalar_select %p533, %s33, 1
        %s535 = smul.addr %s534, 8
        %s536 = scalar_lea.vmem %s0, %s535
        %p537 = pneg %p54
        %p538 = pneg %p51
        %p539 = pneg %p75
        %p540 = pneg %p72
        %p541 = pneg %p96
        %p542 = pneg %p93
        %p543 = pneg %p117
        %p544 = pneg %p114
        %p545 = pneg %p138
        %p546 = pneg %p135
        %p547 = pneg %p159
        %p548 = pneg %p156
        %p549 = pneg %p180
        %p550 = pneg %p177
        %p551 = pneg %p201
        %p552 = pneg %p198
        %p553 = pneg %p222
        %p554 = pneg %p219
        %p555 = pneg %p243
        %p556 = pneg %p240
        %p557 = pneg %p264
        %p558 = pneg %p261
        %p559 = pneg %p285
        %p560 = pneg %p282
        %p561 = pneg %p306
        %p562 = pneg %p303
        %p563 = pneg %p327
        %p564 = pneg %p324
        %p565 = pneg %p348
        %p566 = pneg %p345
        %p567 = pneg %p369
        %p568 = pneg %p366
        %p569 = pneg %p390
        %p570 = pneg %p387
        %p571 = pneg %p416
        %p572 = pneg %p413
        %s573 = sand.u32 %s403, 1
        %s574 = scalar_lea.sflag [#allocation4], %s573
        %s575 = sand.u32 %s403, 1
        %s576 = smul.addr %s575, 8
        %s577 = scalar_lea.vmem [#allocation8], %s576
        %p578 = scmp.lt.s32.totalorder %s33, 1
        %s579 = scalar_select %p578, %s33, 1
        %s580 = smul.addr %s579, 8
        %s581 = scalar_lea.vmem %s0, %s580
        %v583 = vld [vmem:[%s581] sm:$0xff]
        %v584 = vld [vmem:[%s1] sm:$0x1]
        %v585 = vld [vmem:[%s2] sm:$0x1]
        %v586 = vld [vmem:[%s11] sm:$0x1]
        %v587 = vld [vmem:[%s12] sm:$0x1]
        %v588 = vld [vmem:[#allocation2] sm:$0x1]
        %v589 = vld [vmem:[#allocation5] sm:$0x1]
        %v590 = vld [vmem:[#allocation7] sm:$0x1]
        %v591 = vld [vmem:[%s10] sm:$0x1]
        %v592 = vld [vmem:[%s14] sm:$0x1]
        %v593 = vld [vmem:[%s16] sm:$0x1]
        %vm594 = vcmask 261120
        %v595 = vsel %vm594, %v583, 0.0
        %596 = vadd.xlane.f32.xlu0 %v595
        %v597 = vpop.xlane.xlu0 %596
        %v598 = vrcp.pop 32.0
        %v599 = vmul.f32 %v597, %v598
        %v600 = vsub.f32 %v583, %v599
        %v601 = vmul.f32 %v600, %v600
        %v602 = vsel %vm594, %v601, 0.0
        %603 = vadd.xlane.f32.xlu0 %v602
        %v604 = vpop.xlane.xlu0 %603
        %v605 = vmul.f32 %v604, %v598
        %v606 = vadd.f32 %v605, 1e-05
        %v607 = vrsqrt.pop %v606
        %v608 = vmul.f32 %v600, %v607
        %v610 = vlaneseq
        %v611 = vshrl.u32 %v610, 7
        %v612 = vsub.s32 0, %v611
        %v613 = vrot.slane %v584, %v612
        %v615 = vmul.f32 %v608, %v613
        %v617 = vlaneseq
        %v618 = vshrl.u32 %v617, 7
        %v619 = vsub.s32 0, %v618
        %v620 = vrot.slane %v585, %v619
        %v622 = vadd.f32 %v615, %v620
        %v623 = vpack.c.bf16 %v622, %v622
        %v624 = vld [vmem:[%s3] sm:$0xf]
        %v625 = vld [vmem:[%s3 + $0x4] sm:$0xf]
        %v626 = vld [vmem:[%s3 + $0x8] sm:$0xf]
        %v627 = vld [vmem:[%s3 + $0xc] sm:$0xf]
        %v629 = vlaneseq
        %v630 = vshrl.u32 %v629, 7
        %v631 = vsub.s32 0, %v630
        %v632 = vrot.slane %v588, %v631
        %v638 = vunpack.c.l.b16 %v624
        %v639 = vunpack.c.l.b16 %v625
        %v640 = vunpack.c.l.b16 %v626
        %v641 = vunpack.c.l.b16 %v627
        %v642 = vpack.c.b16 %v639, %v638
        %v643 = vpack.c.b16 %v641, %v640
        %v647 = vsel %vm594, %v623, 0
        %649 = vmatprep.subr.bf16.mxu0 0
        %650 = vmatpush1.bf16.msra.mxu0 %v642
        %651 = vmatprep.subr.bf16.mxu0 0
        %652 = vmatpush1.bf16.msra.mxu0 %v643
        %653 = vmatprep.subr.bf16.mxu0 0
        %654 = vmatpush1.bf16.msra.mxu0 0
        %655 = vmatprep.subr.bf16.mxu0 0
        %656 = vmatpush1.bf16.msra.mxu0 0
        %657 = vmatprep.subr.bf16.mxu0 0
        %658 = vmatpush1.bf16.msra.mxu0 0
        %659 = vmatprep.subr.bf16.mxu0 0
        %660 = vmatpush1.bf16.msra.mxu0 0
        %661 = vmatprep.subr.bf16.mxu0 0
        %662 = vmatpush1.bf16.msra.mxu0 0
        %663 = vmatprep.subr.bf16.mxu0 0
        %664 = vmatpush1.bf16.msra.mxu0 0
        %665 = vmatprep.subr.bf16.mxu0 0
        %666 = vmatpush1.bf16.msra.mxu0 0
        %667 = vmatprep.subr.bf16.mxu0 0
        %668 = vmatpush1.bf16.msra.mxu0 0
        %669 = vmatprep.subr.bf16.mxu0 0
        %670 = vmatpush1.bf16.msra.mxu0 0
        %671 = vmatprep.subr.bf16.mxu0 0
        %672 = vmatpush1.bf16.msra.mxu0 0
        %673 = vmatprep.subr.bf16.mxu0 0
        %674 = vmatpush1.bf16.msra.mxu0 0
        %675 = vmatprep.subr.bf16.mxu0 0
        %676 = vmatpush1.bf16.msra.mxu0 0
        %677 = vmatprep.subr.bf16.mxu0 0
        %678 = vmatpush1.bf16.msra.mxu0 0
        %679 = vmatprep.subr.bf16.mxu0 0
        %680 = vmatpush1.bf16.msra.mxu0 0
        %681 = vmatprep.mubr.bf16.mxu0 0
        %682 = vmatmul.mubr.bf16.gmra.mrb[0].mxu0 %v647
        %v683 = vpop.f32.mrb[0].mxu0
        %v684 = vadd.f32 %v632, %v683
        %v685 = vpop.f32.mrb[0].mxu0
        %v686 = vpop.f32.mrb[0].mxu0
        %v687 = vpop.f32.mrb[0].mxu0
        %688 = vdwg.mxu0
        %v689 = vld [vmem:[%s5] sm:$0xf]
        %v690 = vld [vmem:[%s5 + $0x4] sm:$0xf]
        %v691 = vld [vmem:[%s5 + $0x8] sm:$0xf]
        %v692 = vld [vmem:[%s5 + $0xc] sm:$0xf]
        %v694 = vlaneseq
        %v695 = vshrl.u32 %v694, 7
        %v696 = vsub.s32 0, %v695
        %v697 = vrot.slane %v589, %v696
        %v703 = vunpack.c.l.b16 %v689
        %v704 = vunpack.c.l.b16 %v690
        %v705 = vunpack.c.l.b16 %v691
        %v706 = vunpack.c.l.b16 %v692
        %v707 = vpack.c.b16 %v704, %v703
        %v708 = vpack.c.b16 %v706, %v705
        %711 = vmatprep.subr.bf16.mxu0 0
        %712 = vmatpush1.bf16.msra.mxu0 %v707
        %713 = vmatprep.subr.bf16.mxu0 0
        %714 = vmatpush1.bf16.msra.mxu0 %v708
        %715 = vmatprep.subr.bf16.mxu0 0
        %716 = vmatpush1.bf16.msra.mxu0 0
        %717 = vmatprep.subr.bf16.mxu0 0
        %718 = vmatpush1.bf16.msra.mxu0 0
        %719 = vmatprep.subr.bf16.mxu0 0
        %720 = vmatpush1.bf16.msra.mxu0 0
        %721 = vmatprep.subr.bf16.mxu0 0
        %722 = vmatpush1.bf16.msra.mxu0 0
        %723 = vmatprep.subr.bf16.mxu0 0
        %724 = vmatpush1.bf16.msra.mxu0 0
        %725 = vmatprep.subr.bf16.mxu0 0
        %726 = vmatpush1.bf16.msra.mxu0 0
        %727 = vmatprep.subr.bf16.mxu0 0
        %728 = vmatpush1.bf16.msra.mxu0 0
        %729 = vmatprep.subr.bf16.mxu0 0
        %730 = vmatpush1.bf16.msra.mxu0 0
        %731 = vmatprep.subr.bf16.mxu0 0
        %732 = vmatpush1.bf16.msra.mxu0 0
        %733 = vmatprep.subr.bf16.mxu0 0
        %734 = vmatpush1.bf16.msra.mxu0 0
        %735 = vmatprep.subr.bf16.mxu0 0
        %736 = vmatpush1.bf16.msra.mxu0 0
        %737 = vmatprep.subr.bf16.mxu0 0
        %738 = vmatpush1.bf16.msra.mxu0 0
        %739 = vmatprep.subr.bf16.mxu0 0
        %740 = vmatpush1.bf16.msra.mxu0 0
        %741 = vmatprep.subr.bf16.mxu0 0
        %742 = vmatpush1.bf16.msra.mxu0 0
        %743 = vmatprep.mubr.bf16.mxu0 0
        %744 = vmatmul.mubr.bf16.gmra.mrb[0].mxu0 %v647
        %v745 = vpop.f32.mrb[0].mxu0
        %v746 = vadd.f32 %v697, %v745
        %v747 = vpop.f32.mrb[0].mxu0
        %v748 = vpop.f32.mrb[0].mxu0
        %v749 = vpop.f32.mrb[0].mxu0
        %750 = vdwg.mxu0
        %v751 = vld [vmem:[%s7] sm:$0xf]
        %v752 = vld [vmem:[%s7 + $0x4] sm:$0xf]
        %v753 = vld [vmem:[%s7 + $0x8] sm:$0xf]
        %v754 = vld [vmem:[%s7 + $0xc] sm:$0xf]
        %v756 = vlaneseq
        %v757 = vshrl.u32 %v756, 7
        %v758 = vsub.s32 0, %v757
        %v759 = vrot.slane %v590, %v758
        %v765 = vunpack.c.l.b16 %v751
        %v766 = vunpack.c.l.b16 %v752
        %v767 = vunpack.c.l.b16 %v753
        %v768 = vunpack.c.l.b16 %v754
        %v769 = vpack.c.b16 %v766, %v765
        %v770 = vpack.c.b16 %v768, %v767
        %773 = vmatprep.subr.bf16.mxu0 0
        %774 = vmatpush1.bf16.msra.mxu0 %v769
        %775 = vmatprep.subr.bf16.mxu0 0
        %776 = vmatpush1.bf16.msra.mxu0 %v770
        %777 = vmatprep.subr.bf16.mxu0 0
        %778 = vmatpush1.bf16.msra.mxu0 0
        %779 = vmatprep.subr.bf16.mxu0 0
        %780 = vmatpush1.bf16.msra.mxu0 0
        %781 = vmatprep.subr.bf16.mxu0 0
        %782 = vmatpush1.bf16.msra.mxu0 0
        %783 = vmatprep.subr.bf16.mxu0 0
        %784 = vmatpush1.bf16.msra.mxu0 0
        %785 = vmatprep.subr.bf16.mxu0 0
        %786 = vmatpush1.bf16.msra.mxu0 0
        %787 = vmatprep.subr.bf16.mxu0 0
        %788 = vmatpush1.bf16.msra.mxu0 0
        %789 = vmatprep.subr.bf16.mxu0 0
        %790 = vmatpush1.bf16.msra.mxu0 0
        %791 = vmatprep.subr.bf16.mxu0 0
        %792 = vmatpush1.bf16.msra.mxu0 0
        %793 = vmatprep.subr.bf16.mxu0 0
        %794 = vmatpush1.bf16.msra.mxu0 0
        %795 = vmatprep.subr.bf16.mxu0 0
        %796 = vmatpush1.bf16.msra.mxu0 0
        %797 = vmatprep.subr.bf16.mxu0 0
        %798 = vmatpush1.bf16.msra.mxu0 0
        %799 = vmatprep.subr.bf16.mxu0 0
        %800 = vmatpush1.bf16.msra.mxu0 0
        %801 = vmatprep.subr.bf16.mxu0 0
        %802 = vmatpush1.bf16.msra.mxu0 0
        %803 = vmatprep.subr.bf16.mxu0 0
        %804 = vmatpush1.bf16.msra.mxu0 0
        %805 = vmatprep.mubr.bf16.mxu0 0
        %806 = vmatmul.mubr.bf16.gmra.mrb[0].mxu0 %v647
        %v807 = vpop.f32.mrb[0].mxu0
        %v808 = vadd.f32 %v759, %v807
        %v809 = vpop.f32.mrb[0].mxu0
        %v810 = vpop.f32.mrb[0].mxu0
        %v811 = vpop.f32.mrb[0].mxu0
        %812 = vdwg.mxu0
        %v813 = vmul.f32 %v684, 0.35355338
        %v814 = vpack.c.bf16 %v813, %v813
        %816 = vrot.lane.b32.xlu0 %v814, 120
        %v817 = vpop.permute.xlu0 %816
        %818 = vrot.lane.b32.xlu0 %v814, 112
        %v819 = vpop.permute.xlu0 %818
        %820 = vrot.lane.b32.xlu0 %v814, 104
        %v821 = vpop.permute.xlu0 %820
        %v823 = vunpack.c.l.s4 1983009808
        %v824 = vunpack.c.0.s8 %v823
        %v825 = vlaneseq
        %v826 = vshrl.u32 %v825, 7
        %v827 = vsub.s32 %v824, %v826
        %v828 = vrot.slane %v814, %v827
        %v831 = vunpack.c.l.s4 1983009808
        %v832 = vunpack.c.0.s8 %v831
        %v833 = vlaneseq
        %v834 = vshrl.u32 %v833, 7
        %v835 = vsub.s32 %v832, %v834
        %v836 = vrot.slane %v819, %v835
        %v837 = vcombine.low %v828, %v836
        %v838 = vcombine.high %v828, %v836
        %v840 = vunpack.c.l.s4 1934713408
        %v841 = vunpack.c.0.s8 %v840
        %v842 = vlaneseq
        %v843 = vshrl.u32 %v842, 7
        %v844 = vsub.s32 %v841, %v843
        %v845 = vrot.slane %v837, %v844
        %v847 = vunpack.c.l.s4 1934713408
        %v848 = vunpack.c.0.s8 %v847
        %v849 = vlaneseq
        %v850 = vshrl.u32 %v849, 7
        %v851 = vsub.s32 %v848, %v850
        %v852 = vrot.slane %v838, %v851
        %v853 = vcombine.high %v845, 0
        %v854 = vcombine.high %v852, 0
        %v857 = vunpack.c.l.s4 1983009808
        %v858 = vunpack.c.0.s8 %v857
        %v859 = vlaneseq
        %v860 = vshrl.u32 %v859, 7
        %v861 = vsub.s32 %v858, %v860
        %v862 = vrot.slane %v817, %v861
        %v865 = vunpack.c.l.s4 1983009808
        %v866 = vunpack.c.0.s8 %v865
        %v867 = vlaneseq
        %v868 = vshrl.u32 %v867, 7
        %v869 = vsub.s32 %v866, %v868
        %v870 = vrot.slane %v821, %v869
        %v871 = vcombine.low %v862, %v870
        %v872 = vcombine.high %v862, %v870
        %v874 = vunpack.c.l.s4 1934713408
        %v875 = vunpack.c.0.s8 %v874
        %v876 = vlaneseq
        %v877 = vshrl.u32 %v876, 7
        %v878 = vsub.s32 %v875, %v877
        %v879 = vrot.slane %v871, %v878
        %v881 = vunpack.c.l.s4 1934713408
        %v882 = vunpack.c.0.s8 %v881
        %v883 = vlaneseq
        %v884 = vshrl.u32 %v883, 7
        %v885 = vsub.s32 %v882, %v884
        %v886 = vrot.slane %v872, %v885
        %v887 = vcombine.high %v879, 0
        %v888 = vcombine.high %v886, 0
        %v891 = vpack.i.b16 %v879, %v845
        %v893 = vshrl.u32 %v845, 16
        %v894 = vshrl.u32 %v879, 16
        %v895 = vpack.i.b16 %v894, %v893
        %v899 = vpack.i.b16 %v887, %v853
        %v901 = vshrl.u32 %v853, 16
        %v902 = vshrl.u32 %v887, 16
        %v903 = vpack.i.b16 %v902, %v901
        %v907 = vpack.i.b16 %v886, %v852
        %v909 = vshrl.u32 %v852, 16
        %v910 = vshrl.u32 %v886, 16
        %v911 = vpack.i.b16 %v910, %v909
        %v915 = vpack.i.b16 %v888, %v854
        %v917 = vshrl.u32 %v854, 16
        %v918 = vshrl.u32 %v888, 16
        %v919 = vpack.i.b16 %v918, %v917
        %v921 = vcombine.low %v891, %v907
        %v923 = vunpack.c.l.s4 1983009808
        %v924 = vunpack.c.0.s8 %v923
        %v925 = vlaneseq
        %v926 = vshrl.u32 %v925, 7
        %v927 = vsub.s32 %v924, %v926
        %v928 = vrot.slane %v921, %v927
        %v929 = vcombine.low %v899, %v915
        %v931 = vunpack.c.l.s4 1983009808
        %v932 = vunpack.c.0.s8 %v931
        %v933 = vlaneseq
        %v934 = vshrl.u32 %v933, 7
        %v935 = vsub.s32 %v932, %v934
        %v936 = vrot.slane %v929, %v935
        %v937 = vcombine.low %v928, %v936
        %v939 = vunpack.c.l.s4 1934713408
        %v940 = vunpack.c.0.s8 %v939
        %v941 = vlaneseq
        %v942 = vshrl.u32 %v941, 7
        %v943 = vsub.s32 %v940, %v942
        %v944 = vrot.slane %v937, %v943
        %v945 = vcombine.high %v944, 0
        %v946 = vcombine.low %v895, %v911
        %v948 = vunpack.c.l.s4 1983009808
        %v949 = vunpack.c.0.s8 %v948
        %v950 = vlaneseq
        %v951 = vshrl.u32 %v950, 7
        %v952 = vsub.s32 %v949, %v951
        %v953 = vrot.slane %v946, %v952
        %v954 = vcombine.low %v903, %v919
        %v956 = vunpack.c.l.s4 1983009808
        %v957 = vunpack.c.0.s8 %v956
        %v958 = vlaneseq
        %v959 = vshrl.u32 %v958, 7
        %v960 = vsub.s32 %v957, %v959
        %v961 = vrot.slane %v954, %v960
        %v962 = vcombine.low %v953, %v961
        %v964 = vunpack.c.l.s4 1934713408
        %v965 = vunpack.c.0.s8 %v964
        %v966 = vlaneseq
        %v967 = vshrl.u32 %v966, 7
        %v968 = vsub.s32 %v965, %v967
        %v969 = vrot.slane %v962, %v968
        %v970 = vcombine.high %v969, 0
        %v973 = vpack.i.b16 %v969, %v944
        %v974 = vshrl.u32 %v944, 16
        %v975 = vshrl.u32 %v969, 16
        %v976 = vpack.i.b16 %v975, %v974
        %v979 = vpack.i.b16 %v970, %v945
        %v980 = vshrl.u32 %v945, 16
        %v981 = vshrl.u32 %v970, 16
        %v982 = vpack.i.b16 %v981, %v980
        %v983 = vpack.c.bf16 %v746, %v746
        %985 = vrot.lane.b32.xlu0 %v983, 120
        %v986 = vpop.permute.xlu0 %985
        %987 = vrot.lane.b32.xlu0 %v983, 112
        %v988 = vpop.permute.xlu0 %987
        %989 = vrot.lane.b32.xlu0 %v983, 104
        %v990 = vpop.permute.xlu0 %989
        %v992 = vunpack.c.l.s4 1983009808
        %v993 = vunpack.c.0.s8 %v992
        %v994 = vlaneseq
        %v995 = vshrl.u32 %v994, 7
        %v996 = vsub.s32 %v993, %v995
        %v997 = vrot.slane %v983, %v996
        %v1000 = vunpack.c.l.s4 1983009808
        %v1001 = vunpack.c.0.s8 %v1000
        %v1002 = vlaneseq
        %v1003 = vshrl.u32 %v1002, 7
        %v1004 = vsub.s32 %v1001, %v1003
        %v1005 = vrot.slane %v988, %v1004
        %v1006 = vcombine.low %v997, %v1005
        %v1007 = vcombine.high %v997, %v1005
        %v1009 = vunpack.c.l.s4 1934713408
        %v1010 = vunpack.c.0.s8 %v1009
        %v1011 = vlaneseq
        %v1012 = vshrl.u32 %v1011, 7
        %v1013 = vsub.s32 %v1010, %v1012
        %v1014 = vrot.slane %v1006, %v1013
        %v1016 = vunpack.c.l.s4 1934713408
        %v1017 = vunpack.c.0.s8 %v1016
        %v1018 = vlaneseq
        %v1019 = vshrl.u32 %v1018, 7
        %v1020 = vsub.s32 %v1017, %v1019
        %v1021 = vrot.slane %v1007, %v1020
        %v1022 = vcombine.high %v1014, 0
        %v1023 = vcombine.high %v1021, 0
        %v1026 = vunpack.c.l.s4 1983009808
        %v1027 = vunpack.c.0.s8 %v1026
        %v1028 = vlaneseq
        %v1029 = vshrl.u32 %v1028, 7
        %v1030 = vsub.s32 %v1027, %v1029
        %v1031 = vrot.slane %v986, %v1030
        %v1034 = vunpack.c.l.s4 1983009808
        %v1035 = vunpack.c.0.s8 %v1034
        %v1036 = vlaneseq
        %v1037 = vshrl.u32 %v1036, 7
        %v1038 = vsub.s32 %v1035, %v1037
        %v1039 = vrot.slane %v990, %v1038
        %v1040 = vcombine.low %v1031, %v1039
        %v1041 = vcombine.high %v1031, %v1039
        %v1043 = vunpack.c.l.s4 1934713408
        %v1044 = vunpack.c.0.s8 %v1043
        %v1045 = vlaneseq
        %v1046 = vshrl.u32 %v1045, 7
        %v1047 = vsub.s32 %v1044, %v1046
        %v1048 = vrot.slane %v1040, %v1047
        %v1050 = vunpack.c.l.s4 1934713408
        %v1051 = vunpack.c.0.s8 %v1050
        %v1052 = vlaneseq
        %v1053 = vshrl.u32 %v1052, 7
        %v1054 = vsub.s32 %v1051, %v1053
        %v1055 = vrot.slane %v1041, %v1054
        %v1056 = vcombine.high %v1048, 0
        %v1057 = vcombine.high %v1055, 0
        %v1060 = vpack.i.b16 %v1048, %v1014
        %v1062 = vshrl.u32 %v1014, 16
        %v1063 = vshrl.u32 %v1048, 16
        %v1064 = vpack.i.b16 %v1063, %v1062
        %v1068 = vpack.i.b16 %v1056, %v1022
        %v1070 = vshrl.u32 %v1022, 16
        %v1071 = vshrl.u32 %v1056, 16
        %v1072 = vpack.i.b16 %v1071, %v1070
        %v1076 = vpack.i.b16 %v1055, %v1021
        %v1078 = vshrl.u32 %v1021, 16
        %v1079 = vshrl.u32 %v1055, 16
        %v1080 = vpack.i.b16 %v1079, %v1078
        %v1084 = vpack.i.b16 %v1057, %v1023
        %v1086 = vshrl.u32 %v1023, 16
        %v1087 = vshrl.u32 %v1057, 16
        %v1088 = vpack.i.b16 %v1087, %v1086
        %v1090 = vcombine.low %v1060, %v1076
        %v1092 = vunpack.c.l.s4 1983009808
        %v1093 = vunpack.c.0.s8 %v1092
        %v1094 = vlaneseq
        %v1095 = vshrl.u32 %v1094, 7
        %v1096 = vsub.s32 %v1093, %v1095
        %v1097 = vrot.slane %v1090, %v1096
        %v1098 = vcombine.low %v1068, %v1084
        %v1100 = vunpack.c.l.s4 1983009808
        %v1101 = vunpack.c.0.s8 %v1100
        %v1102 = vlaneseq
        %v1103 = vshrl.u32 %v1102, 7
        %v1104 = vsub.s32 %v1101, %v1103
        %v1105 = vrot.slane %v1098, %v1104
        %v1106 = vcombine.low %v1097, %v1105
        %v1108 = vunpack.c.l.s4 1934713408
        %v1109 = vunpack.c.0.s8 %v1108
        %v1110 = vlaneseq
        %v1111 = vshrl.u32 %v1110, 7
        %v1112 = vsub.s32 %v1109, %v1111
        %v1113 = vrot.slane %v1106, %v1112
        %v1114 = vcombine.high %v1113, 0
        %v1115 = vcombine.low %v1064, %v1080
        %v1117 = vunpack.c.l.s4 1983009808
        %v1118 = vunpack.c.0.s8 %v1117
        %v1119 = vlaneseq
        %v1120 = vshrl.u32 %v1119, 7
        %v1121 = vsub.s32 %v1118, %v1120
        %v1122 = vrot.slane %v1115, %v1121
        %v1123 = vcombine.low %v1072, %v1088
        %v1125 = vunpack.c.l.s4 1983009808
        %v1126 = vunpack.c.0.s8 %v1125
        %v1127 = vlaneseq
        %v1128 = vshrl.u32 %v1127, 7
        %v1129 = vsub.s32 %v1126, %v1128
        %v1130 = vrot.slane %v1123, %v1129
        %v1131 = vcombine.low %v1122, %v1130
        %v1133 = vunpack.c.l.s4 1934713408
        %v1134 = vunpack.c.0.s8 %v1133
        %v1135 = vlaneseq
        %v1136 = vshrl.u32 %v1135, 7
        %v1137 = vsub.s32 %v1134, %v1136
        %v1138 = vrot.slane %v1131, %v1137
        %v1139 = vcombine.high %v1138, 0
        %v1142 = vpack.i.b16 %v1138, %v1113
        %v1143 = vshrl.u32 %v1113, 16
        %v1144 = vshrl.u32 %v1138, 16
        %v1145 = vpack.i.b16 %v1144, %v1143
        %v1148 = vpack.i.b16 %v1139, %v1114
        %v1149 = vshrl.u32 %v1114, 16
        %v1150 = vshrl.u32 %v1139, 16
        %v1151 = vpack.i.b16 %v1150, %v1149
        %v1152 = vpack.c.bf16 %v808, %v808
        %1154 = vrot.lane.b32.xlu0 %v1152, 120
        %v1155 = vpop.permute.xlu0 %1154
        %1156 = vrot.lane.b32.xlu0 %v1152, 112
        %v1157 = vpop.permute.xlu0 %1156
        %1158 = vrot.lane.b32.xlu0 %v1152, 104
        %v1159 = vpop.permute.xlu0 %1158
        %v1161 = vunpack.c.l.s4 1983009808
        %v1162 = vunpack.c.0.s8 %v1161
        %v1163 = vlaneseq
        %v1164 = vshrl.u32 %v1163, 7
        %v1165 = vsub.s32 %v1162, %v1164
        %v1166 = vrot.slane %v1152, %v1165
        %v1169 = vunpack.c.l.s4 1983009808
        %v1170 = vunpack.c.0.s8 %v1169
        %v1171 = vlaneseq
        %v1172 = vshrl.u32 %v1171, 7
        %v1173 = vsub.s32 %v1170, %v1172
        %v1174 = vrot.slane %v1157, %v1173
        %v1175 = vcombine.low %v1166, %v1174
        %v1176 = vcombine.high %v1166, %v1174
        %v1178 = vunpack.c.l.s4 1934713408
        %v1179 = vunpack.c.0.s8 %v1178
        %v1180 = vlaneseq
        %v1181 = vshrl.u32 %v1180, 7
        %v1182 = vsub.s32 %v1179, %v1181
        %v1183 = vrot.slane %v1175, %v1182
        %v1185 = vunpack.c.l.s4 1934713408
        %v1186 = vunpack.c.0.s8 %v1185
        %v1187 = vlaneseq
        %v1188 = vshrl.u32 %v1187, 7
        %v1189 = vsub.s32 %v1186, %v1188
        %v1190 = vrot.slane %v1176, %v1189
        %v1191 = vcombine.high %v1183, 0
        %v1192 = vcombine.high %v1190, 0
        %v1195 = vunpack.c.l.s4 1983009808
        %v1196 = vunpack.c.0.s8 %v1195
        %v1197 = vlaneseq
        %v1198 = vshrl.u32 %v1197, 7
        %v1199 = vsub.s32 %v1196, %v1198
        %v1200 = vrot.slane %v1155, %v1199
        %v1203 = vunpack.c.l.s4 1983009808
        %v1204 = vunpack.c.0.s8 %v1203
        %v1205 = vlaneseq
        %v1206 = vshrl.u32 %v1205, 7
        %v1207 = vsub.s32 %v1204, %v1206
        %v1208 = vrot.slane %v1159, %v1207
        %v1209 = vcombine.low %v1200, %v1208
        %v1210 = vcombine.high %v1200, %v1208
        %v1212 = vunpack.c.l.s4 1934713408
        %v1213 = vunpack.c.0.s8 %v1212
        %v1214 = vlaneseq
        %v1215 = vshrl.u32 %v1214, 7
        %v1216 = vsub.s32 %v1213, %v1215
        %v1217 = vrot.slane %v1209, %v1216
        %v1219 = vunpack.c.l.s4 1934713408
        %v1220 = vunpack.c.0.s8 %v1219
        %v1221 = vlaneseq
        %v1222 = vshrl.u32 %v1221, 7
        %v1223 = vsub.s32 %v1220, %v1222
        %v1224 = vrot.slane %v1210, %v1223
        %v1225 = vcombine.high %v1217, 0
        %v1226 = vcombine.high %v1224, 0
        %v1229 = vpack.i.b16 %v1217, %v1183
        %v1231 = vshrl.u32 %v1183, 16
        %v1232 = vshrl.u32 %v1217, 16
        %v1233 = vpack.i.b16 %v1232, %v1231
        %v1237 = vpack.i.b16 %v1225, %v1191
        %v1239 = vshrl.u32 %v1191, 16
        %v1240 = vshrl.u32 %v1225, 16
        %v1241 = vpack.i.b16 %v1240, %v1239
        %v1245 = vpack.i.b16 %v1224, %v1190
        %v1247 = vshrl.u32 %v1190, 16
        %v1248 = vshrl.u32 %v1224, 16
        %v1249 = vpack.i.b16 %v1248, %v1247
        %v1253 = vpack.i.b16 %v1226, %v1192
        %v1255 = vshrl.u32 %v1192, 16
        %v1256 = vshrl.u32 %v1226, 16
        %v1257 = vpack.i.b16 %v1256, %v1255
        %v1259 = vcombine.low %v1229, %v1245
        %v1261 = vunpack.c.l.s4 1983009808
        %v1262 = vunpack.c.0.s8 %v1261
        %v1263 = vlaneseq
        %v1264 = vshrl.u32 %v1263, 7
        %v1265 = vsub.s32 %v1262, %v1264
        %v1266 = vrot.slane %v1259, %v1265
        %v1267 = vcombine.low %v1237, %v1253
        %v1269 = vunpack.c.l.s4 1983009808
        %v1270 = vunpack.c.0.s8 %v1269
        %v1271 = vlaneseq
        %v1272 = vshrl.u32 %v1271, 7
        %v1273 = vsub.s32 %v1270, %v1272
        %v1274 = vrot.slane %v1267, %v1273
        %v1275 = vcombine.low %v1266, %v1274
        %v1277 = vunpack.c.l.s4 1934713408
        %v1278 = vunpack.c.0.s8 %v1277
        %v1279 = vlaneseq
        %v1280 = vshrl.u32 %v1279, 7
        %v1281 = vsub.s32 %v1278, %v1280
        %v1282 = vrot.slane %v1275, %v1281
        %v1283 = vcombine.high %v1282, 0
        %v1284 = vcombine.low %v1233, %v1249
        %v1286 = vunpack.c.l.s4 1983009808
        %v1287 = vunpack.c.0.s8 %v1286
        %v1288 = vlaneseq
        %v1289 = vshrl.u32 %v1288, 7
        %v1290 = vsub.s32 %v1287, %v1289
        %v1291 = vrot.slane %v1284, %v1290
        %v1292 = vcombine.low %v1241, %v1257
        %v1294 = vunpack.c.l.s4 1983009808
        %v1295 = vunpack.c.0.s8 %v1294
        %v1296 = vlaneseq
        %v1297 = vshrl.u32 %v1296, 7
        %v1298 = vsub.s32 %v1295, %v1297
        %v1299 = vrot.slane %v1292, %v1298
        %v1300 = vcombine.low %v1291, %v1299
        %v1302 = vunpack.c.l.s4 1934713408
        %v1303 = vunpack.c.0.s8 %v1302
        %v1304 = vlaneseq
        %v1305 = vshrl.u32 %v1304, 7
        %v1306 = vsub.s32 %v1303, %v1305
        %v1307 = vrot.slane %v1300, %v1306
        %v1308 = vcombine.high %v1307, 0
        %v1311 = vpack.i.b16 %v1307, %v1282
        %v1312 = vshrl.u32 %v1282, 16
        %v1313 = vshrl.u32 %v1307, 16
        %v1314 = vpack.i.b16 %v1313, %v1312
        %v1317 = vpack.i.b16 %v1308, %v1283
        %v1318 = vshrl.u32 %v1283, 16
        %v1319 = vshrl.u32 %v1308, 16
        %v1320 = vpack.i.b16 %v1319, %v1318
        %v1321 = vlaneseq
        %v1322 = vshrl.u32 %v1321, 7
        %v1323 = vlaneseq
        %v1324 = vand.u32 %v1323, 127
        %vm1325 = vcmp.ge.s32.totalorder %v1322, %v1324
        %vm1326 = vcmp.lt.s32.totalorder %v1324, 0
        %v1327 = vsub.s32 0, %v1324
        %v1328 = vsel %vm1326, %v1327, %v1324
        %v1329 = vmul.u32.u64.compose %v1328, 3435973837
        %v1330 = vextract.low.u32 %v1329
        %v1331 = vextract.high.u32 %v1329
        %v1332 = vshrl.u32 %v1331, 2
        %v1333 = vmul.u32 %v1332, 5
        %v1334 = vsub.s32 %v1328, %v1333
        %v1335 = vsub.s32 0, %v1334
        %v1336 = vsel %vm1326, %v1335, %v1334
        %vm1337 = vcmp.ne.s32.totalorder %v1336, 0
        %vm1338 = vcmp.lt.s32.totalorder %v1336, 0
        %vm1339 = vmand %vm1338, %vm1337
        %v1340 = vadd.s32 %v1336, 5
        %v1341 = vsel %vm1339, %v1340, %v1336
        %vm1342 = vcmp.ne.s32.totalorder %v1341, 4
        %vm1343 = vmand %vm1325, %vm1342
        %v1344 = vsel %vm1343, 0.0, -1e+30
        %vm1345 = vcmask 64512
        %v1347 = vsel %vm1345, %v973, 0
        %v1350 = vsel %vm1345, %v1142, 0
        %1352 = vmatprep.subr.bf16.mxu0 0
        %1353 = vmatpush1.bf16.xpose.msra.mxu0 %v1350
        %1354 = vmatprep.subr.bf16.mxu0 0
        %1355 = vmatpush1.bf16.xpose.msra.mxu0 0
        %1356 = vmatprep.subr.bf16.mxu0 0
        %1357 = vmatpush1.bf16.xpose.msra.mxu0 0
        %1358 = vmatprep.subr.bf16.mxu0 0
        %1359 = vmatpush1.bf16.xpose.msra.mxu0 0
        %1360 = vmatprep.subr.bf16.mxu0 0
        %1361 = vmatpush1.bf16.xpose.msra.mxu0 0
        %1362 = vmatprep.subr.bf16.mxu0 0
        %1363 = vmatpush1.bf16.xpose.msra.mxu0 0
        %1364 = vmatprep.subr.bf16.mxu0 0
        %1365 = vmatpush1.bf16.xpose.msra.mxu0 0
        %1366 = vmatprep.subr.bf16.mxu0 0
        %1367 = vmatpush1.bf16.xpose.msra.mxu0 0
        %1368 = vmatprep.subr.bf16.mxu0 0
        %1369 = vmatpush1.bf16.xpose.msra.mxu0 0
        %1370 = vmatprep.subr.bf16.mxu0 0
        %1371 = vmatpush1.bf16.xpose.msra.mxu0 0
        %1372 = vmatprep.subr.bf16.mxu0 0
        %1373 = vmatpush1.bf16.xpose.msra.mxu0 0
        %1374 = vmatprep.subr.bf16.mxu0 0
        %1375 = vmatpush1.bf16.xpose.msra.mxu0 0
        %1376 = vmatprep.subr.bf16.mxu0 0
        %1377 = vmatpush1.bf16.xpose.msra.mxu0 0
        %1378 = vmatprep.subr.bf16.mxu0 0
        %1379 = vmatpush1.bf16.xpose.msra.mxu0 0
        %1380 = vmatprep.subr.bf16.mxu0 0
        %1381 = vmatpush1.bf16.xpose.msra.mxu0 0
        %1382 = vmatprep.subr.bf16.mxu0 0
        %1383 = vmatpush1.bf16.xpose.msra.mxu0 0
        %1384 = vmatprep.mubr.bf16.mxu0 0
        %1385 = vmatmul.mubr.bf16.gmra.mrb[0].mxu0 %v1347
        %v1386 = vpop.f32.mrb[0].mxu0
        %v1387 = vadd.f32 %v1344, %v1386
        %v1388 = vpop.f32.mrb[0].mxu0
        %v1389 = vpop.f32.mrb[0].mxu0
        %v1390 = vpop.f32.mrb[0].mxu0
        %1391 = vdwg.mxu0
        %v1393 = vsel %vm1345, %v976, 0
        %v1396 = vsel %vm1345, %v1145, 0
        %1398 = vmatprep.subr.bf16.mxu0 0
        %1399 = vmatpush1.bf16.xpose.msra.mxu0 %v1396
        %1400 = vmatprep.subr.bf16.mxu0 0
        %1401 = vmatpush1.bf16.xpose.msra.mxu0 0
        %1402 = vmatprep.subr.bf16.mxu0 0
        %1403 = vmatpush1.bf16.xpose.msra.mxu0 0
        %1404 = vmatprep.subr.bf16.mxu0 0
        %1405 = vmatpush1.bf16.xpose.msra.mxu0 0
        %1406 = vmatprep.subr.bf16.mxu0 0
        %1407 = vmatpush1.bf16.xpose.msra.mxu0 0
        %1408 = vmatprep.subr.bf16.mxu0 0
        %1409 = vmatpush1.bf16.xpose.msra.mxu0 0
        %1410 = vmatprep.subr.bf16.mxu0 0
        %1411 = vmatpush1.bf16.xpose.msra.mxu0 0
        %1412 = vmatprep.subr.bf16.mxu0 0
        %1413 = vmatpush1.bf16.xpose.msra.mxu0 0
        %1414 = vmatprep.subr.bf16.mxu0 0
        %1415 = vmatpush1.bf16.xpose.msra.mxu0 0
        %1416 = vmatprep.subr.bf16.mxu0 0
        %1417 = vmatpush1.bf16.xpose.msra.mxu0 0
        %1418 = vmatprep.subr.bf16.mxu0 0
        %1419 = vmatpush1.bf16.xpose.msra.mxu0 0
        %1420 = vmatprep.subr.bf16.mxu0 0
        %1421 = vmatpush1.bf16.xpose.msra.mxu0 0
        %1422 = vmatprep.subr.bf16.mxu0 0
        %1423 = vmatpush1.bf16.xpose.msra.mxu0 0
        %1424 = vmatprep.subr.bf16.mxu0 0
        %1425 = vmatpush1.bf16.xpose.msra.mxu0 0
        %1426 = vmatprep.subr.bf16.mxu0 0
        %1427 = vmatpush1.bf16.xpose.msra.mxu0 0
        %1428 = vmatprep.subr.bf16.mxu0 0
        %1429 = vmatpush1.bf16.xpose.msra.mxu0 0
        %1430 = vmatprep.mubr.bf16.mxu0 0
        %1431 = vmatmul.mubr.bf16.gmra.mrb[0].mxu0 %v1393
        %v1432 = vpop.f32.mrb[0].mxu0
        %v1433 = vadd.f32 %v1344, %v1432
        %v1434 = vpop.f32.mrb[0].mxu0
        %v1435 = vpop.f32.mrb[0].mxu0
        %v1436 = vpop.f32.mrb[0].mxu0
        %1437 = vdwg.mxu0
        %v1439 = vsel %vm1345, %v979, 0
        %v1442 = vsel %vm1345, %v1148, 0
        %1444 = vmatprep.subr.bf16.mxu0 0
        %1445 = vmatpush1.bf16.xpose.msra.mxu0 %v1442
        %1446 = vmatprep.subr.bf16.mxu0 0
        %1447 = vmatpush1.bf16.xpose.msra.mxu0 0
        %1448 = vmatprep.subr.bf16.mxu0 0
        %1449 = vmatpush1.bf16.xpose.msra.mxu0 0
        %1450 = vmatprep.subr.bf16.mxu0 0
        %1451 = vmatpush1.bf16.xpose.msra.mxu0 0
        %1452 = vmatprep.subr.bf16.mxu0 0
        %1453 = vmatpush1.bf16.xpose.msra.mxu0 0
        %1454 = vmatprep.subr.bf16.mxu0 0
        %1455 = vmatpush1.bf16.xpose.msra.mxu0 0
        %1456 = vmatprep.subr.bf16.mxu0 0
        %1457 = vmatpush1.bf16.xpose.msra.mxu0 0
        %1458 = vmatprep.subr.bf16.mxu0 0
        %1459 = vmatpush1.bf16.xpose.msra.mxu0 0
        %1460 = vmatprep.subr.bf16.mxu0 0
        %1461 = vmatpush1.bf16.xpose.msra.mxu0 0
        %1462 = vmatprep.subr.bf16.mxu0 0
        %1463 = vmatpush1.bf16.xpose.msra.mxu0 0
        %1464 = vmatprep.subr.bf16.mxu0 0
        %1465 = vmatpush1.bf16.xpose.msra.mxu0 0
        %1466 = vmatprep.subr.bf16.mxu0 0
        %1467 = vmatpush1.bf16.xpose.msra.mxu0 0
        %1468 = vmatprep.subr.bf16.mxu0 0
        %1469 = vmatpush1.bf16.xpose.msra.mxu0 0
        %1470 = vmatprep.subr.bf16.mxu0 0
        %1471 = vmatpush1.bf16.xpose.msra.mxu0 0
        %1472 = vmatprep.subr.bf16.mxu0 0
        %1473 = vmatpush1.bf16.xpose.msra.mxu0 0
        %1474 = vmatprep.subr.bf16.mxu0 0
        %1475 = vmatpush1.bf16.xpose.msra.mxu0 0
        %1476 = vmatprep.mubr.bf16.mxu0 0
        %1477 = vmatmul.mubr.bf16.gmra.mrb[0].mxu0 %v1439
        %v1478 = vpop.f32.mrb[0].mxu0
        %v1479 = vadd.f32 %v1344, %v1478
        %v1480 = vpop.f32.mrb[0].mxu0
        %v1481 = vpop.f32.mrb[0].mxu0
        %v1482 = vpop.f32.mrb[0].mxu0
        %1483 = vdwg.mxu0
        %v1485 = vsel %vm1345, %v982, 0
        %v1488 = vsel %vm1345, %v1151, 0
        %1490 = vmatprep.subr.bf16.mxu0 0
        %1491 = vmatpush1.bf16.xpose.msra.mxu0 %v1488
        %1492 = vmatprep.subr.bf16.mxu0 0
        %1493 = vmatpush1.bf16.xpose.msra.mxu0 0
        %1494 = vmatprep.subr.bf16.mxu0 0
        %1495 = vmatpush1.bf16.xpose.msra.mxu0 0
        %1496 = vmatprep.subr.bf16.mxu0 0
        %1497 = vmatpush1.bf16.xpose.msra.mxu0 0
        %1498 = vmatprep.subr.bf16.mxu0 0
        %1499 = vmatpush1.bf16.xpose.msra.mxu0 0
        %1500 = vmatprep.subr.bf16.mxu0 0
        %1501 = vmatpush1.bf16.xpose.msra.mxu0 0
        %1502 = vmatprep.subr.bf16.mxu0 0
        %1503 = vmatpush1.bf16.xpose.msra.mxu0 0
        %1504 = vmatprep.subr.bf16.mxu0 0
        %1505 = vmatpush1.bf16.xpose.msra.mxu0 0
        %1506 = vmatprep.subr.bf16.mxu0 0
        %1507 = vmatpush1.bf16.xpose.msra.mxu0 0
        %1508 = vmatprep.subr.bf16.mxu0 0
        %1509 = vmatpush1.bf16.xpose.msra.mxu0 0
        %1510 = vmatprep.subr.bf16.mxu0 0
        %1511 = vmatpush1.bf16.xpose.msra.mxu0 0
        %1512 = vmatprep.subr.bf16.mxu0 0
        %1513 = vmatpush1.bf16.xpose.msra.mxu0 0
        %1514 = vmatprep.subr.bf16.mxu0 0
        %1515 = vmatpush1.bf16.xpose.msra.mxu0 0
        %1516 = vmatprep.subr.bf16.mxu0 0
        %1517 = vmatpush1.bf16.xpose.msra.mxu0 0
        %1518 = vmatprep.subr.bf16.mxu0 0
        %1519 = vmatpush1.bf16.xpose.msra.mxu0 0
        %1520 = vmatprep.subr.bf16.mxu0 0
        %1521 = vmatpush1.bf16.xpose.msra.mxu0 0
        %1522 = vmatprep.mubr.bf16.mxu0 0
        %1523 = vmatmul.mubr.bf16.gmra.mrb[0].mxu0 %v1485
        %v1524 = vpop.f32.mrb[0].mxu0
        %v1525 = vadd.f32 %v1344, %v1524
        %v1526 = vpop.f32.mrb[0].mxu0
        %v1527 = vpop.f32.mrb[0].mxu0
        %v1528 = vpop.f32.mrb[0].mxu0
        %1529 = vdwg.mxu0
        %v1530 = vsel %vm1345, %v1387, -inf
        %1531 = vmax.xlane.f32.xlu0 %v1530
        %v1532 = vpop.xlane.xlu0 %1531
        %v1533 = vsel %vm1345, %v1433, -inf
        %1534 = vmax.xlane.f32.xlu0 %v1533
        %v1535 = vpop.xlane.xlu0 %1534
        %v1536 = vsel %vm1345, %v1479, -inf
        %1537 = vmax.xlane.f32.xlu0 %v1536
        %v1538 = vpop.xlane.xlu0 %1537
        %v1539 = vsel %vm1345, %v1525, -inf
        %1540 = vmax.xlane.f32.xlu0 %v1539
        %v1541 = vpop.xlane.xlu0 %1540
        %v1542 = vsub.f32 %v1387, %v1532
        %v1543 = vsub.f32 %v1433, %v1535
        %v1544 = vsub.f32 %v1479, %v1538
        %v1545 = vsub.f32 %v1525, %v1541
        %v1546 = vmul.f32 %v1542, 1.442695
        %v1547 = vpow.pop %v1546
        %v1548 = vmul.f32 %v1543, 1.442695
        %v1549 = vpow.pop %v1548
        %v1550 = vmul.f32 %v1544, 1.442695
        %v1551 = vpow.pop %v1550
        %v1552 = vmul.f32 %v1545, 1.442695
        %v1553 = vpow.pop %v1552
        %v1554 = vsel %vm1345, %v1547, 0.0
        %1555 = vadd.xlane.f32.xlu0 %v1554
        %v1556 = vpop.xlane.xlu0 %1555
        %v1557 = vsel %vm1345, %v1549, 0.0
        %1558 = vadd.xlane.f32.xlu0 %v1557
        %v1559 = vpop.xlane.xlu0 %1558
        %v1560 = vsel %vm1345, %v1551, 0.0
        %1561 = vadd.xlane.f32.xlu0 %v1560
        %v1562 = vpop.xlane.xlu0 %1561
        %v1563 = vsel %vm1345, %v1553, 0.0
        %1564 = vadd.xlane.f32.xlu0 %v1563
        %v1565 = vpop.xlane.xlu0 %1564
        %v1566 = vrcp.pop %v1556
        %v1567 = vrcp.pop %v1559
        %v1568 = vrcp.pop %v1562
        %v1569 = vrcp.pop %v1565
        %v1570 = vmul.f32 %v1547, %v1566
        %v1571 = vmul.f32 %v1549, %v1567
        %v1572 = vmul.f32 %v1551, %v1568
        %v1573 = vmul.f32 %v1553, %v1569
        %v1574 = vpack.c.bf16 %v1570, %v1570
        %v1575 = vpack.c.bf16 %v1571, %v1571
        %v1576 = vpack.c.bf16 %v1572, %v1572
        %v1577 = vpack.c.bf16 %v1573, %v1573
        %v1579 = vsel %vm1345, %v1574, 0
        %vm1581 = vcmask 1043456
        %v1583 = vsel %vm1581, %v1311, 0
        %1585 = vmatprep.subr.bf16.mxu0 0
        %1586 = vmatpush1.bf16.msra.mxu0 %v1583
        %1587 = vmatprep.subr.bf16.mxu0 0
        %1588 = vmatpush1.bf16.msra.mxu0 0
        %1589 = vmatprep.subr.bf16.mxu0 0
        %1590 = vmatpush1.bf16.msra.mxu0 0
        %1591 = vmatprep.subr.bf16.mxu0 0
        %1592 = vmatpush1.bf16.msra.mxu0 0
        %1593 = vmatprep.subr.bf16.mxu0 0
        %1594 = vmatpush1.bf16.msra.mxu0 0
        %1595 = vmatprep.subr.bf16.mxu0 0
        %1596 = vmatpush1.bf16.msra.mxu0 0
        %1597 = vmatprep.subr.bf16.mxu0 0
        %1598 = vmatpush1.bf16.msra.mxu0 0
        %1599 = vmatprep.subr.bf16.mxu0 0
        %1600 = vmatpush1.bf16.msra.mxu0 0
        %1601 = vmatprep.subr.bf16.mxu0 0
        %1602 = vmatpush1.bf16.msra.mxu0 0
        %1603 = vmatprep.subr.bf16.mxu0 0
        %1604 = vmatpush1.bf16.msra.mxu0 0
        %1605 = vmatprep.subr.bf16.mxu0 0
        %1606 = vmatpush1.bf16.msra.mxu0 0
        %1607 = vmatprep.subr.bf16.mxu0 0
        %1608 = vmatpush1.bf16.msra.mxu0 0
        %1609 = vmatprep.subr.bf16.mxu0 0
        %1610 = vmatpush1.bf16.msra.mxu0 0
        %1611 = vmatprep.subr.bf16.mxu0 0
        %1612 = vmatpush1.bf16.msra.mxu0 0
        %1613 = vmatprep.subr.bf16.mxu0 0
        %1614 = vmatpush1.bf16.msra.mxu0 0
        %1615 = vmatprep.subr.bf16.mxu0 0
        %1616 = vmatpush1.bf16.msra.mxu0 0
        %1617 = vmatprep.mubr.bf16.mxu0 0
        %1618 = vmatmul.mubr.bf16.gmra.mrb[0].mxu0 %v1579
        %v1619 = vpop.f32.mrb[0].mxu0
        %v1620 = vadd.f32 0.0, %v1619
        %v1621 = vpop.f32.mrb[0].mxu0
        %v1622 = vpop.f32.mrb[0].mxu0
        %v1623 = vpop.f32.mrb[0].mxu0
        %1624 = vdwg.mxu0
        %v1626 = vsel %vm1345, %v1575, 0
        %v1629 = vsel %vm1581, %v1314, 0
        %1631 = vmatprep.subr.bf16.mxu0 0
        %1632 = vmatpush1.bf16.msra.mxu0 %v1629
        %1633 = vmatprep.subr.bf16.mxu0 0
        %1634 = vmatpush1.bf16.msra.mxu0 0
        %1635 = vmatprep.subr.bf16.mxu0 0
        %1636 = vmatpush1.bf16.msra.mxu0 0
        %1637 = vmatprep.subr.bf16.mxu0 0
        %1638 = vmatpush1.bf16.msra.mxu0 0
        %1639 = vmatprep.subr.bf16.mxu0 0
        %1640 = vmatpush1.bf16.msra.mxu0 0
        %1641 = vmatprep.subr.bf16.mxu0 0
        %1642 = vmatpush1.bf16.msra.mxu0 0
        %1643 = vmatprep.subr.bf16.mxu0 0
        %1644 = vmatpush1.bf16.msra.mxu0 0
        %1645 = vmatprep.subr.bf16.mxu0 0
        %1646 = vmatpush1.bf16.msra.mxu0 0
        %1647 = vmatprep.subr.bf16.mxu0 0
        %1648 = vmatpush1.bf16.msra.mxu0 0
        %1649 = vmatprep.subr.bf16.mxu0 0
        %1650 = vmatpush1.bf16.msra.mxu0 0
        %1651 = vmatprep.subr.bf16.mxu0 0
        %1652 = vmatpush1.bf16.msra.mxu0 0
        %1653 = vmatprep.subr.bf16.mxu0 0
        %1654 = vmatpush1.bf16.msra.mxu0 0
        %1655 = vmatprep.subr.bf16.mxu0 0
        %1656 = vmatpush1.bf16.msra.mxu0 0
        %1657 = vmatprep.subr.bf16.mxu0 0
        %1658 = vmatpush1.bf16.msra.mxu0 0
        %1659 = vmatprep.subr.bf16.mxu0 0
        %1660 = vmatpush1.bf16.msra.mxu0 0
        %1661 = vmatprep.subr.bf16.mxu0 0
        %1662 = vmatpush1.bf16.msra.mxu0 0
        %1663 = vmatprep.mubr.bf16.mxu0 0
        %1664 = vmatmul.mubr.bf16.gmra.mrb[0].mxu0 %v1626
        %v1665 = vpop.f32.mrb[0].mxu0
        %v1666 = vadd.f32 0.0, %v1665
        %v1667 = vpop.f32.mrb[0].mxu0
        %v1668 = vpop.f32.mrb[0].mxu0
        %v1669 = vpop.f32.mrb[0].mxu0
        %1670 = vdwg.mxu0
        %v1672 = vsel %vm1345, %v1576, 0
        %v1675 = vsel %vm1581, %v1317, 0
        %1677 = vmatprep.subr.bf16.mxu0 0
        %1678 = vmatpush1.bf16.msra.mxu0 %v1675
        %1679 = vmatprep.subr.bf16.mxu0 0
        %1680 = vmatpush1.bf16.msra.mxu0 0
        %1681 = vmatprep.subr.bf16.mxu0 0
        %1682 = vmatpush1.bf16.msra.mxu0 0
        %1683 = vmatprep.subr.bf16.mxu0 0
        %1684 = vmatpush1.bf16.msra.mxu0 0
        %1685 = vmatprep.subr.bf16.mxu0 0
        %1686 = vmatpush1.bf16.msra.mxu0 0
        %1687 = vmatprep.subr.bf16.mxu0 0
        %1688 = vmatpush1.bf16.msra.mxu0 0
        %1689 = vmatprep.subr.bf16.mxu0 0
        %1690 = vmatpush1.bf16.msra.mxu0 0
        %1691 = vmatprep.subr.bf16.mxu0 0
        %1692 = vmatpush1.bf16.msra.mxu0 0
        %1693 = vmatprep.subr.bf16.mxu0 0
        %1694 = vmatpush1.bf16.msra.mxu0 0
        %1695 = vmatprep.subr.bf16.mxu0 0
        %1696 = vmatpush1.bf16.msra.mxu0 0
        %1697 = vmatprep.subr.bf16.mxu0 0
        %1698 = vmatpush1.bf16.msra.mxu0 0
        %1699 = vmatprep.subr.bf16.mxu0 0
        %1700 = vmatpush1.bf16.msra.mxu0 0
        %1701 = vmatprep.subr.bf16.mxu0 0
        %1702 = vmatpush1.bf16.msra.mxu0 0
        %1703 = vmatprep.subr.bf16.mxu0 0
        %1704 = vmatpush1.bf16.msra.mxu0 0
        %1705 = vmatprep.subr.bf16.mxu0 0
        %1706 = vmatpush1.bf16.msra.mxu0 0
        %1707 = vmatprep.subr.bf16.mxu0 0
        %1708 = vmatpush1.bf16.msra.mxu0 0
        %1709 = vmatprep.mubr.bf16.mxu0 0
        %1710 = vmatmul.mubr.bf16.gmra.mrb[0].mxu0 %v1672
        %v1711 = vpop.f32.mrb[0].mxu0
        %v1712 = vadd.f32 0.0, %v1711
        %v1713 = vpop.f32.mrb[0].mxu0
        %v1714 = vpop.f32.mrb[0].mxu0
        %v1715 = vpop.f32.mrb[0].mxu0
        %1716 = vdwg.mxu0
        %v1718 = vsel %vm1345, %v1577, 0
        %v1721 = vsel %vm1581, %v1320, 0
        %1723 = vmatprep.subr.bf16.mxu0 0
        %1724 = vmatpush1.bf16.msra.mxu0 %v1721
        %1725 = vmatprep.subr.bf16.mxu0 0
        %1726 = vmatpush1.bf16.msra.mxu0 0
        %1727 = vmatprep.subr.bf16.mxu0 0
        %1728 = vmatpush1.bf16.msra.mxu0 0
        %1729 = vmatprep.subr.bf16.mxu0 0
        %1730 = vmatpush1.bf16.msra.mxu0 0
        %1731 = vmatprep.subr.bf16.mxu0 0
        %1732 = vmatpush1.bf16.msra.mxu0 0
        %1733 = vmatprep.subr.bf16.mxu0 0
        %1734 = vmatpush1.bf16.msra.mxu0 0
        %1735 = vmatprep.subr.bf16.mxu0 0
        %1736 = vmatpush1.bf16.msra.mxu0 0
        %1737 = vmatprep.subr.bf16.mxu0 0
        %1738 = vmatpush1.bf16.msra.mxu0 0
        %1739 = vmatprep.subr.bf16.mxu0 0
        %1740 = vmatpush1.bf16.msra.mxu0 0
        %1741 = vmatprep.subr.bf16.mxu0 0
        %1742 = vmatpush1.bf16.msra.mxu0 0
        %1743 = vmatprep.subr.bf16.mxu0 0
        %1744 = vmatpush1.bf16.msra.mxu0 0
        %1745 = vmatprep.subr.bf16.mxu0 0
        %1746 = vmatpush1.bf16.msra.mxu0 0
        %1747 = vmatprep.subr.bf16.mxu0 0
        %1748 = vmatpush1.bf16.msra.mxu0 0
        %1749 = vmatprep.subr.bf16.mxu0 0
        %1750 = vmatpush1.bf16.msra.mxu0 0
        %1751 = vmatprep.subr.bf16.mxu0 0
        %1752 = vmatpush1.bf16.msra.mxu0 0
        %1753 = vmatprep.subr.bf16.mxu0 0
        %1754 = vmatpush1.bf16.msra.mxu0 0
        %1755 = vmatprep.mubr.bf16.mxu0 0
        %1756 = vmatmul.mubr.bf16.gmra.mrb[0].mxu0 %v1718
        %v1757 = vpop.f32.mrb[0].mxu0
        %v1758 = vadd.f32 0.0, %v1757
        %v1759 = vpop.f32.mrb[0].mxu0
        %v1760 = vpop.f32.mrb[0].mxu0
        %v1761 = vpop.f32.mrb[0].mxu0
        %1762 = vdwg.mxu0
        %v1763 = vcombine.low %v1620, %v1712
        %v1764 = vcombine.high %v1620, %v1712
        %v1766 = vunpack.c.l.s4 1983009808
        %v1767 = vunpack.c.0.s8 %v1766
        %v1768 = vlaneseq
        %v1769 = vshrl.u32 %v1768, 7
        %v1770 = vsub.s32 %v1767, %v1769
        %v1771 = vrot.slane %v1763, %v1770
        %v1773 = vunpack.c.l.s4 1983009808
        %v1774 = vunpack.c.0.s8 %v1773
        %v1775 = vlaneseq
        %v1776 = vshrl.u32 %v1775, 7
        %v1777 = vsub.s32 %v1774, %v1776
        %v1778 = vrot.slane %v1764, %v1777
        %v1779 = vcombine.low %v1666, %v1758
        %v1780 = vcombine.high %v1666, %v1758
        %v1782 = vunpack.c.l.s4 1983009808
        %v1783 = vunpack.c.0.s8 %v1782
        %v1784 = vlaneseq
        %v1785 = vshrl.u32 %v1784, 7
        %v1786 = vsub.s32 %v1783, %v1785
        %v1787 = vrot.slane %v1779, %v1786
        %v1789 = vunpack.c.l.s4 1983009808
        %v1790 = vunpack.c.0.s8 %v1789
        %v1791 = vlaneseq
        %v1792 = vshrl.u32 %v1791, 7
        %v1793 = vsub.s32 %v1790, %v1792
        %v1794 = vrot.slane %v1780, %v1793
        %v1795 = vcombine.low %v1771, %v1787
        %v1796 = vcombine.high %v1771, %v1787
        %v1798 = vunpack.c.l.s4 1934713408
        %v1799 = vunpack.c.0.s8 %v1798
        %v1800 = vlaneseq
        %v1801 = vshrl.u32 %v1800, 7
        %v1802 = vsub.s32 %v1799, %v1801
        %v1803 = vrot.slane %v1795, %v1802
        %v1805 = vunpack.c.l.s4 1934713408
        %v1806 = vunpack.c.0.s8 %v1805
        %v1807 = vlaneseq
        %v1808 = vshrl.u32 %v1807, 7
        %v1809 = vsub.s32 %v1806, %v1808
        %v1810 = vrot.slane %v1796, %v1809
        %v1811 = vcombine.low %v1778, %v1794
        %v1812 = vcombine.high %v1778, %v1794
        %v1814 = vunpack.c.l.s4 1934713408
        %v1815 = vunpack.c.0.s8 %v1814
        %v1816 = vlaneseq
        %v1817 = vshrl.u32 %v1816, 7
        %v1818 = vsub.s32 %v1815, %v1817
        %v1819 = vrot.slane %v1811, %v1818
        %v1821 = vunpack.c.l.s4 1934713408
        %v1822 = vunpack.c.0.s8 %v1821
        %v1823 = vlaneseq
        %v1824 = vshrl.u32 %v1823, 7
        %v1825 = vsub.s32 %v1822, %v1824
        %v1826 = vrot.slane %v1812, %v1825
        %v1827 = vcombine.high %v1803, 0.0
        %v1828 = vcombine.high %v1810, 0.0
        %v1829 = vcombine.high %v1819, 0.0
        %v1830 = vcombine.high %v1826, 0.0
        %v1831 = vcombine.low %v1803, %v1810
        %v1833 = vunpack.c.l.s4 1983009808
        %v1834 = vunpack.c.0.s8 %v1833
        %v1835 = vlaneseq
        %v1836 = vshrl.u32 %v1835, 7
        %v1837 = vsub.s32 %v1834, %v1836
        %v1838 = vrot.slane %v1831, %v1837
        %v1839 = vcombine.low %v1827, %v1828
        %v1841 = vunpack.c.l.s4 1983009808
        %v1842 = vunpack.c.0.s8 %v1841
        %v1843 = vlaneseq
        %v1844 = vshrl.u32 %v1843, 7
        %v1845 = vsub.s32 %v1842, %v1844
        %v1846 = vrot.slane %v1839, %v1845
        %v1847 = vcombine.low %v1819, %v1826
        %v1849 = vunpack.c.l.s4 1983009808
        %v1850 = vunpack.c.0.s8 %v1849
        %v1851 = vlaneseq
        %v1852 = vshrl.u32 %v1851, 7
        %v1853 = vsub.s32 %v1850, %v1852
        %v1854 = vrot.slane %v1847, %v1853
        %v1855 = vcombine.low %v1829, %v1830
        %v1857 = vunpack.c.l.s4 1983009808
        %v1858 = vunpack.c.0.s8 %v1857
        %v1859 = vlaneseq
        %v1860 = vshrl.u32 %v1859, 7
        %v1861 = vsub.s32 %v1858, %v1860
        %v1862 = vrot.slane %v1855, %v1861
        %v1863 = vcombine.low %v1838, %v1846
        %v1864 = vcombine.high %v1838, %v1846
        %v1866 = vunpack.c.l.s4 1934713408
        %v1867 = vunpack.c.0.s8 %v1866
        %v1868 = vlaneseq
        %v1869 = vshrl.u32 %v1868, 7
        %v1870 = vsub.s32 %v1867, %v1869
        %v1871 = vrot.slane %v1863, %v1870
        %v1873 = vunpack.c.l.s4 1934713408
        %v1874 = vunpack.c.0.s8 %v1873
        %v1875 = vlaneseq
        %v1876 = vshrl.u32 %v1875, 7
        %v1877 = vsub.s32 %v1874, %v1876
        %v1878 = vrot.slane %v1864, %v1877
        %v1879 = vcombine.low %v1854, %v1862
        %v1880 = vcombine.high %v1854, %v1862
        %v1882 = vunpack.c.l.s4 1934713408
        %v1883 = vunpack.c.0.s8 %v1882
        %v1884 = vlaneseq
        %v1885 = vshrl.u32 %v1884, 7
        %v1886 = vsub.s32 %v1883, %v1885
        %v1887 = vrot.slane %v1879, %v1886
        %v1889 = vunpack.c.l.s4 1934713408
        %v1890 = vunpack.c.0.s8 %v1889
        %v1891 = vlaneseq
        %v1892 = vshrl.u32 %v1891, 7
        %v1893 = vsub.s32 %v1890, %v1892
        %v1894 = vrot.slane %v1880, %v1893
        %v1895 = vcombine.low %v1871, %v1887
        %v1896 = vcombine.high %v1871, %v1887
        %v1897 = vcombine.low %v1878, %v1894
        %v1898 = vcombine.high %v1878, %v1894
        %1900 = vrot.lane.b32.xlu0 %v1896, 8
        %v1901 = vpop.permute.xlu0 %1900
        %1904 = vrot.lane.b32.xlu0 %v1897, 16
        %v1905 = vpop.permute.xlu0 %1904
        %1908 = vrot.lane.b32.xlu0 %v1898, 24
        %v1909 = vpop.permute.xlu0 %1908
        %v1911 = vsel %vm1345, %v1895, %v1901
        %vm1912 = vcmask 130048
        %v1913 = vsel %vm1912, %v1911, %v1905
        %vm1914 = vcmask 195584
        %v1915 = vsel %vm1914, %v1913, %v1909
        %v1916 = vpack.c.bf16 %v1915, %v1915
        %v1917 = vld [vmem:[%s9] sm:$0xf]
        %v1918 = vld [vmem:[%s9 + $0x4] sm:$0xf]
        %v1919 = vld [vmem:[%s9 + $0x8] sm:$0xf]
        %v1920 = vld [vmem:[%s9 + $0xc] sm:$0xf]
        %v1922 = vlaneseq
        %v1923 = vshrl.u32 %v1922, 7
        %v1924 = vsub.s32 0, %v1923
        %v1925 = vrot.slane %v591, %v1924
        %v1931 = vunpack.c.l.b16 %v1917
        %v1932 = vunpack.c.l.b16 %v1918
        %v1933 = vunpack.c.l.b16 %v1919
        %v1934 = vunpack.c.l.b16 %v1920
        %v1935 = vpack.c.b16 %v1932, %v1931
        %v1936 = vpack.c.b16 %v1934, %v1933
        %v1940 = vsel %vm594, %v1916, 0
        %1942 = vmatprep.subr.bf16.mxu0 0
        %1943 = vmatpush1.bf16.msra.mxu0 %v1935
        %1944 = vmatprep.subr.bf16.mxu0 0
        %1945 = vmatpush1.bf16.msra.mxu0 %v1936
        %1946 = vmatprep.subr.bf16.mxu0 0
        %1947 = vmatpush1.bf16.msra.mxu0 0
        %1948 = vmatprep.subr.bf16.mxu0 0
        %1949 = vmatpush1.bf16.msra.mxu0 0
        %1950 = vmatprep.subr.bf16.mxu0 0
        %1951 = vmatpush1.bf16.msra.mxu0 0
        %1952 = vmatprep.subr.bf16.mxu0 0
        %1953 = vmatpush1.bf16.msra.mxu0 0
        %1954 = vmatprep.subr.bf16.mxu0 0
        %1955 = vmatpush1.bf16.msra.mxu0 0
        %1956 = vmatprep.subr.bf16.mxu0 0
        %1957 = vmatpush1.bf16.msra.mxu0 0
        %1958 = vmatprep.subr.bf16.mxu0 0
        %1959 = vmatpush1.bf16.msra.mxu0 0
        %1960 = vmatprep.subr.bf16.mxu0 0
        %1961 = vmatpush1.bf16.msra.mxu0 0
        %1962 = vmatprep.subr.bf16.mxu0 0
        %1963 = vmatpush1.bf16.msra.mxu0 0
        %1964 = vmatprep.subr.bf16.mxu0 0
        %1965 = vmatpush1.bf16.msra.mxu0 0
        %1966 = vmatprep.subr.bf16.mxu0 0
        %1967 = vmatpush1.bf16.msra.mxu0 0
        %1968 = vmatprep.subr.bf16.mxu0 0
        %1969 = vmatpush1.bf16.msra.mxu0 0
        %1970 = vmatprep.subr.bf16.mxu0 0
        %1971 = vmatpush1.bf16.msra.mxu0 0
        %1972 = vmatprep.subr.bf16.mxu0 0
        %1973 = vmatpush1.bf16.msra.mxu0 0
        %1974 = vmatprep.mubr.bf16.mxu0 0
        %1975 = vmatmul.mubr.bf16.gmra.mrb[0].mxu0 %v1940
        %v1976 = vpop.f32.mrb[0].mxu0
        %v1977 = vadd.f32 %v1925, %v1976
        %v1978 = vpop.f32.mrb[0].mxu0
        %v1979 = vpop.f32.mrb[0].mxu0
        %v1980 = vpop.f32.mrb[0].mxu0
        %1981 = vdwg.mxu0
        %v1982 = vadd.f32 %v583, %v1977
        %v1983 = vsel %vm594, %v1982, 0.0
        %1984 = vadd.xlane.f32.xlu0 %v1983
        %v1985 = vpop.xlane.xlu0 %1984
        %v1986 = vmul.f32 %v1985, %v598
        %v1987 = vsub.f32 %v1982, %v1986
        %v1988 = vmul.f32 %v1987, %v1987
        %v1989 = vsel %vm594, %v1988, 0.0
        %1990 = vadd.xlane.f32.xlu0 %v1989
        %v1991 = vpop.xlane.xlu0 %1990
        %v1992 = vmul.f32 %v1991, %v598
        %v1993 = vadd.f32 %v1992, 1e-05
        %v1994 = vrsqrt.pop %v1993
        %v1995 = vmul.f32 %v1987, %v1994
        %v1997 = vlaneseq
        %v1998 = vshrl.u32 %v1997, 7
        %v1999 = vsub.s32 0, %v1998
        %v2000 = vrot.slane %v586, %v1999
        %v2002 = vmul.f32 %v1995, %v2000
        %v2004 = vlaneseq
        %v2005 = vshrl.u32 %v2004, 7
        %v2006 = vsub.s32 0, %v2005
        %v2007 = vrot.slane %v587, %v2006
        %v2009 = vadd.f32 %v2002, %v2007
        %v2010 = vpack.c.bf16 %v2009, %v2009
        %v2011 = vld [vmem:[%s13] sm:$0xf]
        %v2012 = vld [vmem:[%s13 + $0x4] sm:$0xf]
        %v2013 = vld [vmem:[%s13 + $0x8] sm:$0xf]
        %v2014 = vld [vmem:[%s13 + $0xc] sm:$0xf]
        %v2016 = vlaneseq
        %v2017 = vshrl.u32 %v2016, 7
        %v2018 = vsub.s32 0, %v2017
        %v2019 = vrot.slane %v592, %v2018
        %v2025 = vunpack.c.l.b16 %v2011
        %v2026 = vunpack.c.l.b16 %v2012
        %v2027 = vunpack.c.l.b16 %v2013
        %v2028 = vunpack.c.l.b16 %v2014
        %v2029 = vpack.c.b16 %v2026, %v2025
        %v2030 = vpack.c.b16 %v2028, %v2027
        %v2034 = vsel %vm594, %v2010, 0
        %2036 = vmatprep.subr.bf16.mxu0 0
        %2037 = vmatpush1.bf16.msra.mxu0 %v2029
        %2038 = vmatprep.subr.bf16.mxu0 0
        %2039 = vmatpush1.bf16.msra.mxu0 %v2030
        %2040 = vmatprep.subr.bf16.mxu0 0
        %2041 = vmatpush1.bf16.msra.mxu0 0
        %2042 = vmatprep.subr.bf16.mxu0 0
        %2043 = vmatpush1.bf16.msra.mxu0 0
        %2044 = vmatprep.subr.bf16.mxu0 0
        %2045 = vmatpush1.bf16.msra.mxu0 0
        %2046 = vmatprep.subr.bf16.mxu0 0
        %2047 = vmatpush1.bf16.msra.mxu0 0
        %2048 = vmatprep.subr.bf16.mxu0 0
        %2049 = vmatpush1.bf16.msra.mxu0 0
        %2050 = vmatprep.subr.bf16.mxu0 0
        %2051 = vmatpush1.bf16.msra.mxu0 0
        %2052 = vmatprep.subr.bf16.mxu0 0
        %2053 = vmatpush1.bf16.msra.mxu0 0
        %2054 = vmatprep.subr.bf16.mxu0 0
        %2055 = vmatpush1.bf16.msra.mxu0 0
        %2056 = vmatprep.subr.bf16.mxu0 0
        %2057 = vmatpush1.bf16.msra.mxu0 0
        %2058 = vmatprep.subr.bf16.mxu0 0
        %2059 = vmatpush1.bf16.msra.mxu0 0
        %2060 = vmatprep.subr.bf16.mxu0 0
        %2061 = vmatpush1.bf16.msra.mxu0 0
        %2062 = vmatprep.subr.bf16.mxu0 0
        %2063 = vmatpush1.bf16.msra.mxu0 0
        %2064 = vmatprep.subr.bf16.mxu0 0
        %2065 = vmatpush1.bf16.msra.mxu0 0
        %2066 = vmatprep.subr.bf16.mxu0 0
        %2067 = vmatpush1.bf16.msra.mxu0 0
        %2068 = vmatprep.mubr.bf16.mxu0 0
        %2069 = vmatmul.mubr.bf16.gmra.mrb[0].mxu0 %v2034
        %v2070 = vpop.f32.mrb[0].mxu0
        %v2071 = vadd.f32 %v2019, %v2070
        %v2072 = vpop.f32.mrb[0].mxu0
        %v2073 = vpop.f32.mrb[0].mxu0
        %v2074 = vpop.f32.mrb[0].mxu0
        %2075 = vdwg.mxu0
        %v2076 = vmul.f32 %v2071, 0.5
        %v2077 = vmul.f32 %v2071, 0.70710677
        %v2078 = verf.f32.pop %v2077
        %v2079 = vadd.f32 %v2078, 1.0
        %v2080 = vmul.f32 %v2076, %v2079
        %v2081 = vpack.c.bf16 %v2080, %v2080
        %v2082 = vld [vmem:[%s15] sm:$0xf]
        %v2083 = vld [vmem:[%s15 + $0x4] sm:$0xf]
        %v2084 = vld [vmem:[%s15 + $0x8] sm:$0xf]
        %v2085 = vld [vmem:[%s15 + $0xc] sm:$0xf]
        %v2086 = vld [vmem:[%s15 + $0x10] sm:$0xf]
        %v2087 = vld [vmem:[%s15 + $0x14] sm:$0xf]
        %v2088 = vld [vmem:[%s15 + $0x18] sm:$0xf]
        %v2089 = vld [vmem:[%s15 + $0x1c] sm:$0xf]
        %v2090 = vld [vmem:[%s15 + $0x20] sm:$0xf]
        %v2091 = vld [vmem:[%s15 + $0x24] sm:$0xf]
        %v2092 = vld [vmem:[%s15 + $0x28] sm:$0xf]
        %v2093 = vld [vmem:[%s15 + $0x2c] sm:$0xf]
        %v2094 = vld [vmem:[%s15 + $0x30] sm:$0xf]
        %v2095 = vld [vmem:[%s15 + $0x34] sm:$0xf]
        %v2096 = vld [vmem:[%s15 + $0x38] sm:$0xf]
        %v2097 = vld [vmem:[%s15 + $0x3c] sm:$0xf]
        %v2099 = vlaneseq
        %v2100 = vshrl.u32 %v2099, 7
        %v2101 = vsub.s32 0, %v2100
        %v2102 = vrot.slane %v593, %v2101
        %v2120 = vunpack.c.l.b16 %v2082
        %v2121 = vunpack.c.l.b16 %v2083
        %v2122 = vunpack.c.l.b16 %v2084
        %v2123 = vunpack.c.l.b16 %v2085
        %v2124 = vunpack.c.l.b16 %v2086
        %v2125 = vunpack.c.l.b16 %v2087
        %v2126 = vunpack.c.l.b16 %v2088
        %v2127 = vunpack.c.l.b16 %v2089
        %v2128 = vunpack.c.l.b16 %v2090
        %v2129 = vunpack.c.l.b16 %v2091
        %v2130 = vunpack.c.l.b16 %v2092
        %v2131 = vunpack.c.l.b16 %v2093
        %v2132 = vunpack.c.l.b16 %v2094
        %v2133 = vunpack.c.l.b16 %v2095
        %v2134 = vunpack.c.l.b16 %v2096
        %v2135 = vunpack.c.l.b16 %v2097
        %v2136 = vpack.c.b16 %v2121, %v2120
        %v2137 = vpack.c.b16 %v2123, %v2122
        %v2138 = vpack.c.b16 %v2125, %v2124
        %v2139 = vpack.c.b16 %v2127, %v2126
        %v2140 = vpack.c.b16 %v2129, %v2128
        %v2141 = vpack.c.b16 %v2131, %v2130
        %v2142 = vpack.c.b16 %v2133, %v2132
        %v2143 = vpack.c.b16 %v2135, %v2134
        %2152 = vmatprep.subr.bf16.mxu0 0
        %2153 = vmatpush1.bf16.msra.mxu0 %v2136
        %2154 = vmatprep.subr.bf16.mxu0 0
        %2155 = vmatpush1.bf16.msra.mxu0 %v2137
        %2156 = vmatprep.subr.bf16.mxu0 0
        %2157 = vmatpush1.bf16.msra.mxu0 %v2138
        %2158 = vmatprep.subr.bf16.mxu0 0
        %2159 = vmatpush1.bf16.msra.mxu0 %v2139
        %2160 = vmatprep.subr.bf16.mxu0 0
        %2161 = vmatpush1.bf16.msra.mxu0 %v2140
        %2162 = vmatprep.subr.bf16.mxu0 0
        %2163 = vmatpush1.bf16.msra.mxu0 %v2141
        %2164 = vmatprep.subr.bf16.mxu0 0
        %2165 = vmatpush1.bf16.msra.mxu0 %v2142
        %2166 = vmatprep.subr.bf16.mxu0 0
        %2167 = vmatpush1.bf16.msra.mxu0 %v2143
        %2168 = vmatprep.subr.bf16.mxu0 0
        %2169 = vmatpush1.bf16.msra.mxu0 0
        %2170 = vmatprep.subr.bf16.mxu0 0
        %2171 = vmatpush1.bf16.msra.mxu0 0
        %2172 = vmatprep.subr.bf16.mxu0 0
        %2173 = vmatpush1.bf16.msra.mxu0 0
        %2174 = vmatprep.subr.bf16.mxu0 0
        %2175 = vmatpush1.bf16.msra.mxu0 0
        %2176 = vmatprep.subr.bf16.mxu0 0
        %2177 = vmatpush1.bf16.msra.mxu0 0
        %2178 = vmatprep.subr.bf16.mxu0 0
        %2179 = vmatpush1.bf16.msra.mxu0 0
        %2180 = vmatprep.subr.bf16.mxu0 0
        %2181 = vmatpush1.bf16.msra.mxu0 0
        %2182 = vmatprep.subr.bf16.mxu0 0
        %2183 = vmatpush1.bf16.msra.mxu0 0
        %2184 = vmatprep.mubr.bf16.mxu0 0
        %2185 = vmatmul.mubr.bf16.gmra.mrb[0].mxu0 %v2081
        %v2186 = vpop.f32.mrb[0].mxu0
        %v2187 = vadd.f32 %v2102, %v2186
        %v2188 = vpop.f32.mrb[0].mxu0
        %v2189 = vpop.f32.mrb[0].mxu0
        %v2190 = vpop.f32.mrb[0].mxu0
        %2191 = vdwg.mxu0
        %v2192 = vadd.f32 %v1982, %v2187
        %2193 = vst.msk [vmem:[%s577] sm:$0xff] %vm594, %v2192
        %s2194 = sand.u32 %s403, 1
        %s2195 = scalar_lea.sflag [#allocation4], %s2194
        %s2196 = sand.u32 %s403, 1
        %s2197 = smul.addr %s2196, 8
        %s2198 = scalar_lea.vmem [#allocation8], %s2197
        // Predicated region
        $region101: #{tpu_custom_call.1} parent=87 // pred_check
          %p2199 = pneg %p413
        $region102: #{tpu_custom_call.1} parent=87 // pred_check_branch
          %2201 = sbr.rel (%p2199) target = $region104
        $region103: #{tpu_custom_call.1} parent=87 // pred_region
          %s2203 = ssub.s32 128, 128
          %2204 = vsyncadd %s2195, %s2203
          %s2205 = smul.addr %s33, 128
          %s2206 = scalar_lea.hbm %s17, %s2205
          %s2208 = sshll.u32 %s2198, 4
          %s2209 = int_to_ptr.vmem [resolvable:$true] %s2208
          %2211 = dma.vmem_to_hbm [thread:$0]  %s2209, 128, %s2206, %s2195
        $region104: #{tpu_custom_call.1} parent=87 // pred_fallthru
          _
      $region88: #{tpu_custom_call.1} parent=5 // pred_fallthru
        _
      %p2212 = scmp.le.s32.totalorder 2, %s28
      // Predicated region
      $region105: #{tpu_custom_call.1} parent=5 // pred_check
        %p2213 = pneg %p2212
      $region106: #{tpu_custom_call.1} parent=5 // pred_check_branch
        %2215 = sbr.rel (%p2213) target = $region108
      $region107: #{tpu_custom_call.1} parent=5 // pred_region
        %s2216 = ssub.s32 %s28, 2
        // Predicated region
        $region109: #{tpu_custom_call.1} parent=107 // pred_check
          %p2217 = pneg %p419
        $region110: #{tpu_custom_call.1} parent=107 // pred_check_branch
          %2219 = sbr.rel (%p2217) target = $region112
        $region111: #{tpu_custom_call.1} parent=107 // pred_region
          %s2220 = sand.u32 %s404, 1
          %s2221 = scalar_lea.sflag [#allocation4], %s2220
          %s2222 = sand.u32 %s404, 1
          %s2223 = smul.addr %s2222, 8
          %s2224 = scalar_lea.vmem [#allocation8], %s2223
          %2225 = dma.done %s2221, 128
        $region112: #{tpu_custom_call.1} parent=107 // pred_fallthru
          _
      $region108: #{tpu_custom_call.1} parent=5 // pred_fallthru
        _
    $region6: #{tpu_custom_call.1} parent=1 // loop_footer
      %s32 = sadd.s32 1, %s28
    $region7: #{tpu_custom_call.1} parent=1 // loop_footer_branch
      %27 = sbr.rel target = $region3
    $region8: #{tpu_custom_call.1} parent=1 // loop_exit
      _
    %2226 = vsyncpa [#allocation3], 1
    %s2227 = scalar_lea.sflag [#allocation3], 1
    %2228 = vsyncpa %s2227, 1
    %2229 = vsyncpa [#allocation6], 1
    %2230 = vsyncpa [#allocation4], 1
    %s2231 = scalar_lea.sflag [#allocation4], 1
    %2232 = vsyncpa %s2231, 1

// kernel: tpu_custom_call.1
$region0: #{tpu_custom_call.1}
  #allocation0 [shape = 'u32[]', space=smem, size = 0x4, offset = 0x4, fixed_abs, tag = 'smem constant byte address 0x4 - core index']
  #allocation1 [shape = 'u32[144,128]{1,0:T(1,128)}', space=vmem, size = 0x12000, scoped, tag = 'internal scratch']
  %s0 = inlined_call_operand.vmem [shape: f32[2,8,32], index: 0, kind: input, shape index: {}]
  %s1 = inlined_call_operand.vmem [shape: f32[1,32], index: 1, kind: input, shape index: {}]
  %s2 = inlined_call_operand.vmem [shape: f32[1,32], index: 2, kind: input, shape index: {}]
  %s3 = inlined_call_operand.vmem [shape: bf16[32,32], index: 3, kind: input, shape index: {}]
  %s4 = inlined_call_operand.hbm [shape: f32[1,32], index: 4, kind: input, shape index: {}]
  %s5 = inlined_call_operand.vmem [shape: bf16[32,32], index: 5, kind: input, shape index: {}]
  %s6 = inlined_call_operand.hbm [shape: f32[1,32], index: 6, kind: input, shape index: {}]
  %s7 = inlined_call_operand.vmem [shape: bf16[32,32], index: 7, kind: input, shape index: {}]
  %s8 = inlined_call_operand.hbm [shape: f32[1,32], index: 8, kind: input, shape index: {}]
  %s9 = inlined_call_operand.vmem [shape: bf16[32,32], index: 9, kind: input, shape index: {}]
  %s10 = inlined_call_operand.vmem [shape: f32[1,32], index: 10, kind: input, shape index: {}]
  %s11 = inlined_call_operand.vmem [shape: f32[1,32], index: 11, kind: input, shape index: {}]
  %s12 = inlined_call_operand.vmem [shape: f32[1,32], index: 12, kind: input, shape index: {}]
  %s13 = inlined_call_operand.vmem [shape: bf16[32,128], index: 13, kind: input, shape index: {}]
  %s14 = inlined_call_operand.vmem [shape: f32[1,128], index: 14, kind: input, shape index: {}]
  %s15 = inlined_call_operand.vmem [shape: bf16[128,32], index: 15, kind: input, shape index: {}]
  %s16 = inlined_call_operand.vmem [shape: f32[1,32], index: 16, kind: input, shape index: {}]
  %s17 = inlined_call_operand.hbm [shape: f32[2,8,32], index: 17, kind: output, shape index: {}]
  %s18 = sld [smem:[#allocation0]]
  $region113: #{tpu_custom_call.1} parent=0
    _
  %s20 = ssub.s32 1, %s18
  %s21 = scalar_select 0, %s20, %s18
  $region1: #{tpu_custom_call.1} parent=0
    #allocation2 [shape = 'u8[512]{0}', space=vmem, size = 0x400, scoped, tag = 'input window, operand 4, single buffered']
    #allocation3 [shape = 's32[2]{0}', space=sflag, size = 0x8, scoped, tag = 'scoped memory for tpu_custom_call.1']
    #allocation4 [shape = 's32[2]{0}', space=sflag, size = 0x8, scoped, tag = 'scoped memory for tpu_custom_call.1']
    #allocation5 [shape = 'u8[512]{0}', space=vmem, size = 0x400, scoped, tag = 'input window, operand 6, single buffered']
    #allocation6 [shape = 's32[1]{0}', space=sflag, size = 0x4, scoped, tag = 'scoped memory for tpu_custom_call.1']
    #allocation7 [shape = 'u8[512]{0}', space=vmem, size = 0x400, scoped, tag = 'input window, operand 8, single buffered']
    #allocation8 [shape = 'u8[8192]{0}', space=vmem, size = 0x2000, scoped, tag = 'output window, operand 0']
    %22 = vsyncpa [#allocation3], 0
    %23 = vsyncpa [#allocation6], 0
    %24 = vsyncpa [#allocation4], 0
    %s25 = scalar_lea.sflag [#allocation4], 1
    %26 = vsyncpa %s25, 0
    loop: start=0, step=1, limit=4
    $region2: #{tpu_custom_call.1} parent=1 // loop_pre_header
      _
    $region3: #{tpu_custom_call.1} parent=1 // loop_header
      %s28 = sphi 0, %s32
      %p29 = scmp.ge.s32.totalorder %s28, 4
      %s38 = sphi 0, %s40
      %s41 = sphi 0, %s38
      %s42 = sphi 0, %s41
      %s58 = sphi 0, %s42
      %s62 = sphi 0, %s62
      %s64 = sphi 0, %s62
      %s65 = sphi 0, %s64
      %s79 = sphi 0, %s65
      %s83 = sphi 0, %s83
      %s85 = sphi 0, %s83
      %s86 = sphi 0, %s85
      %s100 = sphi 0, %s86
      %s104 = sphi 0, %s104
      %s106 = sphi 0, %s104
      %s107 = sphi 0, %s106
      %s121 = sphi 0, %s107
      %s125 = sphi 0, %s125
      %s127 = sphi 0, %s125
      %s128 = sphi 0, %s127
      %s142 = sphi 0, %s128
      %s146 = sphi 0, %s146
      %s148 = sphi 0, %s146
      %s149 = sphi 0, %s148
      %s163 = sphi 0, %s149
      %s167 = sphi 0, %s167
      %s169 = sphi 0, %s167
      %s170 = sphi 0, %s169
      %s184 = sphi 0, %s170
      %s188 = sphi 0, %s188
      %s190 = sphi 0, %s188
      %s191 = sphi 0, %s190
      %s205 = sphi 0, %s191
      %s209 = sphi 0, %s209
      %s211 = sphi 0, %s209
      %s212 = sphi 0, %s211
      %s226 = sphi 0, %s212
      %s230 = sphi 0, %s230
      %s232 = sphi 0, %s230
      %s233 = sphi 0, %s232
      %s247 = sphi 0, %s233
      %s251 = sphi 0, %s251
      %s253 = sphi 0, %s251
      %s254 = sphi 0, %s253
      %s268 = sphi 0, %s254
      %s272 = sphi 0, %s272
      %s274 = sphi 0, %s272
      %s275 = sphi 0, %s274
      %s289 = sphi 0, %s275
      %s293 = sphi 0, %s293
      %s295 = sphi 0, %s293
      %s296 = sphi 0, %s295
      %s310 = sphi 0, %s296
      %s314 = sphi 0, %s314
      %s316 = sphi 0, %s314
      %s317 = sphi 0, %s316
      %s331 = sphi 0, %s317
      %s335 = sphi 0, %s335
      %s337 = sphi 0, %s335
      %s338 = sphi 0, %s337
      %s352 = sphi 0, %s338
      %s356 = sphi 0, %s356
      %s358 = sphi 0, %s356
      %s359 = sphi 0, %s358
      %s373 = sphi 0, %s359
      %s377 = sphi 0, %s377
      %s379 = sphi 0, %s377
      %s380 = sphi 0, %s379
      %s394 = sphi 0, %s380
      %s400 = sphi 0, %s402
      %s403 = sphi 0, %s400
      %s404 = sphi 0, %s403
      %s420 = sphi 0, %s404
    $region4: #{tpu_custom_call.1} parent=1 // loop_header_branch
      %31 = sbr.rel (%p29) target = $region8
    $region5: #{tpu_custom_call.1} parent=1 // loop_body
      %s33 = ssub.s32 %s28, 1
      %s34 = ssub.s32 %s28, 2
      %s35 = sadd.s32 %s28, 1
      %s36 = ssub.s32 %s28, %s35
      %p37 = scmp.eq.s32.totalorder %s36, 0
      %s39 = sadd.s32 %s38, 1
      %s40 = scalar_select %p37, %s38, %s39
      %p43 = pneg %p37
      %p44 = scmp.eq.s32.totalorder %s28, 1
      %p45 = por %p43, %p44
      %p46 = scmp.ne.s32.totalorder %s38, %s41
      %p47 = scmp.eq.s32.totalorder %s28, 0
      %p48 = por %p46, %p47
      %p49 = scmp.ne.s32.totalorder %s38, %s41
      %p50 = scmp.eq.s32.totalorder %s33, 1
      %p51 = por %p49, %p50
      %p52 = scmp.ne.s32.totalorder %s41, %s42
      %p53 = scmp.eq.s32.totalorder %s33, 0
      %p54 = por %p52, %p53
      %p55 = scmp.ne.s32.totalorder %s41, %s42
      %p56 = scmp.eq.s32.totalorder %s34, 1
      %p57 = por %p55, %p56
      %p59 = scmp.ne.s32.totalorder %s42, %s58
      %p60 = scmp.eq.s32.totalorder %s34, 0
      %p61 = por %p59, %p60
      %s63 = sadd.s32 %s62, 1
      %p66 = scmp.eq.s32.totalorder %s28, 1
      %p67 = scmp.ne.s32.totalorder %s62, %s64
      %p68 = scmp.eq.s32.totalorder %s28, 0
      %p69 = por %p67, %p68
      %p70 = scmp.ne.s32.totalorder %s62, %s64
      %p71 = scmp.eq.s32.totalorder %s33, 1
      %p72 = por %p70, %p71
      %p73 = scmp.ne.s32.totalorder %s64, %s65
      %p74 = scmp.eq.s32.totalorder %s33, 0
      %p75 = por %p73, %p74
      %p76 = scmp.ne.s32.totalorder %s64, %s65
      %p77 = scmp.eq.s32.totalorder %s34, 1
      %p78 = por %p76, %p77
      %p80 = scmp.ne.s32.totalorder %s65, %s79
      %p81 = scmp.eq.s32.totalorder %s34, 0
      %p82 = por %p80, %p81
      %s84 = sadd.s32 %s83, 1
      %p87 = scmp.eq.s32.totalorder %s28, 1
      %p88 = scmp.ne.s32.totalorder %s83, %s85
      %p89 = scmp.eq.s32.totalorder %s28, 0
      %p90 = por %p88, %p89
      %p91 = scmp.ne.s32.totalorder %s83, %s85
      %p92 = scmp.eq.s32.totalorder %s33, 1
      %p93 = por %p91, %p92
      %p94 = scmp.ne.s32.totalorder %s85, %s86
      %p95 = scmp.eq.s32.totalorder %s33, 0
      %p96 = por %p94, %p95
      %p97 = scmp.ne.s32.totalorder %s85, %s86
      %p98 = scmp.eq.s32.totalorder %s34, 1
      %p99 = por %p97, %p98
      %p101 = scmp.ne.s32.totalorder %s86, %s100
      %p102 = scmp.eq.s32.totalorder %s34, 0
      %p103 = por %p101, %p102
      %s105 = sadd.s32 %s104, 1
      %p108 = scmp.eq.s32.totalorder %s28, 1
      %p109 = scmp.ne.s32.totalorder %s104, %s106
      %p110 = scmp.eq.s32.totalorder %s28, 0
      %p111 = por %p109, %p110
      %p112 = scmp.ne.s32.totalorder %s104, %s106
      %p113 = scmp.eq.s32.totalorder %s33, 1
      %p114 = por %p112, %p113
      %p115 = scmp.ne.s32.totalorder %s106, %s107
      %p116 = scmp.eq.s32.totalorder %s33, 0
      %p117 = por %p115, %p116
      %p118 = scmp.ne.s32.totalorder %s106, %s107
      %p119 = scmp.eq.s32.totalorder %s34, 1
      %p120 = por %p118, %p119
      %p122 = scmp.ne.s32.totalorder %s107, %s121
      %p123 = scmp.eq.s32.totalorder %s34, 0
      %p124 = por %p122, %p123
      %s126 = sadd.s32 %s125, 1
      %p129 = scmp.eq.s32.totalorder %s28, 1
      %p130 = scmp.ne.s32.totalorder %s125, %s127
      %p131 = scmp.eq.s32.totalorder %s28, 0
      %p132 = por %p130, %p131
      %p133 = scmp.ne.s32.totalorder %s125, %s127
      %p134 = scmp.eq.s32.totalorder %s33, 1
      %p135 = por %p133, %p134
      %p136 = scmp.ne.s32.totalorder %s127, %s128
      %p137 = scmp.eq.s32.totalorder %s33, 0
      %p138 = por %p136, %p137
      %p139 = scmp.ne.s32.totalorder %s127, %s128
      %p140 = scmp.eq.s32.totalorder %s34, 1
      %p141 = por %p139, %p140
      %p143 = scmp.ne.s32.totalorder %s128, %s142
      %p144 = scmp.eq.s32.totalorder %s34, 0
      %p145 = por %p143, %p144
      %s147 = sadd.s32 %s146, 1
      %p150 = scmp.eq.s32.totalorder %s28, 1
      %p151 = scmp.ne.s32.totalorder %s146, %s148
      %p152 = scmp.eq.s32.totalorder %s28, 0
      %p153 = por %p151, %p152
      %p154 = scmp.ne.s32.totalorder %s146, %s148
      %p155 = scmp.eq.s32.totalorder %s33, 1
      %p156 = por %p154, %p155
      %p157 = scmp.ne.s32.totalorder %s148, %s149
      %p158 = scmp.eq.s32.totalorder %s33, 0
      %p159 = por %p157, %p158
      %p160 = scmp.ne.s32.totalorder %s148, %s149
      %p161 = scmp.eq.s32.totalorder %s34, 1
      %p162 = por %p160, %p161
      %p164 = scmp.ne.s32.totalorder %s149, %s163
      %p165 = scmp.eq.s32.totalorder %s34, 0
      %p166 = por %p164, %p165
      %s168 = sadd.s32 %s167, 1
      %p171 = scmp.eq.s32.totalorder %s28, 1
      %p172 = scmp.ne.s32.totalorder %s167, %s169
      %p173 = scmp.eq.s32.totalorder %s28, 0
      %p174 = por %p172, %p173
      %p175 = scmp.ne.s32.totalorder %s167, %s169
      %p176 = scmp.eq.s32.totalorder %s33, 1
      %p177 = por %p175, %p176
      %p178 = scmp.ne.s32.totalorder %s169, %s170
      %p179 = scmp.eq.s32.totalorder %s33, 0
      %p180 = por %p178, %p179
      %p181 = scmp.ne.s32.totalorder %s169, %s170
      %p182 = scmp.eq.s32.totalorder %s34, 1
      %p183 = por %p181, %p182
      %p185 = scmp.ne.s32.totalorder %s170, %s184
      %p186 = scmp.eq.s32.totalorder %s34, 0
      %p187 = por %p185, %p186
      %s189 = sadd.s32 %s188, 1
      %p192 = scmp.eq.s32.totalorder %s28, 1
      %p193 = scmp.ne.s32.totalorder %s188, %s190
      %p194 = scmp.eq.s32.totalorder %s28, 0
      %p195 = por %p193, %p194
      %p196 = scmp.ne.s32.totalorder %s188, %s190
      %p197 = scmp.eq.s32.totalorder %s33, 1
      %p198 = por %p196, %p197
      %p199 = scmp.ne.s32.totalorder %s190, %s191
      %p200 = scmp.eq.s32.totalorder %s33, 0
      %p201 = por %p199, %p200
      %p202 = scmp.ne.s32.totalorder %s190, %s191
      %p203 = scmp.eq.s32.totalorder %s34, 1
      %p204 = por %p202, %p203
      %p206 = scmp.ne.s32.totalorder %s191, %s205
      %p207 = scmp.eq.s32.totalorder %s34, 0
      %p208 = por %p206, %p207
      %s210 = sadd.s32 %s209, 1
      %p213 = scmp.eq.s32.totalorder %s28, 1
      %p214 = scmp.ne.s32.totalorder %s209, %s211
      %p215 = scmp.eq.s32.totalorder %s28, 0
      %p216 = por %p214, %p215
      %p217 = scmp.ne.s32.totalorder %s209, %s211
      %p218 = scmp.eq.s32.totalorder %s33, 1
      %p219 = por %p217, %p218
      %p220 = scmp.ne.s32.totalorder %s211, %s212
      %p221 = scmp.eq.s32.totalorder %s33, 0
      %p222 = por %p220, %p221
      %p223 = scmp.ne.s32.totalorder %s211, %s212
      %p224 = scmp.eq.s32.totalorder %s34, 1
      %p225 = por %p223, %p224
      %p227 = scmp.ne.s32.totalorder %s212, %s226
      %p228 = scmp.eq.s32.totalorder %s34, 0
      %p229 = por %p227, %p228
      %s231 = sadd.s32 %s230, 1
      %p234 = scmp.eq.s32.totalorder %s28, 1
      %p235 = scmp.ne.s32.totalorder %s230, %s232
      %p236 = scmp.eq.s32.totalorder %s28, 0
      %p237 = por %p235, %p236
      %p238 = scmp.ne.s32.totalorder %s230, %s232
      %p239 = scmp.eq.s32.totalorder %s33, 1
      %p240 = por %p238, %p239
      %p241 = scmp.ne.s32.totalorder %s232, %s233
      %p242 = scmp.eq.s32.totalorder %s33, 0
      %p243 = por %p241, %p242
      %p244 = scmp.ne.s32.totalorder %s232, %s233
      %p245 = scmp.eq.s32.totalorder %s34, 1
      %p246 = por %p244, %p245
      %p248 = scmp.ne.s32.totalorder %s233, %s247
      %p249 = scmp.eq.s32.totalorder %s34, 0
      %p250 = por %p248, %p249
      %s252 = sadd.s32 %s251, 1
      %p255 = scmp.eq.s32.totalorder %s28, 1
      %p256 = scmp.ne.s32.totalorder %s251, %s253
      %p257 = scmp.eq.s32.totalorder %s28, 0
      %p258 = por %p256, %p257
      %p259 = scmp.ne.s32.totalorder %s251, %s253
      %p260 = scmp.eq.s32.totalorder %s33, 1
      %p261 = por %p259, %p260
      %p262 = scmp.ne.s32.totalorder %s253, %s254
      %p263 = scmp.eq.s32.totalorder %s33, 0
      %p264 = por %p262, %p263
      %p265 = scmp.ne.s32.totalorder %s253, %s254
      %p266 = scmp.eq.s32.totalorder %s34, 1
      %p267 = por %p265, %p266
      %p269 = scmp.ne.s32.totalorder %s254, %s268
      %p270 = scmp.eq.s32.totalorder %s34, 0
      %p271 = por %p269, %p270
      %s273 = sadd.s32 %s272, 1
      %p276 = scmp.eq.s32.totalorder %s28, 1
      %p277 = scmp.ne.s32.totalorder %s272, %s274
      %p278 = scmp.eq.s32.totalorder %s28, 0
      %p279 = por %p277, %p278
      %p280 = scmp.ne.s32.totalorder %s272, %s274
      %p281 = scmp.eq.s32.totalorder %s33, 1
      %p282 = por %p280, %p281
      %p283 = scmp.ne.s32.totalorder %s274, %s275
      %p284 = scmp.eq.s32.totalorder %s33, 0
      %p285 = por %p283, %p284
      %p286 = scmp.ne.s32.totalorder %s274, %s275
      %p287 = scmp.eq.s32.totalorder %s34, 1
      %p288 = por %p286, %p287
      %p290 = scmp.ne.s32.totalorder %s275, %s289
      %p291 = scmp.eq.s32.totalorder %s34, 0
      %p292 = por %p290, %p291
      %s294 = sadd.s32 %s293, 1
      %p297 = scmp.eq.s32.totalorder %s28, 1
      %p298 = scmp.ne.s32.totalorder %s293, %s295
      %p299 = scmp.eq.s32.totalorder %s28, 0
      %p300 = por %p298, %p299
      %p301 = scmp.ne.s32.totalorder %s293, %s295
      %p302 = scmp.eq.s32.totalorder %s33, 1
      %p303 = por %p301, %p302
      %p304 = scmp.ne.s32.totalorder %s295, %s296
      %p305 = scmp.eq.s32.totalorder %s33, 0
      %p306 = por %p304, %p305
      %p307 = scmp.ne.s32.totalorder %s295, %s296
      %p308 = scmp.eq.s32.totalorder %s34, 1
      %p309 = por %p307, %p308
      %p311 = scmp.ne.s32.totalorder %s296, %s310
      %p312 = scmp.eq.s32.totalorder %s34, 0
      %p313 = por %p311, %p312
      %s315 = sadd.s32 %s314, 1
      %p318 = scmp.eq.s32.totalorder %s28, 1
      %p319 = scmp.ne.s32.totalorder %s314, %s316
      %p320 = scmp.eq.s32.totalorder %s28, 0
      %p321 = por %p319, %p320
      %p322 = scmp.ne.s32.totalorder %s314, %s316
      %p323 = scmp.eq.s32.totalorder %s33, 1
      %p324 = por %p322, %p323
      %p325 = scmp.ne.s32.totalorder %s316, %s317
      %p326 = scmp.eq.s32.totalorder %s33, 0
      %p327 = por %p325, %p326
      %p328 = scmp.ne.s32.totalorder %s316, %s317
      %p329 = scmp.eq.s32.totalorder %s34, 1
      %p330 = por %p328, %p329
      %p332 = scmp.ne.s32.totalorder %s317, %s331
      %p333 = scmp.eq.s32.totalorder %s34, 0
      %p334 = por %p332, %p333
      %s336 = sadd.s32 %s335, 1
      %p339 = scmp.eq.s32.totalorder %s28, 1
      %p340 = scmp.ne.s32.totalorder %s335, %s337
      %p341 = scmp.eq.s32.totalorder %s28, 0
      %p342 = por %p340, %p341
      %p343 = scmp.ne.s32.totalorder %s335, %s337
      %p344 = scmp.eq.s32.totalorder %s33, 1
      %p345 = por %p343, %p344
      %p346 = scmp.ne.s32.totalorder %s337, %s338
      %p347 = scmp.eq.s32.totalorder %s33, 0
      %p348 = por %p346, %p347
      %p349 = scmp.ne.s32.totalorder %s337, %s338
      %p350 = scmp.eq.s32.totalorder %s34, 1
      %p351 = por %p349, %p350
      %p353 = scmp.ne.s32.totalorder %s338, %s352
      %p354 = scmp.eq.s32.totalorder %s34, 0
      %p355 = por %p353, %p354
      %s357 = sadd.s32 %s356, 1
      %p360 = scmp.eq.s32.totalorder %s28, 1
      %p361 = scmp.ne.s32.totalorder %s356, %s358
      %p362 = scmp.eq.s32.totalorder %s28, 0
      %p363 = por %p361, %p362
      %p364 = scmp.ne.s32.totalorder %s356, %s358
      %p365 = scmp.eq.s32.totalorder %s33, 1
      %p366 = por %p364, %p365
      %p367 = scmp.ne.s32.totalorder %s358, %s359
      %p368 = scmp.eq.s32.totalorder %s33, 0
      %p369 = por %p367, %p368
      %p370 = scmp.ne.s32.totalorder %s358, %s359
      %p371 = scmp.eq.s32.totalorder %s34, 1
      %p372 = por %p370, %p371
      %p374 = scmp.ne.s32.totalorder %s359, %s373
      %p375 = scmp.eq.s32.totalorder %s34, 0
      %p376 = por %p374, %p375
      %s378 = sadd.s32 %s377, 1
      %p381 = scmp.eq.s32.totalorder %s28, 1
      %p382 = scmp.ne.s32.totalorder %s377, %s379
      %p383 = scmp.eq.s32.totalorder %s28, 0
      %p384 = por %p382, %p383
      %p385 = scmp.ne.s32.totalorder %s377, %s379
      %p386 = scmp.eq.s32.totalorder %s33, 1
      %p387 = por %p385, %p386
      %p388 = scmp.ne.s32.totalorder %s379, %s380
      %p389 = scmp.eq.s32.totalorder %s33, 0
      %p390 = por %p388, %p389
      %p391 = scmp.ne.s32.totalorder %s379, %s380
      %p392 = scmp.eq.s32.totalorder %s34, 1
      %p393 = por %p391, %p392
      %p395 = scmp.ne.s32.totalorder %s380, %s394
      %p396 = scmp.eq.s32.totalorder %s34, 0
      %p397 = por %p395, %p396
      %s398 = ssub.s32 %s28, %s35
      %p399 = scmp.eq.s32.totalorder %s398, 0
      %s401 = sadd.s32 %s400, 1
      %s402 = scalar_select %p399, %s400, %s401
      %p405 = pneg %p399
      %p406 = scmp.eq.s32.totalorder %s28, 1
      %p407 = por %p405, %p406
      %p408 = scmp.ne.s32.totalorder %s400, %s403
      %p409 = scmp.eq.s32.totalorder %s28, 0
      %p410 = por %p408, %p409
      %p411 = scmp.ne.s32.totalorder %s400, %s403
      %p412 = scmp.eq.s32.totalorder %s33, 1
      %p413 = por %p411, %p412
      %p414 = scmp.ne.s32.totalorder %s403, %s404
      %p415 = scmp.eq.s32.totalorder %s33, 0
      %p416 = por %p414, %p415
      %p417 = scmp.ne.s32.totalorder %s403, %s404
      %p418 = scmp.eq.s32.totalorder %s34, 1
      %p419 = por %p417, %p418
      %p421 = scmp.ne.s32.totalorder %s404, %s420
      %p422 = scmp.eq.s32.totalorder %s34, 0
      %p423 = por %p421, %p422
      %p424 = scmp.le.s32.totalorder 1, %s28
      %p425 = scmp.lt.s32.totalorder %s28, 3
      %p426 = pnand %p424, %p425
      %p427 = pneg %p426
      // Predicated region
      $region9: #{tpu_custom_call.1} parent=5 // pred_check
        _
      $region10: #{tpu_custom_call.1} parent=5 // pred_check_branch
        %429 = sbr.rel (%p426) target = $region12
      $region11: #{tpu_custom_call.1} parent=5 // pred_region
        %s430 = ssub.s32 %s28, 1
        // Predicated region
        $region13: #{tpu_custom_call.1} parent=11 // pred_check
          %p431 = pneg %p75
        $region14: #{tpu_custom_call.1} parent=11 // pred_check_branch
          %433 = sbr.rel (%p431) target = $region16
        $region15: #{tpu_custom_call.1} parent=11 // pred_region
          _
        $region16: #{tpu_custom_call.1} parent=11 // pred_fallthru
          _
        // Predicated region
        $region17: #{tpu_custom_call.1} parent=11 // pred_check
          %p434 = pneg %p96
        $region18: #{tpu_custom_call.1} parent=11 // pred_check_branch
          %436 = sbr.rel (%p434) target = $region20
        $region19: #{tpu_custom_call.1} parent=11 // pred_region
          _
        $region20: #{tpu_custom_call.1} parent=11 // pred_fallthru
          _
        // Predicated region
        $region21: #{tpu_custom_call.1} parent=11 // pred_check
          %p437 = pneg %p117
        $region22: #{tpu_custom_call.1} parent=11 // pred_check_branch
          %439 = sbr.rel (%p437) target = $region24
        $region23: #{tpu_custom_call.1} parent=11 // pred_region
          _
        $region24: #{tpu_custom_call.1} parent=11 // pred_fallthru
          _
        // Predicated region
        $region25: #{tpu_custom_call.1} parent=11 // pred_check
          %p440 = pneg %p138
        $region26: #{tpu_custom_call.1} parent=11 // pred_check_branch
          %442 = sbr.rel (%p440) target = $region28
        $region27: #{tpu_custom_call.1} parent=11 // pred_region
          %s444 = ssub.s32 16, 16
          %445 = vsyncadd [#allocation3], %s444
          %s447 = sshll.u32 [#allocation2], 4
          %s448 = int_to_ptr.vmem [resolvable:$true] %s447
          %450 = dma.hbm_to_vmem [thread:$0]  %s4, 16, %s448, [#allocation3]
        $region28: #{tpu_custom_call.1} parent=11 // pred_fallthru
          _
        // Predicated region
        $region29: #{tpu_custom_call.1} parent=11 // pred_check
          %p451 = pneg %p159
        $region30: #{tpu_custom_call.1} parent=11 // pred_check_branch
          %453 = sbr.rel (%p451) target = $region32
        $region31: #{tpu_custom_call.1} parent=11 // pred_region
          _
        $region32: #{tpu_custom_call.1} parent=11 // pred_fallthru
          _
        // Predicated region
        $region33: #{tpu_custom_call.1} parent=11 // pred_check
          %p454 = pneg %p180
        $region34: #{tpu_custom_call.1} parent=11 // pred_check_branch
          %456 = sbr.rel (%p454) target = $region36
        $region35: #{tpu_custom_call.1} parent=11 // pred_region
          %s458 = ssub.s32 16, 16
          %459 = vsyncadd [#allocation6], %s458
          %s461 = sshll.u32 [#allocation5], 4
          %s462 = int_to_ptr.vmem [resolvable:$true] %s461
          %464 = dma.hbm_to_vmem [thread:$0]  %s6, 16, %s462, [#allocation6]
        $region36: #{tpu_custom_call.1} parent=11 // pred_fallthru
          _
        // Predicated region
        $region37: #{tpu_custom_call.1} parent=11 // pred_check
          %p465 = pneg %p201
        $region38: #{tpu_custom_call.1} parent=11 // pred_check_branch
          %467 = sbr.rel (%p465) target = $region40
        $region39: #{tpu_custom_call.1} parent=11 // pred_region
          _
        $region40: #{tpu_custom_call.1} parent=11 // pred_fallthru
          _
        // Predicated region
        $region41: #{tpu_custom_call.1} parent=11 // pred_check
          %p468 = pneg %p222
        $region42: #{tpu_custom_call.1} parent=11 // pred_check_branch
          %470 = sbr.rel (%p468) target = $region44
        $region43: #{tpu_custom_call.1} parent=11 // pred_region
          %s472 = ssub.s32 16, 16
          %473 = vsyncadd [#allocation6], %s472
          %s475 = sshll.u32 [#allocation7], 4
          %s476 = int_to_ptr.vmem [resolvable:$true] %s475
          %478 = dma.hbm_to_vmem [thread:$0]  %s8, 16, %s476, [#allocation6]
        $region44: #{tpu_custom_call.1} parent=11 // pred_fallthru
          _
        // Predicated region
        $region45: #{tpu_custom_call.1} parent=11 // pred_check
          %p479 = pneg %p243
        $region46: #{tpu_custom_call.1} parent=11 // pred_check_branch
          %481 = sbr.rel (%p479) target = $region48
        $region47: #{tpu_custom_call.1} parent=11 // pred_region
          _
        $region48: #{tpu_custom_call.1} parent=11 // pred_fallthru
          _
        // Predicated region
        $region49: #{tpu_custom_call.1} parent=11 // pred_check
          %p482 = pneg %p264
        $region50: #{tpu_custom_call.1} parent=11 // pred_check_branch
          %484 = sbr.rel (%p482) target = $region52
        $region51: #{tpu_custom_call.1} parent=11 // pred_region
          _
        $region52: #{tpu_custom_call.1} parent=11 // pred_fallthru
          _
        // Predicated region
        $region53: #{tpu_custom_call.1} parent=11 // pred_check
          %p485 = pneg %p285
        $region54: #{tpu_custom_call.1} parent=11 // pred_check_branch
          %487 = sbr.rel (%p485) target = $region56
        $region55: #{tpu_custom_call.1} parent=11 // pred_region
          _
        $region56: #{tpu_custom_call.1} parent=11 // pred_fallthru
          _
        // Predicated region
        $region57: #{tpu_custom_call.1} parent=11 // pred_check
          %p488 = pneg %p306
        $region58: #{tpu_custom_call.1} parent=11 // pred_check_branch
          %490 = sbr.rel (%p488) target = $region60
        $region59: #{tpu_custom_call.1} parent=11 // pred_region
          _
        $region60: #{tpu_custom_call.1} parent=11 // pred_fallthru
          _
        // Predicated region
        $region61: #{tpu_custom_call.1} parent=11 // pred_check
          %p491 = pneg %p327
        $region62: #{tpu_custom_call.1} parent=11 // pred_check_branch
          %493 = sbr.rel (%p491) target = $region64
        $region63: #{tpu_custom_call.1} parent=11 // pred_region
          _
        $region64: #{tpu_custom_call.1} parent=11 // pred_fallthru
          _
        // Predicated region
        $region65: #{tpu_custom_call.1} parent=11 // pred_check
          %p494 = pneg %p348
        $region66: #{tpu_custom_call.1} parent=11 // pred_check_branch
          %496 = sbr.rel (%p494) target = $region68
        $region67: #{tpu_custom_call.1} parent=11 // pred_region
          _
        $region68: #{tpu_custom_call.1} parent=11 // pred_fallthru
          _
        // Predicated region
        $region69: #{tpu_custom_call.1} parent=11 // pred_check
          %p497 = pneg %p369
        $region70: #{tpu_custom_call.1} parent=11 // pred_check_branch
          %499 = sbr.rel (%p497) target = $region72
        $region71: #{tpu_custom_call.1} parent=11 // pred_region
          _
        $region72: #{tpu_custom_call.1} parent=11 // pred_fallthru
          _
        // Predicated region
        $region73: #{tpu_custom_call.1} parent=11 // pred_check
          %p500 = pneg %p390
        $region74: #{tpu_custom_call.1} parent=11 // pred_check_branch
          %502 = sbr.rel (%p500) target = $region76
        $region75: #{tpu_custom_call.1} parent=11 // pred_region
          _
        $region76: #{tpu_custom_call.1} parent=11 // pred_fallthru
          _
      $region12: #{tpu_custom_call.1} parent=5 // pred_fallthru
        _
      %p503 = scmp.lt.s32.totalorder %s28, 2
      // Predicated region
      $region77: #{tpu_custom_call.1} parent=5 // pred_check
        %p504 = pneg %p503
      $region78: #{tpu_custom_call.1} parent=5 // pred_check_branch
        %506 = sbr.rel (%p504) target = $region80
      $region79: #{tpu_custom_call.1} parent=5 // pred_region
        // Predicated region
        $region81: #{tpu_custom_call.1} parent=79 // pred_check
          %p507 = pneg %p48
        $region82: #{tpu_custom_call.1} parent=79 // pred_check_branch
          %509 = sbr.rel (%p507) target = $region84
        $region83: #{tpu_custom_call.1} parent=79 // pred_region
          %p510 = scmp.lt.s32.totalorder %s28, 1
          %s511 = scalar_select %p510, %s28, 1
          %s512 = smul.addr %s511, 8
          %s513 = scalar_lea.vmem %s0, %s512
        $region84: #{tpu_custom_call.1} parent=79 // pred_fallthru
          _
      $region80: #{tpu_custom_call.1} parent=5 // pred_fallthru
        _
      %p514 = scmp.le.s32.totalorder 1, %s28
      %p515 = scmp.lt.s32.totalorder %s28, 3
      %p516 = pnand %p514, %p515
      %p517 = pneg %p516
      // Predicated region
      $region85: #{tpu_custom_call.1} parent=5 // pred_check
        _
      $region86: #{tpu_custom_call.1} parent=5 // pred_check_branch
        %519 = sbr.rel (%p516) target = $region88
      $region87: #{tpu_custom_call.1} parent=5 // pred_region
        %s520 = ssub.s32 %s28, 1
        // Predicated region
        $region89: #{tpu_custom_call.1} parent=87 // pred_check
          %p521 = pneg %p138
        $region90: #{tpu_custom_call.1} parent=87 // pred_check_branch
          %523 = sbr.rel (%p521) target = $region92
        $region91: #{tpu_custom_call.1} parent=87 // pred_region
          %524 = dma.done [#allocation3], 16
        $region92: #{tpu_custom_call.1} parent=87 // pred_fallthru
          _
        // Predicated region
        $region93: #{tpu_custom_call.1} parent=87 // pred_check
          %p525 = pneg %p180
        $region94: #{tpu_custom_call.1} parent=87 // pred_check_branch
          %527 = sbr.rel (%p525) target = $region96
        $region95: #{tpu_custom_call.1} parent=87 // pred_region
          %528 = dma.done [#allocation6], 16
        $region96: #{tpu_custom_call.1} parent=87 // pred_fallthru
          _
        // Predicated region
        $region97: #{tpu_custom_call.1} parent=87 // pred_check
          %p529 = pneg %p222
        $region98: #{tpu_custom_call.1} parent=87 // pred_check_branch
          %531 = sbr.rel (%p529) target = $region100
        $region99: #{tpu_custom_call.1} parent=87 // pred_region
          %532 = dma.done [#allocation6], 16
        $region100: #{tpu_custom_call.1} parent=87 // pred_fallthru
          _
        %p533 = scmp.lt.s32.totalorder %s33, 1
        %s534 = scalar_select %p533, %s33, 1
        %s535 = smul.addr %s534, 8
        %s536 = scalar_lea.vmem %s0, %s535
        %p537 = pneg %p54
        %p538 = pneg %p51
        %p539 = pneg %p75
        %p540 = pneg %p72
        %p541 = pneg %p96
        %p542 = pneg %p93
        %p543 = pneg %p117
        %p544 = pneg %p114
        %p545 = pneg %p138
        %p546 = pneg %p135
        %p547 = pneg %p159
        %p548 = pneg %p156
        %p549 = pneg %p180
        %p550 = pneg %p177
        %p551 = pneg %p201
        %p552 = pneg %p198
        %p553 = pneg %p222
        %p554 = pneg %p219
        %p555 = pneg %p243
        %p556 = pneg %p240
        %p557 = pneg %p264
        %p558 = pneg %p261
        %p559 = pneg %p285
        %p560 = pneg %p282
        %p561 = pneg %p306
        %p562 = pneg %p303
        %p563 = pneg %p327
        %p564 = pneg %p324
        %p565 = pneg %p348
        %p566 = pneg %p345
        %p567 = pneg %p369
        %p568 = pneg %p366
        %p569 = pneg %p390
        %p570 = pneg %p387
        %p571 = pneg %p416
        %p572 = pneg %p413
        %s573 = sand.u32 %s403, 1
        %s574 = scalar_lea.sflag [#allocation4], %s573
        %s575 = sand.u32 %s403, 1
        %s576 = smul.addr %s575, 8
        %s577 = scalar_lea.vmem [#allocation8], %s576
        %p578 = scmp.lt.s32.totalorder %s33, 1
        %s579 = scalar_select %p578, %s33, 1
        %s580 = smul.addr %s579, 8
        %s581 = scalar_lea.vmem %s0, %s580
        %v583 = vld [vmem:[%s581] sm:$0xff]
        %v584 = vld [vmem:[%s1] sm:$0x1]
        %v585 = vld [vmem:[%s2] sm:$0x1]
        %v586 = vld [vmem:[%s11] sm:$0x1]
        %v587 = vld [vmem:[%s12] sm:$0x1]
        %v588 = vld [vmem:[#allocation2] sm:$0x1]
        %v589 = vld [vmem:[#allocation5] sm:$0x1]
        %v590 = vld [vmem:[#allocation7] sm:$0x1]
        %v591 = vld [vmem:[%s10] sm:$0x1]
        %v592 = vld [vmem:[%s14] sm:$0x1]
        %v593 = vld [vmem:[%s16] sm:$0x1]
        %vm594 = vcmask 261120
        %v595 = vsel %vm594, %v583, 0.0
        %596 = vadd.xlane.f32.xlu0 %v595
        %v597 = vpop.xlane.xlu0 %596
        %v598 = vrcp.pop 32.0
        %v599 = vmul.f32 %v597, %v598
        %v600 = vsub.f32 %v583, %v599
        %v601 = vmul.f32 %v600, %v600
        %v602 = vsel %vm594, %v601, 0.0
        %603 = vadd.xlane.f32.xlu0 %v602
        %v604 = vpop.xlane.xlu0 %603
        %v605 = vmul.f32 %v604, %v598
        %v606 = vadd.f32 %v605, 1e-05
        %v607 = vrsqrt.pop %v606
        %v608 = vmul.f32 %v600, %v607
        %v610 = vlaneseq
        %v611 = vshrl.u32 %v610, 7
        %v612 = vsub.s32 0, %v611
        %v613 = vrot.slane %v584, %v612
        %v615 = vmul.f32 %v608, %v613
        %v617 = vlaneseq
        %v618 = vshrl.u32 %v617, 7
        %v619 = vsub.s32 0, %v618
        %v620 = vrot.slane %v585, %v619
        %v622 = vadd.f32 %v615, %v620
        %v623 = vpack.c.bf16 %v622, %v622
        %v624 = vld [vmem:[%s3] sm:$0xf]
        %v625 = vld [vmem:[%s3 + $0x4] sm:$0xf]
        %v626 = vld [vmem:[%s3 + $0x8] sm:$0xf]
        %v627 = vld [vmem:[%s3 + $0xc] sm:$0xf]
        %v629 = vlaneseq
        %v630 = vshrl.u32 %v629, 7
        %v631 = vsub.s32 0, %v630
        %v632 = vrot.slane %v588, %v631
        %v638 = vunpack.c.l.b16 %v624
        %v639 = vunpack.c.l.b16 %v625
        %v640 = vunpack.c.l.b16 %v626
        %v641 = vunpack.c.l.b16 %v627
        %v642 = vpack.c.b16 %v639, %v638
        %v643 = vpack.c.b16 %v641, %v640
        %v647 = vsel %vm594, %v623, 0
        %649 = vmatprep.subr.bf16.mxu0 0
        %650 = vmatpush1.bf16.msra.mxu0 %v642
        %651 = vmatprep.subr.bf16.mxu0 0
        %652 = vmatpush1.bf16.msra.mxu0 %v643
        %653 = vmatprep.subr.bf16.mxu0 0
        %654 = vmatpush1.bf16.msra.mxu0 0
        %655 = vmatprep.subr.bf16.mxu0 0
        %656 = vmatpush1.bf16.msra.mxu0 0
        %657 = vmatprep.subr.bf16.mxu0 0
        %658 = vmatpush1.bf16.msra.mxu0 0
        %659 = vmatprep.subr.bf16.mxu0 0
        %660 = vmatpush1.bf16.msra.mxu0 0
        %661 = vmatprep.subr.bf16.mxu0 0
        %662 = vmatpush1.bf16.msra.mxu0 0
        %663 = vmatprep.subr.bf16.mxu0 0
        %664 = vmatpush1.bf16.msra.mxu0 0
        %665 = vmatprep.subr.bf16.mxu0 0
        %666 = vmatpush1.bf16.msra.mxu0 0
        %667 = vmatprep.subr.bf16.mxu0 0
        %668 = vmatpush1.bf16.msra.mxu0 0
        %669 = vmatprep.subr.bf16.mxu0 0
        %670 = vmatpush1.bf16.msra.mxu0 0
        %671 = vmatprep.subr.bf16.mxu0 0
        %672 = vmatpush1.bf16.msra.mxu0 0
        %673 = vmatprep.subr.bf16.mxu0 0
        %674 = vmatpush1.bf16.msra.mxu0 0
        %675 = vmatprep.subr.bf16.mxu0 0
        %676 = vmatpush1.bf16.msra.mxu0 0
        %677 = vmatprep.subr.bf16.mxu0 0
        %678 = vmatpush1.bf16.msra.mxu0 0
        %679 = vmatprep.subr.bf16.mxu0 0
        %680 = vmatpush1.bf16.msra.mxu0 0
        %681 = vmatprep.mubr.bf16.mxu0 0
        %682 = vmatmul.mubr.bf16.gmra.mrb[0].mxu0 %v647
        %v683 = vpop.f32.mrb[0].mxu0
        %v684 = vadd.f32 %v632, %v683
        %v685 = vpop.f32.mrb[0].mxu0
        %v686 = vpop.f32.mrb[0].mxu0
        %v687 = vpop.f32.mrb[0].mxu0
        %688 = vdwg.mxu0
        %v689 = vld [vmem:[%s5] sm:$0xf]
        %v690 = vld [vmem:[%s5 + $0x4] sm:$0xf]
        %v691 = vld [vmem:[%s5 + $0x8] sm:$0xf]
        %v692 = vld [vmem:[%s5 + $0xc] sm:$0xf]
        %v694 = vlaneseq
        %v695 = vshrl.u32 %v694, 7
        %v696 = vsub.s32 0, %v695
        %v697 = vrot.slane %v589, %v696
        %v703 = vunpack.c.l.b16 %v689
        %v704 = vunpack.c.l.b16 %v690
        %v705 = vunpack.c.l.b16 %v691
        %v706 = vunpack.c.l.b16 %v692
        %v707 = vpack.c.b16 %v704, %v703
        %v708 = vpack.c.b16 %v706, %v705
        %711 = vmatprep.subr.bf16.mxu0 0
        %712 = vmatpush1.bf16.msra.mxu0 %v707
        %713 = vmatprep.subr.bf16.mxu0 0
        %714 = vmatpush1.bf16.msra.mxu0 %v708
        %715 = vmatprep.subr.bf16.mxu0 0
        %716 = vmatpush1.bf16.msra.mxu0 0
        %717 = vmatprep.subr.bf16.mxu0 0
        %718 = vmatpush1.bf16.msra.mxu0 0
        %719 = vmatprep.subr.bf16.mxu0 0
        %720 = vmatpush1.bf16.msra.mxu0 0
        %721 = vmatprep.subr.bf16.mxu0 0
        %722 = vmatpush1.bf16.msra.mxu0 0
        %723 = vmatprep.subr.bf16.mxu0 0
        %724 = vmatpush1.bf16.msra.mxu0 0
        %725 = vmatprep.subr.bf16.mxu0 0
        %726 = vmatpush1.bf16.msra.mxu0 0
        %727 = vmatprep.subr.bf16.mxu0 0
        %728 = vmatpush1.bf16.msra.mxu0 0
        %729 = vmatprep.subr.bf16.mxu0 0
        %730 = vmatpush1.bf16.msra.mxu0 0
        %731 = vmatprep.subr.bf16.mxu0 0
        %732 = vmatpush1.bf16.msra.mxu0 0
        %733 = vmatprep.subr.bf16.mxu0 0
        %734 = vmatpush1.bf16.msra.mxu0 0
        %735 = vmatprep.subr.bf16.mxu0 0
        %736 = vmatpush1.bf16.msra.mxu0 0
        %737 = vmatprep.subr.bf16.mxu0 0
        %738 = vmatpush1.bf16.msra.mxu0 0
        %739 = vmatprep.subr.bf16.mxu0 0
        %740 = vmatpush1.bf16.msra.mxu0 0
        %741 = vmatprep.subr.bf16.mxu0 0
        %742 = vmatpush1.bf16.msra.mxu0 0
        %743 = vmatprep.mubr.bf16.mxu0 0
        %744 = vmatmul.mubr.bf16.gmra.mrb[0].mxu0 %v647
        %v745 = vpop.f32.mrb[0].mxu0
        %v746 = vadd.f32 %v697, %v745
        %v747 = vpop.f32.mrb[0].mxu0
        %v748 = vpop.f32.mrb[0].mxu0
        %v749 = vpop.f32.mrb[0].mxu0
        %750 = vdwg.mxu0
        %v751 = vld [vmem:[%s7] sm:$0xf]
        %v752 = vld [vmem:[%s7 + $0x4] sm:$0xf]
        %v753 = vld [vmem:[%s7 + $0x8] sm:$0xf]
        %v754 = vld [vmem:[%s7 + $0xc] sm:$0xf]
        %v756 = vlaneseq
        %v757 = vshrl.u32 %v756, 7
        %v758 = vsub.s32 0, %v757
        %v759 = vrot.slane %v590, %v758
        %v765 = vunpack.c.l.b16 %v751
        %v766 = vunpack.c.l.b16 %v752
        %v767 = vunpack.c.l.b16 %v753
        %v768 = vunpack.c.l.b16 %v754
        %v769 = vpack.c.b16 %v766, %v765
        %v770 = vpack.c.b16 %v768, %v767
        %773 = vmatprep.subr.bf16.mxu0 0
        %774 = vmatpush1.bf16.msra.mxu0 %v769
        %775 = vmatprep.subr.bf16.mxu0 0
        %776 = vmatpush1.bf16.msra.mxu0 %v770
        %777 = vmatprep.subr.bf16.mxu0 0
        %778 = vmatpush1.bf16.msra.mxu0 0
        %779 = vmatprep.subr.bf16.mxu0 0
        %780 = vmatpush1.bf16.msra.mxu0 0
        %781 = vmatprep.subr.bf16.mxu0 0
        %782 = vmatpush1.bf16.msra.mxu0 0
        %783 = vmatprep.subr.bf16.mxu0 0
        %784 = vmatpush1.bf16.msra.mxu0 0
        %785 = vmatprep.subr.bf16.mxu0 0
        %786 = vmatpush1.bf16.msra.mxu0 0
        %787 = vmatprep.subr.bf16.mxu0 0
        %788 = vmatpush1.bf16.msra.mxu0 0
        %789 = vmatprep.subr.bf16.mxu0 0
        %790 = vmatpush1.bf16.msra.mxu0 0
        %791 = vmatprep.subr.bf16.mxu0 0
        %792 = vmatpush1.bf16.msra.mxu0 0
        %793 = vmatprep.subr.bf16.mxu0 0
        %794 = vmatpush1.bf16.msra.mxu0 0
        %795 = vmatprep.subr.bf16.mxu0 0
        %796 = vmatpush1.bf16.msra.mxu0 0
        %797 = vmatprep.subr.bf16.mxu0 0
        %798 = vmatpush1.bf16.msra.mxu0 0
        %799 = vmatprep.subr.bf16.mxu0 0
        %800 = vmatpush1.bf16.msra.mxu0 0
        %801 = vmatprep.subr.bf16.mxu0 0
        %802 = vmatpush1.bf16.msra.mxu0 0
        %803 = vmatprep.subr.bf16.mxu0 0
        %804 = vmatpush1.bf16.msra.mxu0 0
        %805 = vmatprep.mubr.bf16.mxu0 0
        %806 = vmatmul.mubr.bf16.gmra.mrb[0].mxu0 %v647
        %v807 = vpop.f32.mrb[0].mxu0
        %v808 = vadd.f32 %v759, %v807
        %v809 = vpop.f32.mrb[0].mxu0
        %v810 = vpop.f32.mrb[0].mxu0
        %v811 = vpop.f32.mrb[0].mxu0
        %812 = vdwg.mxu0
        %v813 = vmul.f32 %v684, 0.35355338
        %v814 = vpack.c.bf16 %v813, %v813
        %816 = vrot.lane.b32.xlu0 %v814, 120
        %v817 = vpop.permute.xlu0 %816
        %818 = vrot.lane.b32.xlu0 %v814, 112
        %v819 = vpop.permute.xlu0 %818
        %820 = vrot.lane.b32.xlu0 %v814, 104
        %v821 = vpop.permute.xlu0 %820
        %v823 = vunpack.c.l.s4 1983009808
        %v824 = vunpack.c.0.s8 %v823
        %v825 = vlaneseq
        %v826 = vshrl.u32 %v825, 7
        %v827 = vsub.s32 %v824, %v826
        %v828 = vrot.slane %v814, %v827
        %v831 = vunpack.c.l.s4 1983009808
        %v832 = vunpack.c.0.s8 %v831
        %v833 = vlaneseq
        %v834 = vshrl.u32 %v833, 7
        %v835 = vsub.s32 %v832, %v834
        %v836 = vrot.slane %v819, %v835
        %v837 = vcombine.low %v828, %v836
        %v838 = vcombine.high %v828, %v836
        %v840 = vunpack.c.l.s4 1934713408
        %v841 = vunpack.c.0.s8 %v840
        %v842 = vlaneseq
        %v843 = vshrl.u32 %v842, 7
        %v844 = vsub.s32 %v841, %v843
        %v845 = vrot.slane %v837, %v844
        %v847 = vunpack.c.l.s4 1934713408
        %v848 = vunpack.c.0.s8 %v847
        %v849 = vlaneseq
        %v850 = vshrl.u32 %v849, 7
        %v851 = vsub.s32 %v848, %v850
        %v852 = vrot.slane %v838, %v851
        %v853 = vcombine.high %v845, 0
        %v854 = vcombine.high %v852, 0
        %v857 = vunpack.c.l.s4 1983009808
        %v858 = vunpack.c.0.s8 %v857
        %v859 = vlaneseq
        %v860 = vshrl.u32 %v859, 7
        %v861 = vsub.s32 %v858, %v860
        %v862 = vrot.slane %v817, %v861
        %v865 = vunpack.c.l.s4 1983009808
        %v866 = vunpack.c.0.s8 %v865
        %v867 = vlaneseq
        %v868 = vshrl.u32 %v867, 7
        %v869 = vsub.s32 %v866, %v868
        %v870 = vrot.slane %v821, %v869
        %v871 = vcombine.low %v862, %v870
        %v872 = vcombine.high %v862, %v870
        %v874 = vunpack.c.l.s4 1934713408
        %v875 = vunpack.c.0.s8 %v874
        %v876 = vlaneseq
        %v877 = vshrl.u32 %v876, 7
        %v878 = vsub.s32 %v875, %v877
        %v879 = vrot.slane %v871, %v878
        %v881 = vunpack.c.l.s4 1934713408
        %v882 = vunpack.c.0.s8 %v881
        %v883 = vlaneseq
        %v884 = vshrl.u32 %v883, 7
        %v885 = vsub.s32 %v882, %v884
        %v886 = vrot.slane %v872, %v885
        %v887 = vcombine.high %v879, 0
        %v888 = vcombine.high %v886, 0
        %v891 = vpack.i.b16 %v879, %v845
        %v893 = vshrl.u32 %v845, 16
        %v894 = vshrl.u32 %v879, 16
        %v895 = vpack.i.b16 %v894, %v893
        %v899 = vpack.i.b16 %v887, %v853
        %v901 = vshrl.u32 %v853, 16
        %v902 = vshrl.u32 %v887, 16
        %v903 = vpack.i.b16 %v902, %v901
        %v907 = vpack.i.b16 %v886, %v852
        %v909 = vshrl.u32 %v852, 16
        %v910 = vshrl.u32 %v886, 16
        %v911 = vpack.i.b16 %v910, %v909
        %v915 = vpack.i.b16 %v888, %v854
        %v917 = vshrl.u32 %v854, 16
        %v918 = vshrl.u32 %v888, 16
        %v919 = vpack.i.b16 %v918, %v917
        %v921 = vcombine.low %v891, %v907
        %v923 = vunpack.c.l.s4 1983009808
        %v924 = vunpack.c.0.s8 %v923
        %v925 = vlaneseq
        %v926 = vshrl.u32 %v925, 7
        %v927 = vsub.s32 %v924, %v926
        %v928 = vrot.slane %v921, %v927
        %v929 = vcombine.low %v899, %v915
        %v931 = vunpack.c.l.s4 1983009808
        %v932 = vunpack.c.0.s8 %v931
        %v933 = vlaneseq
        %v934 = vshrl.u32 %v933, 7
        %v935 = vsub.s32 %v932, %v934
        %v936 = vrot.slane %v929, %v935
        %v937 = vcombine.low %v928, %v936
        %v939 = vunpack.c.l.s4 1934713408
        %v940 = vunpack.c.0.s8 %v939
        %v941 = vlaneseq
        %v942 = vshrl.u32 %v941, 7
        %v943 = vsub.s32 %v940, %v942
        %v944 = vrot.slane %v937, %v943
        %v945 = vcombine.high %v944, 0
        %v946 = vcombine.low %v895, %v911
        %v948 = vunpack.c.l.s4 1983009808
        %v949 = vunpack.c.0.s8 %v948
        %v950 = vlaneseq
        %v951 = vshrl.u32 %v950, 7
        %v952 = vsub.s32 %v949, %v951
        %v953 = vrot.slane %v946, %v952
        %v954 = vcombine.low %v903, %v919
        %v956 = vunpack.c.l.s4 1983009808
        %v957 = vunpack.c.0.s8 %v956
        %v958 = vlaneseq
        %v959 = vshrl.u32 %v958, 7
        %v960 = vsub.s32 %v957, %v959
        %v961 = vrot.slane %v954, %v960
        %v962 = vcombine.low %v953, %v961
        %v964 = vunpack.c.l.s4 1934713408
        %v965 = vunpack.c.0.s8 %v964
        %v966 = vlaneseq
        %v967 = vshrl.u32 %v966, 7
        %v968 = vsub.s32 %v965, %v967
        %v969 = vrot.slane %v962, %v968
        %v970 = vcombine.high %v969, 0
        %v973 = vpack.i.b16 %v969, %v944
        %v974 = vshrl.u32 %v944, 16
        %v975 = vshrl.u32 %v969, 16
        %v976 = vpack.i.b16 %v975, %v974
        %v979 = vpack.i.b16 %v970, %v945
        %v980 = vshrl.u32 %v945, 16
        %v981 = vshrl.u32 %v970, 16
        %v982 = vpack.i.b16 %v981, %v980
        %v983 = vpack.c.bf16 %v746, %v746
        %985 = vrot.lane.b32.xlu0 %v983, 120
        %v986 = vpop.permute.xlu0 %985
        %987 = vrot.lane.b32.xlu0 %v983, 112
        %v988 = vpop.permute.xlu0 %987
        %989 = vrot.lane.b32.xlu0 %v983, 104
        %v990 = vpop.permute.xlu0 %989
        %v992 = vunpack.c.l.s4 1983009808
        %v993 = vunpack.c.0.s8 %v992
        %v994 = vlaneseq
        %v995 = vshrl.u32 %v994, 7
        %v996 = vsub.s32 %v993, %v995
        %v997 = vrot.slane %v983, %v996
        %v1000 = vunpack.c.l.s4 1983009808
        %v1001 = vunpack.c.0.s8 %v1000
        %v1002 = vlaneseq
        %v1003 = vshrl.u32 %v1002, 7
        %v1004 = vsub.s32 %v1001, %v1003
        %v1005 = vrot.slane %v988, %v1004
        %v1006 = vcombine.low %v997, %v1005
        %v1007 = vcombine.high %v997, %v1005
        %v1009 = vunpack.c.l.s4 1934713408
        %v1010 = vunpack.c.0.s8 %v1009
        %v1011 = vlaneseq
        %v1012 = vshrl.u32 %v1011, 7
        %v1013 = vsub.s32 %v1010, %v1012
        %v1014 = vrot.slane %v1006, %v1013
        %v1016 = vunpack.c.l.s4 1934713408
        %v1017 = vunpack.c.0.s8 %v1016
        %v1018 = vlaneseq
        %v1019 = vshrl.u32 %v1018, 7
        %v1020 = vsub.s32 %v1017, %v1019
        %v1021 = vrot.slane %v1007, %v1020
        %v1022 = vcombine.high %v1014, 0
        %v1023 = vcombine.high %v1021, 0
        %v1026 = vunpack.c.l.s4 1983009808
        %v1027 = vunpack.c.0.s8 %v1026
        %v1028 = vlaneseq
        %v1029 = vshrl.u32 %v1028, 7
        %v1030 = vsub.s32 %v1027, %v1029
        %v1031 = vrot.slane %v986, %v1030
        %v1034 = vunpack.c.l.s4 1983009808
        %v1035 = vunpack.c.0.s8 %v1034
        %v1036 = vlaneseq
        %v1037 = vshrl.u32 %v1036, 7
        %v1038 = vsub.s32 %v1035, %v1037
        %v1039 = vrot.slane %v990, %v1038
        %v1040 = vcombine.low %v1031, %v1039
        %v1041 = vcombine.high %v1031, %v1039
        %v1043 = vunpack.c.l.s4 1934713408
        %v1044 = vunpack.c.0.s8 %v1043
        %v1045 = vlaneseq
        %v1046 = vshrl.u32 %v1045, 7
        %v1047 = vsub.s32 %v1044, %v1046
        %v1048 = vrot.slane %v1040, %v1047
        %v1050 = vunpack.c.l.s4 1934713408
        %v1051 = vunpack.c.0.s8 %v1050
        %v1052 = vlaneseq
        %v1053 = vshrl.u32 %v1052, 7
        %v1054 = vsub.s32 %v1051, %v1053
        %v1055 = vrot.slane %v1041, %v1054
        %v1056 = vcombine.high %v1048, 0
        %v1057 = vcombine.high %v1055, 0
        %v1060 = vpack.i.b16 %v1048, %v1014
        %v1062 = vshrl.u32 %v1014, 16
        %v1063 = vshrl.u32 %v1048, 16
        %v1064 = vpack.i.b16 %v1063, %v1062
        %v1068 = vpack.i.b16 %v1056, %v1022
        %v1070 = vshrl.u32 %v1022, 16
        %v1071 = vshrl.u32 %v1056, 16
        %v1072 = vpack.i.b16 %v1071, %v1070
        %v1076 = vpack.i.b16 %v1055, %v1021
        %v1078 = vshrl.u32 %v1021, 16
        %v1079 = vshrl.u32 %v1055, 16
        %v1080 = vpack.i.b16 %v1079, %v1078
        %v1084 = vpack.i.b16 %v1057, %v1023
        %v1086 = vshrl.u32 %v1023, 16
        %v1087 = vshrl.u32 %v1057, 16
        %v1088 = vpack.i.b16 %v1087, %v1086
        %v1090 = vcombine.low %v1060, %v1076
        %v1092 = vunpack.c.l.s4 1983009808
        %v1093 = vunpack.c.0.s8 %v1092
        %v1094 = vlaneseq
        %v1095 = vshrl.u32 %v1094, 7
        %v1096 = vsub.s32 %v1093, %v1095
        %v1097 = vrot.slane %v1090, %v1096
        %v1098 = vcombine.low %v1068, %v1084
        %v1100 = vunpack.c.l.s4 1983009808
        %v1101 = vunpack.c.0.s8 %v1100
        %v1102 = vlaneseq
        %v1103 = vshrl.u32 %v1102, 7
        %v1104 = vsub.s32 %v1101, %v1103
        %v1105 = vrot.slane %v1098, %v1104
        %v1106 = vcombine.low %v1097, %v1105
        %v1108 = vunpack.c.l.s4 1934713408
        %v1109 = vunpack.c.0.s8 %v1108
        %v1110 = vlaneseq
        %v1111 = vshrl.u32 %v1110, 7
        %v1112 = vsub.s32 %v1109, %v1111
        %v1113 = vrot.slane %v1106, %v1112
        %v1114 = vcombine.high %v1113, 0
        %v1115 = vcombine.low %v1064, %v1080
        %v1117 = vunpack.c.l.s4 1983009808
        %v1118 = vunpack.c.0.s8 %v1117
        %v1119 = vlaneseq
        %v1120 = vshrl.u32 %v1119, 7
        %v1121 = vsub.s32 %v1118, %v1120
        %v1122 = vrot.slane %v1115, %v1121
        %v1123 = vcombine.low %v1072, %v1088
        %v1125 = vunpack.c.l.s4 1983009808
        %v1126 = vunpack.c.0.s8 %v1125
        %v1127 = vlaneseq
        %v1128 = vshrl.u32 %v1127, 7
        %v1129 = vsub.s32 %v1126, %v1128
        %v1130 = vrot.slane %v1123, %v1129
        %v1131 = vcombine.low %v1122, %v1130
        %v1133 = vunpack.c.l.s4 1934713408
        %v1134 = vunpack.c.0.s8 %v1133
        %v1135 = vlaneseq
        %v1136 = vshrl.u32 %v1135, 7
        %v1137 = vsub.s32 %v1134, %v1136
        %v1138 = vrot.slane %v1131, %v1137
        %v1139 = vcombine.high %v1138, 0
        %v1142 = vpack.i.b16 %v1138, %v1113
        %v1143 = vshrl.u32 %v1113, 16
        %v1144 = vshrl.u32 %v1138, 16
        %v1145 = vpack.i.b16 %v1144, %v1143
        %v1148 = vpack.i.b16 %v1139, %v1114
        %v1149 = vshrl.u32 %v1114, 16
        %v1150 = vshrl.u32 %v1139, 16
        %v1151 = vpack.i.b16 %v1150, %v1149
        %v1152 = vpack.c.bf16 %v808, %v808
        %1154 = vrot.lane.b32.xlu0 %v1152, 120
        %v1155 = vpop.permute.xlu0 %1154
        %1156 = vrot.lane.b32.xlu0 %v1152, 112
        %v1157 = vpop.permute.xlu0 %1156
        %1158 = vrot.lane.b32.xlu0 %v1152, 104
        %v1159 = vpop.permute.xlu0 %1158
        %v1161 = vunpack.c.l.s4 1983009808
        %v1162 = vunpack.c.0.s8 %v1161
        %v1163 = vlaneseq
        %v1164 = vshrl.u32 %v1163, 7
        %v1165 = vsub.s32 %v1162, %v1164
        %v1166 = vrot.slane %v1152, %v1165
        %v1169 = vunpack.c.l.s4 1983009808
        %v1170 = vunpack.c.0.s8 %v1169
        %v1171 = vlaneseq
        %v1172 = vshrl.u32 %v1171, 7
        %v1173 = vsub.s32 %v1170, %v1172
        %v1174 = vrot.slane %v1157, %v1173
        %v1175 = vcombine.low %v1166, %v1174
        %v1176 = vcombine.high %v1166, %v1174
        %v1178 = vunpack.c.l.s4 1934713408
        %v1179 = vunpack.c.0.s8 %v1178
        %v1180 = vlaneseq
        %v1181 = vshrl.u32 %v1180, 7
        %v1182 = vsub.s32 %v1179, %v1181
        %v1183 = vrot.slane %v1175, %v1182
        %v1185 = vunpack.c.l.s4 1934713408
        %v1186 = vunpack.c.0.s8 %v1185
        %v1187 = vlaneseq
        %v1188 = vshrl.u32 %v1187, 7
        %v1189 = vsub.s32 %v1186, %v1188
        %v1190 = vrot.slane %v1176, %v1189
        %v1191 = vcombine.high %v1183, 0
        %v1192 = vcombine.high %v1190, 0
        %v1195 = vunpack.c.l.s4 1983009808
        %v1196 = vunpack.c.0.s8 %v1195
        %v1197 = vlaneseq
        %v1198 = vshrl.u32 %v1197, 7
        %v1199 = vsub.s32 %v1196, %v1198
        %v1200 = vrot.slane %v1155, %v1199
        %v1203 = vunpack.c.l.s4 1983009808
        %v1204 = vunpack.c.0.s8 %v1203
        %v1205 = vlaneseq
        %v1206 = vshrl.u32 %v1205, 7
        %v1207 = vsub.s32 %v1204, %v1206
        %v1208 = vrot.slane %v1159, %v1207
        %v1209 = vcombine.low %v1200, %v1208
        %v1210 = vcombine.high %v1200, %v1208
        %v1212 = vunpack.c.l.s4 1934713408
        %v1213 = vunpack.c.0.s8 %v1212
        %v1214 = vlaneseq
        %v1215 = vshrl.u32 %v1214, 7
        %v1216 = vsub.s32 %v1213, %v1215
        %v1217 = vrot.slane %v1209, %v1216
        %v1219 = vunpack.c.l.s4 1934713408
        %v1220 = vunpack.c.0.s8 %v1219
        %v1221 = vlaneseq
        %v1222 = vshrl.u32 %v1221, 7
        %v1223 = vsub.s32 %v1220, %v1222
        %v1224 = vrot.slane %v1210, %v1223
        %v1225 = vcombine.high %v1217, 0
        %v1226 = vcombine.high %v1224, 0
        %v1229 = vpack.i.b16 %v1217, %v1183
        %v1231 = vshrl.u32 %v1183, 16
        %v1232 = vshrl.u32 %v1217, 16
        %v1233 = vpack.i.b16 %v1232, %v1231
        %v1237 = vpack.i.b16 %v1225, %v1191
        %v1239 = vshrl.u32 %v1191, 16
        %v1240 = vshrl.u32 %v1225, 16
        %v1241 = vpack.i.b16 %v1240, %v1239
        %v1245 = vpack.i.b16 %v1224, %v1190
        %v1247 = vshrl.u32 %v1190, 16
        %v1248 = vshrl.u32 %v1224, 16
        %v1249 = vpack.i.b16 %v1248, %v1247
        %v1253 = vpack.i.b16 %v1226, %v1192
        %v1255 = vshrl.u32 %v1192, 16
        %v1256 = vshrl.u32 %v1226, 16
        %v1257 = vpack.i.b16 %v1256, %v1255
        %v1259 = vcombine.low %v1229, %v1245
        %v1261 = vunpack.c.l.s4 1983009808
        %v1262 = vunpack.c.0.s8 %v1261
        %v1263 = vlaneseq
        %v1264 = vshrl.u32 %v1263, 7
        %v1265 = vsub.s32 %v1262, %v1264
        %v1266 = vrot.slane %v1259, %v1265
        %v1267 = vcombine.low %v1237, %v1253
        %v1269 = vunpack.c.l.s4 1983009808
        %v1270 = vunpack.c.0.s8 %v1269
        %v1271 = vlaneseq
        %v1272 = vshrl.u32 %v1271, 7
        %v1273 = vsub.s32 %v1270, %v1272
        %v1274 = vrot.slane %v1267, %v1273
        %v1275 = vcombine.low %v1266, %v1274
        %v1277 = vunpack.c.l.s4 1934713408
        %v1278 = vunpack.c.0.s8 %v1277
        %v1279 = vlaneseq
        %v1280 = vshrl.u32 %v1279, 7
        %v1281 = vsub.s32 %v1278, %v1280
        %v1282 = vrot.slane %v1275, %v1281
        %v1283 = vcombine.high %v1282, 0
        %v1284 = vcombine.low %v1233, %v1249
        %v1286 = vunpack.c.l.s4 1983009808
        %v1287 = vunpack.c.0.s8 %v1286
        %v1288 = vlaneseq
        %v1289 = vshrl.u32 %v1288, 7
        %v1290 = vsub.s32 %v1287, %v1289
        %v1291 = vrot.slane %v1284, %v1290
        %v1292 = vcombine.low %v1241, %v1257
        %v1294 = vunpack.c.l.s4 1983009808
        %v1295 = vunpack.c.0.s8 %v1294
        %v1296 = vlaneseq
        %v1297 = vshrl.u32 %v1296, 7
        %v1298 = vsub.s32 %v1295, %v1297
        %v1299 = vrot.slane %v1292, %v1298
        %v1300 = vcombine.low %v1291, %v1299
        %v1302 = vunpack.c.l.s4 1934713408
        %v1303 = vunpack.c.0.s8 %v1302
        %v1304 = vlaneseq
        %v1305 = vshrl.u32 %v1304, 7
        %v1306 = vsub.s32 %v1303, %v1305
        %v1307 = vrot.slane %v1300, %v1306
        %v1308 = vcombine.high %v1307, 0
        %v1311 = vpack.i.b16 %v1307, %v1282
        %v1312 = vshrl.u32 %v1282, 16
        %v1313 = vshrl.u32 %v1307, 16
        %v1314 = vpack.i.b16 %v1313, %v1312
        %v1317 = vpack.i.b16 %v1308, %v1283
        %v1318 = vshrl.u32 %v1283, 16
        %v1319 = vshrl.u32 %v1308, 16
        %v1320 = vpack.i.b16 %v1319, %v1318
        %v1321 = vlaneseq
        %v1322 = vshrl.u32 %v1321, 7
        %v1323 = vlaneseq
        %v1324 = vand.u32 %v1323, 127
        %vm1325 = vcmp.ge.s32.totalorder %v1322, %v1324
        %vm1326 = vcmp.lt.s32.totalorder %v1324, 0
        %v1327 = vsub.s32 0, %v1324
        %v1328 = vsel %vm1326, %v1327, %v1324
        %v1329 = vmul.u32.u64.compose %v1328, 3435973837
        %v1330 = vextract.low.u32 %v1329
        %v1331 = vextract.high.u32 %v1329
        %v1332 = vshrl.u32 %v1331, 2
        %v1333 = vmul.u32 %v1332, 5
        %v1334 = vsub.s32 %v1328, %v1333
        %v1335 = vsub.s32 0, %v1334
        %v1336 = vsel %vm1326, %v1335, %v1334
        %vm1337 = vcmp.ne.s32.totalorder %v1336, 0
        %vm1338 = vcmp.lt.s32.totalorder %v1336, 0
        %vm1339 = vmand %vm1338, %vm1337
        %v1340 = vadd.s32 %v1336, 5
        %v1341 = vsel %vm1339, %v1340, %v1336
        %vm1342 = vcmp.ne.s32.totalorder %v1341, 4
        %vm1343 = vmand %vm1325, %vm1342
        %v1344 = vsel %vm1343, 0.0, -1e+30
        %vm1345 = vcmask 64512
        %v1347 = vsel %vm1345, %v973, 0
        %v1350 = vsel %vm1345, %v1142, 0
        %1352 = vmatprep.subr.bf16.mxu0 0
        %1353 = vmatpush1.bf16.xpose.msra.mxu0 %v1350
        %1354 = vmatprep.subr.bf16.mxu0 0
        %1355 = vmatpush1.bf16.xpose.msra.mxu0 0
        %1356 = vmatprep.subr.bf16.mxu0 0
        %1357 = vmatpush1.bf16.xpose.msra.mxu0 0
        %1358 = vmatprep.subr.bf16.mxu0 0
        %1359 = vmatpush1.bf16.xpose.msra.mxu0 0
        %1360 = vmatprep.subr.bf16.mxu0 0
        %1361 = vmatpush1.bf16.xpose.msra.mxu0 0
        %1362 = vmatprep.subr.bf16.mxu0 0
        %1363 = vmatpush1.bf16.xpose.msra.mxu0 0
        %1364 = vmatprep.subr.bf16.mxu0 0
        %1365 = vmatpush1.bf16.xpose.msra.mxu0 0
        %1366 = vmatprep.subr.bf16.mxu0 0
        %1367 = vmatpush1.bf16.xpose.msra.mxu0 0
        %1368 = vmatprep.subr.bf16.mxu0 0
        %1369 = vmatpush1.bf16.xpose.msra.mxu0 0
        %1370 = vmatprep.subr.bf16.mxu0 0
        %1371 = vmatpush1.bf16.xpose.msra.mxu0 0
        %1372 = vmatprep.subr.bf16.mxu0 0
        %1373 = vmatpush1.bf16.xpose.msra.mxu0 0
        %1374 = vmatprep.subr.bf16.mxu0 0
        %1375 = vmatpush1.bf16.xpose.msra.mxu0 0
        %1376 = vmatprep.subr.bf16.mxu0 0
        %1377 = vmatpush1.bf16.xpose.msra.mxu0 0
        %1378 = vmatprep.subr.bf16.mxu0 0
        %1379 = vmatpush1.bf16.xpose.msra.mxu0 0
        %1380 = vmatprep.subr.bf16.mxu0 0
        %1381 = vmatpush1.bf16.xpose.msra.mxu0 0
        %1382 = vmatprep.subr.bf16.mxu0 0
        %1383 = vmatpush1.bf16.xpose.msra.mxu0 0
        %1384 = vmatprep.mubr.bf16.mxu0 0
        %1385 = vmatmul.mubr.bf16.gmra.mrb[0].mxu0 %v1347
        %v1386 = vpop.f32.mrb[0].mxu0
        %v1387 = vadd.f32 %v1344, %v1386
        %v1388 = vpop.f32.mrb[0].mxu0
        %v1389 = vpop.f32.mrb[0].mxu0
        %v1390 = vpop.f32.mrb[0].mxu0
        %1391 = vdwg.mxu0
        %v1393 = vsel %vm1345, %v976, 0
        %v1396 = vsel %vm1345, %v1145, 0
        %1398 = vmatprep.subr.bf16.mxu0 0
        %1399 = vmatpush1.bf16.xpose.msra.mxu0 %v1396
        %1400 = vmatprep.subr.bf16.mxu0 0
        %1401 = vmatpush1.bf16.xpose.msra.mxu0 0
        %1402 = vmatprep.subr.bf16.mxu0 0
        %1403 = vmatpush1.bf16.xpose.msra.mxu0 0
        %1404 = vmatprep.subr.bf16.mxu0 0
        %1405 = vmatpush1.bf16.xpose.msra.mxu0 0
        %1406 = vmatprep.subr.bf16.mxu0 0
        %1407 = vmatpush1.bf16.xpose.msra.mxu0 0
        %1408 = vmatprep.subr.bf16.mxu0 0
        %1409 = vmatpush1.bf16.xpose.msra.mxu0 0
        %1410 = vmatprep.subr.bf16.mxu0 0
        %1411 = vmatpush1.bf16.xpose.msra.mxu0 0
        %1412 = vmatprep.subr.bf16.mxu0 0
        %1413 = vmatpush1.bf16.xpose.msra.mxu0 0
        %1414 = vmatprep.subr.bf16.mxu0 0
        %1415 = vmatpush1.bf16.xpose.msra.mxu0 0
        %1416 = vmatprep.subr.bf16.mxu0 0
        %1417 = vmatpush1.bf16.xpose.msra.mxu0 0
        %1418 = vmatprep.subr.bf16.mxu0 0
        %1419 = vmatpush1.bf16.xpose.msra.mxu0 0
        %1420 = vmatprep.subr.bf16.mxu0 0
        %1421 = vmatpush1.bf16.xpose.msra.mxu0 0
        %1422 = vmatprep.subr.bf16.mxu0 0
        %1423 = vmatpush1.bf16.xpose.msra.mxu0 0
        %1424 = vmatprep.subr.bf16.mxu0 0
        %1425 = vmatpush1.bf16.xpose.msra.mxu0 0
        %1426 = vmatprep.subr.bf16.mxu0 0
        %1427 = vmatpush1.bf16.xpose.msra.mxu0 0
        %1428 = vmatprep.subr.bf16.mxu0 0
        %1429 = vmatpush1.bf16.xpose.msra.mxu0 0
        %1430 = vmatprep.mubr.bf16.mxu0 0
        %1431 = vmatmul.mubr.bf16.gmra.mrb[0].mxu0 %v1393
        %v1432 = vpop.f32.mrb[0].mxu0
        %v1433 = vadd.f32 %v1344, %v1432
        %v1434 = vpop.f32.mrb[0].mxu0
        %v1435 = vpop.f32.mrb[0].mxu0
        %v1436 = vpop.f32.mrb[0].mxu0
        %1437 = vdwg.mxu0
        %v1439 = vsel %vm1345, %v979, 0
        %v1442 = vsel %vm1345, %v1148, 0
        %1444 = vmatprep.subr.bf16.mxu0 0
        %1445 = vmatpush1.bf16.xpose.msra.mxu0 %v1442
        %1446 = vmatprep.subr.bf16.mxu0 0
        %1447 = vmatpush1.bf16.xpose.msra.mxu0 0
        %1448 = vmatprep.subr.bf16.mxu0 0
        %1449 = vmatpush1.bf16.xpose.msra.mxu0 0
        %1450 = vmatprep.subr.bf16.mxu0 0
        %1451 = vmatpush1.bf16.xpose.msra.mxu0 0
        %1452 = vmatprep.subr.bf16.mxu0 0
        %1453 = vmatpush1.bf16.xpose.msra.mxu0 0
        %1454 = vmatprep.subr.bf16.mxu0 0
        %1455 = vmatpush1.bf16.xpose.msra.mxu0 0
        %1456 = vmatprep.subr.bf16.mxu0 0
        %1457 = vmatpush1.bf16.xpose.msra.mxu0 0
        %1458 = vmatprep.subr.bf16.mxu0 0
        %1459 = vmatpush1.bf16.xpose.msra.mxu0 0
        %1460 = vmatprep.subr.bf16.mxu0 0
        %1461 = vmatpush1.bf16.xpose.msra.mxu0 0
        %1462 = vmatprep.subr.bf16.mxu0 0
        %1463 = vmatpush1.bf16.xpose.msra.mxu0 0
        %1464 = vmatprep.subr.bf16.mxu0 0
        %1465 = vmatpush1.bf16.xpose.msra.mxu0 0
        %1466 = vmatprep.subr.bf16.mxu0 0
        %1467 = vmatpush1.bf16.xpose.msra.mxu0 0
        %1468 = vmatprep.subr.bf16.mxu0 0
        %1469 = vmatpush1.bf16.xpose.msra.mxu0 0
        %1470 = vmatprep.subr.bf16.mxu0 0
        %1471 = vmatpush1.bf16.xpose.msra.mxu0 0
        %1472 = vmatprep.subr.bf16.mxu0 0
        %1473 = vmatpush1.bf16.xpose.msra.mxu0 0
        %1474 = vmatprep.subr.bf16.mxu0 0
        %1475 = vmatpush1.bf16.xpose.msra.mxu0 0
        %1476 = vmatprep.mubr.bf16.mxu0 0
        %1477 = vmatmul.mubr.bf16.gmra.mrb[0].mxu0 %v1439
        %v1478 = vpop.f32.mrb[0].mxu0
        %v1479 = vadd.f32 %v1344, %v1478
        %v1480 = vpop.f32.mrb[0].mxu0
        %v1481 = vpop.f32.mrb[0].mxu0
        %v1482 = vpop.f32.mrb[0].mxu0
        %1483 = vdwg.mxu0
        %v1485 = vsel %vm1345, %v982, 0
        %v1488 = vsel %vm1345, %v1151, 0
        %1490 = vmatprep.subr.bf16.mxu0 0
        %1491 = vmatpush1.bf16.xpose.msra.mxu0 %v1488
        %1492 = vmatprep.subr.bf16.mxu0 0
        %1493 = vmatpush1.bf16.xpose.msra.mxu0 0
        %1494 = vmatprep.subr.bf16.mxu0 0
        %1495 = vmatpush1.bf16.xpose.msra.mxu0 0
        %1496 = vmatprep.subr.bf16.mxu0 0
        %1497 = vmatpush1.bf16.xpose.msra.mxu0 0
        %1498 = vmatprep.subr.bf16.mxu0 0
        %1499 = vmatpush1.bf16.xpose.msra.mxu0 0
        %1500 = vmatprep.subr.bf16.mxu0 0
        %1501 = vmatpush1.bf16.xpose.msra.mxu0 0
        %1502 = vmatprep.subr.bf16.mxu0 0
        %1503 = vmatpush1.bf16.xpose.msra.mxu0 0
        %1504 = vmatprep.subr.bf16.mxu0 0
        %1505 = vmatpush1.bf16.xpose.msra.mxu0 0
        %1506 = vmatprep.subr.bf16.mxu0 0
        %1507 = vmatpush1.bf16.xpose.msra.mxu0 0
        %1508 = vmatprep.subr.bf16.mxu0 0
        %1509 = vmatpush1.bf16.xpose.msra.mxu0 0
        %1510 = vmatprep.subr.bf16.mxu0 0
        %1511 = vmatpush1.bf16.xpose.msra.mxu0 0
        %1512 = vmatprep.subr.bf16.mxu0 0
        %1513 = vmatpush1.bf16.xpose.msra.mxu0 0
        %1514 = vmatprep.subr.bf16.mxu0 0
        %1515 = vmatpush1.bf16.xpose.msra.mxu0 0
        %1516 = vmatprep.subr.bf16.mxu0 0
        %1517 = vmatpush1.bf16.xpose.msra.mxu0 0
        %1518 = vmatprep.subr.bf16.mxu0 0
        %1519 = vmatpush1.bf16.xpose.msra.mxu0 0
        %1520 = vmatprep.subr.bf16.mxu0 0
        %1521 = vmatpush1.bf16.xpose.msra.mxu0 0
        %1522 = vmatprep.mubr.bf16.mxu0 0
        %1523 = vmatmul.mubr.bf16.gmra.mrb[0].mxu0 %v1485
        %v1524 = vpop.f32.mrb[0].mxu0
        %v1525 = vadd.f32 %v1344, %v1524
        %v1526 = vpop.f32.mrb[0].mxu0
        %v1527 = vpop.f32.mrb[0].mxu0
        %v1528 = vpop.f32.mrb[0].mxu0
        %1529 = vdwg.mxu0
        %v1530 = vsel %vm1345, %v1387, -inf
        %1531 = vmax.xlane.f32.xlu0 %v1530
        %v1532 = vpop.xlane.xlu0 %1531
        %v1533 = vsel %vm1345, %v1433, -inf
        %1534 = vmax.xlane.f32.xlu0 %v1533
        %v1535 = vpop.xlane.xlu0 %1534
        %v1536 = vsel %vm1345, %v1479, -inf
        %1537 = vmax.xlane.f32.xlu0 %v1536
        %v1538 = vpop.xlane.xlu0 %1537
        %v1539 = vsel %vm1345, %v1525, -inf
        %1540 = vmax.xlane.f32.xlu0 %v1539
        %v1541 = vpop.xlane.xlu0 %1540
        %v1542 = vsub.f32 %v1387, %v1532
        %v1543 = vsub.f32 %v1433, %v1535
        %v1544 = vsub.f32 %v1479, %v1538
        %v1545 = vsub.f32 %v1525, %v1541
        %v1546 = vmul.f32 %v1542, 1.442695
        %v1547 = vpow.pop %v1546
        %v1548 = vmul.f32 %v1543, 1.442695
        %v1549 = vpow.pop %v1548
        %v1550 = vmul.f32 %v1544, 1.442695
        %v1551 = vpow.pop %v1550
        %v1552 = vmul.f32 %v1545, 1.442695
        %v1553 = vpow.pop %v1552
        %v1554 = vsel %vm1345, %v1547, 0.0
        %1555 = vadd.xlane.f32.xlu0 %v1554
        %v1556 = vpop.xlane.xlu0 %1555
        %v1557 = vsel %vm1345, %v1549, 0.0
        %1558 = vadd.xlane.f32.xlu0 %v1557
        %v1559 = vpop.xlane.xlu0 %1558
        %v1560 = vsel %vm1345, %v1551, 0.0
        %1561 = vadd.xlane.f32.xlu0 %v1560
        %v1562 = vpop.xlane.xlu0 %1561
        %v1563 = vsel %vm1345, %v1553, 0.0
        %1564 = vadd.xlane.f32.xlu0 %v1563
        %v1565 = vpop.xlane.xlu0 %1564
        %v1566 = vrcp.pop %v1556
        %v1567 = vrcp.pop %v1559
        %v1568 = vrcp.pop %v1562
        %v1569 = vrcp.pop %v1565
        %v1570 = vmul.f32 %v1547, %v1566
        %v1571 = vmul.f32 %v1549, %v1567
        %v1572 = vmul.f32 %v1551, %v1568
        %v1573 = vmul.f32 %v1553, %v1569
        %v1574 = vpack.c.bf16 %v1570, %v1570
        %v1575 = vpack.c.bf16 %v1571, %v1571
        %v1576 = vpack.c.bf16 %v1572, %v1572
        %v1577 = vpack.c.bf16 %v1573, %v1573
        %v1579 = vsel %vm1345, %v1574, 0
        %vm1581 = vcmask 1043456
        %v1583 = vsel %vm1581, %v1311, 0
        %1585 = vmatprep.subr.bf16.mxu0 0
        %1586 = vmatpush1.bf16.msra.mxu0 %v1583
        %1587 = vmatprep.subr.bf16.mxu0 0
        %1588 = vmatpush1.bf16.msra.mxu0 0
        %1589 = vmatprep.subr.bf16.mxu0 0
        %1590 = vmatpush1.bf16.msra.mxu0 0
        %1591 = vmatprep.subr.bf16.mxu0 0
        %1592 = vmatpush1.bf16.msra.mxu0 0
        %1593 = vmatprep.subr.bf16.mxu0 0
        %1594 = vmatpush1.bf16.msra.mxu0 0
        %1595 = vmatprep.subr.bf16.mxu0 0
        %1596 = vmatpush1.bf16.msra.mxu0 0
        %1597 = vmatprep.subr.bf16.mxu0 0
        %1598 = vmatpush1.bf16.msra.mxu0 0
        %1599 = vmatprep.subr.bf16.mxu0 0
        %1600 = vmatpush1.bf16.msra.mxu0 0
        %1601 = vmatprep.subr.bf16.mxu0 0
        %1602 = vmatpush1.bf16.msra.mxu0 0
        %1603 = vmatprep.subr.bf16.mxu0 0
        %1604 = vmatpush1.bf16.msra.mxu0 0
        %1605 = vmatprep.subr.bf16.mxu0 0
        %1606 = vmatpush1.bf16.msra.mxu0 0
        %1607 = vmatprep.subr.bf16.mxu0 0
        %1608 = vmatpush1.bf16.msra.mxu0 0
        %1609 = vmatprep.subr.bf16.mxu0 0
        %1610 = vmatpush1.bf16.msra.mxu0 0
        %1611 = vmatprep.subr.bf16.mxu0 0
        %1612 = vmatpush1.bf16.msra.mxu0 0
        %1613 = vmatprep.subr.bf16.mxu0 0
        %1614 = vmatpush1.bf16.msra.mxu0 0
        %1615 = vmatprep.subr.bf16.mxu0 0
        %1616 = vmatpush1.bf16.msra.mxu0 0
        %1617 = vmatprep.mubr.bf16.mxu0 0
        %1618 = vmatmul.mubr.bf16.gmra.mrb[0].mxu0 %v1579
        %v1619 = vpop.f32.mrb[0].mxu0
        %v1620 = vadd.f32 0.0, %v1619
        %v1621 = vpop.f32.mrb[0].mxu0
        %v1622 = vpop.f32.mrb[0].mxu0
        %v1623 = vpop.f32.mrb[0].mxu0
        %1624 = vdwg.mxu0
        %v1626 = vsel %vm1345, %v1575, 0
        %v1629 = vsel %vm1581, %v1314, 0
        %1631 = vmatprep.subr.bf16.mxu0 0
        %1632 = vmatpush1.bf16.msra.mxu0 %v1629
        %1633 = vmatprep.subr.bf16.mxu0 0
        %1634 = vmatpush1.bf16.msra.mxu0 0
        %1635 = vmatprep.subr.bf16.mxu0 0
        %1636 = vmatpush1.bf16.msra.mxu0 0
        %1637 = vmatprep.subr.bf16.mxu0 0
        %1638 = vmatpush1.bf16.msra.mxu0 0
        %1639 = vmatprep.subr.bf16.mxu0 0
        %1640 = vmatpush1.bf16.msra.mxu0 0
        %1641 = vmatprep.subr.bf16.mxu0 0
        %1642 = vmatpush1.bf16.msra.mxu0 0
        %1643 = vmatprep.subr.bf16.mxu0 0
        %1644 = vmatpush1.bf16.msra.mxu0 0
        %1645 = vmatprep.subr.bf16.mxu0 0
        %1646 = vmatpush1.bf16.msra.mxu0 0
        %1647 = vmatprep.subr.bf16.mxu0 0
        %1648 = vmatpush1.bf16.msra.mxu0 0
        %1649 = vmatprep.subr.bf16.mxu0 0
        %1650 = vmatpush1.bf16.msra.mxu0 0
        %1651 = vmatprep.subr.bf16.mxu0 0
        %1652 = vmatpush1.bf16.msra.mxu0 0
        %1653 = vmatprep.subr.bf16.mxu0 0
        %1654 = vmatpush1.bf16.msra.mxu0 0
        %1655 = vmatprep.subr.bf16.mxu0 0
        %1656 = vmatpush1.bf16.msra.mxu0 0
        %1657 = vmatprep.subr.bf16.mxu0 0
        %1658 = vmatpush1.bf16.msra.mxu0 0
        %1659 = vmatprep.subr.bf16.mxu0 0
        %1660 = vmatpush1.bf16.msra.mxu0 0
        %1661 = vmatprep.subr.bf16.mxu0 0
        %1662 = vmatpush1.bf16.msra.mxu0 0
        %1663 = vmatprep.mubr.bf16.mxu0 0
        %1664 = vmatmul.mubr.bf16.gmra.mrb[0].mxu0 %v1626
        %v1665 = vpop.f32.mrb[0].mxu0
        %v1666 = vadd.f32 0.0, %v1665
        %v1667 = vpop.f32.mrb[0].mxu0
        %v1668 = vpop.f32.mrb[0].mxu0
        %v1669 = vpop.f32.mrb[0].mxu0
        %1670 = vdwg.mxu0
        %v1672 = vsel %vm1345, %v1576, 0
        %v1675 = vsel %vm1581, %v1317, 0
        %1677 = vmatprep.subr.bf16.mxu0 0
        %1678 = vmatpush1.bf16.msra.mxu0 %v1675
        %1679 = vmatprep.subr.bf16.mxu0 0
        %1680 = vmatpush1.bf16.msra.mxu0 0
        %1681 = vmatprep.subr.bf16.mxu0 0
        %1682 = vmatpush1.bf16.msra.mxu0 0
        %1683 = vmatprep.subr.bf16.mxu0 0
        %1684 = vmatpush1.bf16.msra.mxu0 0
        %1685 = vmatprep.subr.bf16.mxu0 0
        %1686 = vmatpush1.bf16.msra.mxu0 0
        %1687 = vmatprep.subr.bf16.mxu0 0
        %1688 = vmatpush1.bf16.msra.mxu0 0
        %1689 = vmatprep.subr.bf16.mxu0 0
        %1690 = vmatpush1.bf16.msra.mxu0 0
        %1691 = vmatprep.subr.bf16.mxu0 0
        %1692 = vmatpush1.bf16.msra.mxu0 0
        %1693 = vmatprep.subr.bf16.mxu0 0
        %1694 = vmatpush1.bf16.msra.mxu0 0
        %1695 = vmatprep.subr.bf16.mxu0 0
        %1696 = vmatpush1.bf16.msra.mxu0 0
        %1697 = vmatprep.subr.bf16.mxu0 0
        %1698 = vmatpush1.bf16.msra.mxu0 0
        %1699 = vmatprep.subr.bf16.mxu0 0
        %1700 = vmatpush1.bf16.msra.mxu0 0
        %1701 = vmatprep.subr.bf16.mxu0 0
        %1702 = vmatpush1.bf16.msra.mxu0 0
        %1703 = vmatprep.subr.bf16.mxu0 0
        %1704 = vmatpush1.bf16.msra.mxu0 0
        %1705 = vmatprep.subr.bf16.mxu0 0
        %1706 = vmatpush1.bf16.msra.mxu0 0
        %1707 = vmatprep.subr.bf16.mxu0 0
        %1708 = vmatpush1.bf16.msra.mxu0 0
        %1709 = vmatprep.mubr.bf16.mxu0 0
        %1710 = vmatmul.mubr.bf16.gmra.mrb[0].mxu0 %v1672
        %v1711 = vpop.f32.mrb[0].mxu0
        %v1712 = vadd.f32 0.0, %v1711
        %v1713 = vpop.f32.mrb[0].mxu0
        %v1714 = vpop.f32.mrb[0].mxu0
        %v1715 = vpop.f32.mrb[0].mxu0
        %1716 = vdwg.mxu0
        %v1718 = vsel %vm1345, %v1577, 0
        %v1721 = vsel %vm1581, %v1320, 0
        %1723 = vmatprep.subr.bf16.mxu0 0
        %1724 = vmatpush1.bf16.msra.mxu0 %v1721
        %1725 = vmatprep.subr.bf16.mxu0 0
        %1726 = vmatpush1.bf16.msra.mxu0 0
        %1727 = vmatprep.subr.bf16.mxu0 0
        %1728 = vmatpush1.bf16.msra.mxu0 0
        %1729 = vmatprep.subr.bf16.mxu0 0
        %1730 = vmatpush1.bf16.msra.mxu0 0
        %1731 = vmatprep.subr.bf16.mxu0 0
        %1732 = vmatpush1.bf16.msra.mxu0 0
        %1733 = vmatprep.subr.bf16.mxu0 0
        %1734 = vmatpush1.bf16.msra.mxu0 0
        %1735 = vmatprep.subr.bf16.mxu0 0
        %1736 = vmatpush1.bf16.msra.mxu0 0
        %1737 = vmatprep.subr.bf16.mxu0 0
        %1738 = vmatpush1.bf16.msra.mxu0 0
        %1739 = vmatprep.subr.bf16.mxu0 0
        %1740 = vmatpush1.bf16.msra.mxu0 0
        %1741 = vmatprep.subr.bf16.mxu0 0
        %1742 = vmatpush1.bf16.msra.mxu0 0
        %1743 = vmatprep.subr.bf16.mxu0 0
        %1744 = vmatpush1.bf16.msra.mxu0 0
        %1745 = vmatprep.subr.bf16.mxu0 0
        %1746 = vmatpush1.bf16.msra.mxu0 0
        %1747 = vmatprep.subr.bf16.mxu0 0
        %1748 = vmatpush1.bf16.msra.mxu0 0
        %1749 = vmatprep.subr.bf16.mxu0 0
        %1750 = vmatpush1.bf16.msra.mxu0 0
        %1751 = vmatprep.subr.bf16.mxu0 0
        %1752 = vmatpush1.bf16.msra.mxu0 0
        %1753 = vmatprep.subr.bf16.mxu0 0
        %1754 = vmatpush1.bf16.msra.mxu0 0
        %1755 = vmatprep.mubr.bf16.mxu0 0
        %1756 = vmatmul.mubr.bf16.gmra.mrb[0].mxu0 %v1718
        %v1757 = vpop.f32.mrb[0].mxu0
        %v1758 = vadd.f32 0.0, %v1757
        %v1759 = vpop.f32.mrb[0].mxu0
        %v1760 = vpop.f32.mrb[0].mxu0
        %v1761 = vpop.f32.mrb[0].mxu0
        %1762 = vdwg.mxu0
        %v1763 = vcombine.low %v1620, %v1712
        %v1764 = vcombine.high %v1620, %v1712
        %v1766 = vunpack.c.l.s4 1983009808
        %v1767 = vunpack.c.0.s8 %v1766
        %v1768 = vlaneseq
        %v1769 = vshrl.u32 %v1768, 7
        %v1770 = vsub.s32 %v1767, %v1769
        %v1771 = vrot.slane %v1763, %v1770
        %v1773 = vunpack.c.l.s4 1983009808
        %v1774 = vunpack.c.0.s8 %v1773
        %v1775 = vlaneseq
        %v1776 = vshrl.u32 %v1775, 7
        %v1777 = vsub.s32 %v1774, %v1776
        %v1778 = vrot.slane %v1764, %v1777
        %v1779 = vcombine.low %v1666, %v1758
        %v1780 = vcombine.high %v1666, %v1758
        %v1782 = vunpack.c.l.s4 1983009808
        %v1783 = vunpack.c.0.s8 %v1782
        %v1784 = vlaneseq
        %v1785 = vshrl.u32 %v1784, 7
        %v1786 = vsub.s32 %v1783, %v1785
        %v1787 = vrot.slane %v1779, %v1786
        %v1789 = vunpack.c.l.s4 1983009808
        %v1790 = vunpack.c.0.s8 %v1789
        %v1791 = vlaneseq
        %v1792 = vshrl.u32 %v1791, 7
        %v1793 = vsub.s32 %v1790, %v1792
        %v1794 = vrot.slane %v1780, %v1793
        %v1795 = vcombine.low %v1771, %v1787
        %v1796 = vcombine.high %v1771, %v1787
        %v1798 = vunpack.c.l.s4 1934713408
        %v1799 = vunpack.c.0.s8 %v1798
        %v1800 = vlaneseq
        %v1801 = vshrl.u32 %v1800, 7
        %v1802 = vsub.s32 %v1799, %v1801
        %v1803 = vrot.slane %v1795, %v1802
        %v1805 = vunpack.c.l.s4 1934713408
        %v1806 = vunpack.c.0.s8 %v1805
        %v1807 = vlaneseq
        %v1808 = vshrl.u32 %v1807, 7
        %v1809 = vsub.s32 %v1806, %v1808
        %v1810 = vrot.slane %v1796, %v1809
        %v1811 = vcombine.low %v1778, %v1794
        %v1812 = vcombine.high %v1778, %v1794
        %v1814 = vunpack.c.l.s4 1934713408
        %v1815 = vunpack.c.0.s8 %v1814
        %v1816 = vlaneseq
        %v1817 = vshrl.u32 %v1816, 7
        %v1818 = vsub.s32 %v1815, %v1817
        %v1819 = vrot.slane %v1811, %v1818
        %v1821 = vunpack.c.l.s4 1934713408
        %v1822 = vunpack.c.0.s8 %v1821
        %v1823 = vlaneseq
        %v1824 = vshrl.u32 %v1823, 7
        %v1825 = vsub.s32 %v1822, %v1824
        %v1826 = vrot.slane %v1812, %v1825
        %v1827 = vcombine.high %v1803, 0.0
        %v1828 = vcombine.high %v1810, 0.0
        %v1829 = vcombine.high %v1819, 0.0
        %v1830 = vcombine.high %v1826, 0.0
        %v1831 = vcombine.low %v1803, %v1810
        %v1833 = vunpack.c.l.s4 1983009808
        %v1834 = vunpack.c.0.s8 %v1833
        %v1835 = vlaneseq
        %v1836 = vshrl.u32 %v1835, 7
        %v1837 = vsub.s32 %v1834, %v1836
        %v1838 = vrot.slane %v1831, %v1837
        %v1839 = vcombine.low %v1827, %v1828
        %v1841 = vunpack.c.l.s4 1983009808
        %v1842 = vunpack.c.0.s8 %v1841
        %v1843 = vlaneseq
        %v1844 = vshrl.u32 %v1843, 7
        %v1845 = vsub.s32 %v1842, %v1844
        %v1846 = vrot.slane %v1839, %v1845
        %v1847 = vcombine.low %v1819, %v1826
        %v1849 = vunpack.c.l.s4 1983009808
        %v1850 = vunpack.c.0.s8 %v1849
        %v1851 = vlaneseq
        %v1852 = vshrl.u32 %v1851, 7
        %v1853 = vsub.s32 %v1850, %v1852
        %v1854 = vrot.slane %v1847, %v1853
        %v1855 = vcombine.low %v1829, %v1830
        %v1857 = vunpack.c.l.s4 1983009808
        %v1858 = vunpack.c.0.s8 %v1857
        %v1859 = vlaneseq
        %v1860 = vshrl.u32 %v1859, 7
        %v1861 = vsub.s32 %v1858, %v1860
        %v1862 = vrot.slane %v1855, %v1861
        %v1863 = vcombine.low %v1838, %v1846
        %v1864 = vcombine.high %v1838, %v1846
        %v1866 = vunpack.c.l.s4 1934713408
        %v1867 = vunpack.c.0.s8 %v1866
        %v1868 = vlaneseq
        %v1869 = vshrl.u32 %v1868, 7
        %v1870 = vsub.s32 %v1867, %v1869
        %v1871 = vrot.slane %v1863, %v1870
        %v1873 = vunpack.c.l.s4 1934713408
        %v1874 = vunpack.c.0.s8 %v1873
        %v1875 = vlaneseq
        %v1876 = vshrl.u32 %v1875, 7
        %v1877 = vsub.s32 %v1874, %v1876
        %v1878 = vrot.slane %v1864, %v1877
        %v1879 = vcombine.low %v1854, %v1862
        %v1880 = vcombine.high %v1854, %v1862
        %v1882 = vunpack.c.l.s4 1934713408
        %v1883 = vunpack.c.0.s8 %v1882
        %v1884 = vlaneseq
        %v1885 = vshrl.u32 %v1884, 7
        %v1886 = vsub.s32 %v1883, %v1885
        %v1887 = vrot.slane %v1879, %v1886
        %v1889 = vunpack.c.l.s4 1934713408
        %v1890 = vunpack.c.0.s8 %v1889
        %v1891 = vlaneseq
        %v1892 = vshrl.u32 %v1891, 7
        %v1893 = vsub.s32 %v1890, %v1892
        %v1894 = vrot.slane %v1880, %v1893
        %v1895 = vcombine.low %v1871, %v1887
        %v1896 = vcombine.high %v1871, %v1887
        %v1897 = vcombine.low %v1878, %v1894
        %v1898 = vcombine.high %v1878, %v1894
        %1900 = vrot.lane.b32.xlu0 %v1896, 8
        %v1901 = vpop.permute.xlu0 %1900
        %1904 = vrot.lane.b32.xlu0 %v1897, 16
        %v1905 = vpop.permute.xlu0 %1904
        %1908 = vrot.lane.b32.xlu0 %v1898, 24
        %v1909 = vpop.permute.xlu0 %1908
        %v1911 = vsel %vm1345, %v1895, %v1901
        %vm1912 = vcmask 130048
        %v1913 = vsel %vm1912, %v1911, %v1905
        %vm1914 = vcmask 195584
        %v1915 = vsel %vm1914, %v1913, %v1909
        %v1916 = vpack.c.bf16 %v1915, %v1915
        %v1917 = vld [vmem:[%s9] sm:$0xf]
        %v1918 = vld [vmem:[%s9 + $0x4] sm:$0xf]
        %v1919 = vld [vmem:[%s9 + $0x8] sm:$0xf]
        %v1920 = vld [vmem:[%s9 + $0xc] sm:$0xf]
        %v1922 = vlaneseq
        %v1923 = vshrl.u32 %v1922, 7
        %v1924 = vsub.s32 0, %v1923
        %v1925 = vrot.slane %v591, %v1924
        %v1931 = vunpack.c.l.b16 %v1917
        %v1932 = vunpack.c.l.b16 %v1918
        %v1933 = vunpack.c.l.b16 %v1919
        %v1934 = vunpack.c.l.b16 %v1920
        %v1935 = vpack.c.b16 %v1932, %v1931
        %v1936 = vpack.c.b16 %v1934, %v1933
        %v1940 = vsel %vm594, %v1916, 0
        %1942 = vmatprep.subr.bf16.mxu0 0
        %1943 = vmatpush1.bf16.msra.mxu0 %v1935
        %1944 = vmatprep.subr.bf16.mxu0 0
        %1945 = vmatpush1.bf16.msra.mxu0 %v1936
        %1946 = vmatprep.subr.bf16.mxu0 0
        %1947 = vmatpush1.bf16.msra.mxu0 0
        %1948 = vmatprep.subr.bf16.mxu0 0
        %1949 = vmatpush1.bf16.msra.mxu0 0
        %1950 = vmatprep.subr.bf16.mxu0 0
        %1951 = vmatpush1.bf16.msra.mxu0 0
        %1952 = vmatprep.subr.bf16.mxu0 0
        %1953 = vmatpush1.bf16.msra.mxu0 0
        %1954 = vmatprep.subr.bf16.mxu0 0
        %1955 = vmatpush1.bf16.msra.mxu0 0
        %1956 = vmatprep.subr.bf16.mxu0 0
        %1957 = vmatpush1.bf16.msra.mxu0 0
        %1958 = vmatprep.subr.bf16.mxu0 0
        %1959 = vmatpush1.bf16.msra.mxu0 0
        %1960 = vmatprep.subr.bf16.mxu0 0
        %1961 = vmatpush1.bf16.msra.mxu0 0
        %1962 = vmatprep.subr.bf16.mxu0 0
        %1963 = vmatpush1.bf16.msra.mxu0 0
        %1964 = vmatprep.subr.bf16.mxu0 0
        %1965 = vmatpush1.bf16.msra.mxu0 0
        %1966 = vmatprep.subr.bf16.mxu0 0
        %1967 = vmatpush1.bf16.msra.mxu0 0
        %1968 = vmatprep.subr.bf16.mxu0 0
        %1969 = vmatpush1.bf16.msra.mxu0 0
        %1970 = vmatprep.subr.bf16.mxu0 0
        %1971 = vmatpush1.bf16.msra.mxu0 0
        %1972 = vmatprep.subr.bf16.mxu0 0
        %1973 = vmatpush1.bf16.msra.mxu0 0
        %1974 = vmatprep.mubr.bf16.mxu0 0
        %1975 = vmatmul.mubr.bf16.gmra.mrb[0].mxu0 %v1940
        %v1976 = vpop.f32.mrb[0].mxu0
        %v1977 = vadd.f32 %v1925, %v1976
        %v1978 = vpop.f32.mrb[0].mxu0
        %v1979 = vpop.f32.mrb[0].mxu0
        %v1980 = vpop.f32.mrb[0].mxu0
        %1981 = vdwg.mxu0
        %v1982 = vadd.f32 %v583, %v1977
        %v1983 = vsel %vm594, %v1982, 0.0
        %1984 = vadd.xlane.f32.xlu0 %v1983
        %v1985 = vpop.xlane.xlu0 %1984
        %v1986 = vmul.f32 %v1985, %v598
        %v1987 = vsub.f32 %v1982, %v1986
        %v1988 = vmul.f32 %v1987, %v1987
        %v1989 = vsel %vm594, %v1988, 0.0
        %1990 = vadd.xlane.f32.xlu0 %v1989
        %v1991 = vpop.xlane.xlu0 %1990
        %v1992 = vmul.f32 %v1991, %v598
        %v1993 = vadd.f32 %v1992, 1e-05
        %v1994 = vrsqrt.pop %v1993
        %v1995 = vmul.f32 %v1987, %v1994
        %v1997 = vlaneseq
        %v1998 = vshrl.u32 %v1997, 7
        %v1999 = vsub.s32 0, %v1998
        %v2000 = vrot.slane %v586, %v1999
        %v2002 = vmul.f32 %v1995, %v2000
        %v2004 = vlaneseq
        %v2005 = vshrl.u32 %v2004, 7
        %v2006 = vsub.s32 0, %v2005
        %v2007 = vrot.slane %v587, %v2006
        %v2009 = vadd.f32 %v2002, %v2007
        %v2010 = vpack.c.bf16 %v2009, %v2009
        %v2011 = vld [vmem:[%s13] sm:$0xf]
        %v2012 = vld [vmem:[%s13 + $0x4] sm:$0xf]
        %v2013 = vld [vmem:[%s13 + $0x8] sm:$0xf]
        %v2014 = vld [vmem:[%s13 + $0xc] sm:$0xf]
        %v2016 = vlaneseq
        %v2017 = vshrl.u32 %v2016, 7
        %v2018 = vsub.s32 0, %v2017
        %v2019 = vrot.slane %v592, %v2018
        %v2025 = vunpack.c.l.b16 %v2011
        %v2026 = vunpack.c.l.b16 %v2012
        %v2027 = vunpack.c.l.b16 %v2013
        %v2028 = vunpack.c.l.b16 %v2014
        %v2029 = vpack.c.b16 %v2026, %v2025
        %v2030 = vpack.c.b16 %v2028, %v2027
        %v2034 = vsel %vm594, %v2010, 0
        %2036 = vmatprep.subr.bf16.mxu0 0
        %2037 = vmatpush1.bf16.msra.mxu0 %v2029
        %2038 = vmatprep.subr.bf16.mxu0 0
        %2039 = vmatpush1.bf16.msra.mxu0 %v2030
        %2040 = vmatprep.subr.bf16.mxu0 0
        %2041 = vmatpush1.bf16.msra.mxu0 0
        %2042 = vmatprep.subr.bf16.mxu0 0
        %2043 = vmatpush1.bf16.msra.mxu0 0
        %2044 = vmatprep.subr.bf16.mxu0 0
        %2045 = vmatpush1.bf16.msra.mxu0 0
        %2046 = vmatprep.subr.bf16.mxu0 0
        %2047 = vmatpush1.bf16.msra.mxu0 0
        %2048 = vmatprep.subr.bf16.mxu0 0
        %2049 = vmatpush1.bf16.msra.mxu0 0
        %2050 = vmatprep.subr.bf16.mxu0 0
        %2051 = vmatpush1.bf16.msra.mxu0 0
        %2052 = vmatprep.subr.bf16.mxu0 0
        %2053 = vmatpush1.bf16.msra.mxu0 0
        %2054 = vmatprep.subr.bf16.mxu0 0
        %2055 = vmatpush1.bf16.msra.mxu0 0
        %2056 = vmatprep.subr.bf16.mxu0 0
        %2057 = vmatpush1.bf16.msra.mxu0 0
        %2058 = vmatprep.subr.bf16.mxu0 0
        %2059 = vmatpush1.bf16.msra.mxu0 0
        %2060 = vmatprep.subr.bf16.mxu0 0
        %2061 = vmatpush1.bf16.msra.mxu0 0
        %2062 = vmatprep.subr.bf16.mxu0 0
        %2063 = vmatpush1.bf16.msra.mxu0 0
        %2064 = vmatprep.subr.bf16.mxu0 0
        %2065 = vmatpush1.bf16.msra.mxu0 0
        %2066 = vmatprep.subr.bf16.mxu0 0
        %2067 = vmatpush1.bf16.msra.mxu0 0
        %2068 = vmatprep.mubr.bf16.mxu0 0
        %2069 = vmatmul.mubr.bf16.gmra.mrb[0].mxu0 %v2034
        %v2070 = vpop.f32.mrb[0].mxu0
        %v2071 = vadd.f32 %v2019, %v2070
        %v2072 = vpop.f32.mrb[0].mxu0
        %v2073 = vpop.f32.mrb[0].mxu0
        %v2074 = vpop.f32.mrb[0].mxu0
        %2075 = vdwg.mxu0
        %v2076 = vmul.f32 %v2071, 0.5
        %v2077 = vmul.f32 %v2071, 0.70710677
        %v2078 = verf.f32.pop %v2077
        %v2079 = vadd.f32 %v2078, 1.0
        %v2080 = vmul.f32 %v2076, %v2079
        %v2081 = vpack.c.bf16 %v2080, %v2080
        %v2082 = vld [vmem:[%s15] sm:$0xf]
        %v2083 = vld [vmem:[%s15 + $0x4] sm:$0xf]
        %v2084 = vld [vmem:[%s15 + $0x8] sm:$0xf]
        %v2085 = vld [vmem:[%s15 + $0xc] sm:$0xf]
        %v2086 = vld [vmem:[%s15 + $0x10] sm:$0xf]
        %v2087 = vld [vmem:[%s15 + $0x14] sm:$0xf]
        %v2088 = vld [vmem:[%s15 + $0x18] sm:$0xf]
        %v2089 = vld [vmem:[%s15 + $0x1c] sm:$0xf]
        %v2090 = vld [vmem:[%s15 + $0x20] sm:$0xf]
        %v2091 = vld [vmem:[%s15 + $0x24] sm:$0xf]
        %v2092 = vld [vmem:[%s15 + $0x28] sm:$0xf]
        %v2093 = vld [vmem:[%s15 + $0x2c] sm:$0xf]
        %v2094 = vld [vmem:[%s15 + $0x30] sm:$0xf]
        %v2095 = vld [vmem:[%s15 + $0x34] sm:$0xf]
        %v2096 = vld [vmem:[%s15 + $0x38] sm:$0xf]
        %v2097 = vld [vmem:[%s15 + $0x3c] sm:$0xf]
        %v2099 = vlaneseq
        %v2100 = vshrl.u32 %v2099, 7
        %v2101 = vsub.s32 0, %v2100
        %v2102 = vrot.slane %v593, %v2101
        %v2120 = vunpack.c.l.b16 %v2082
        %v2121 = vunpack.c.l.b16 %v2083
        %v2122 = vunpack.c.l.b16 %v2084
        %v2123 = vunpack.c.l.b16 %v2085
        %v2124 = vunpack.c.l.b16 %v2086
        %v2125 = vunpack.c.l.b16 %v2087
        %v2126 = vunpack.c.l.b16 %v2088
        %v2127 = vunpack.c.l.b16 %v2089
        %v2128 = vunpack.c.l.b16 %v2090
        %v2129 = vunpack.c.l.b16 %v2091
        %v2130 = vunpack.c.l.b16 %v2092
        %v2131 = vunpack.c.l.b16 %v2093
        %v2132 = vunpack.c.l.b16 %v2094
        %v2133 = vunpack.c.l.b16 %v2095
        %v2134 = vunpack.c.l.b16 %v2096
        %v2135 = vunpack.c.l.b16 %v2097
        %v2136 = vpack.c.b16 %v2121, %v2120
        %v2137 = vpack.c.b16 %v2123, %v2122
        %v2138 = vpack.c.b16 %v2125, %v2124
        %v2139 = vpack.c.b16 %v2127, %v2126
        %v2140 = vpack.c.b16 %v2129, %v2128
        %v2141 = vpack.c.b16 %v2131, %v2130
        %v2142 = vpack.c.b16 %v2133, %v2132
        %v2143 = vpack.c.b16 %v2135, %v2134
        %2152 = vmatprep.subr.bf16.mxu0 0
        %2153 = vmatpush1.bf16.msra.mxu0 %v2136
        %2154 = vmatprep.subr.bf16.mxu0 0
        %2155 = vmatpush1.bf16.msra.mxu0 %v2137
        %2156 = vmatprep.subr.bf16.mxu0 0
        %2157 = vmatpush1.bf16.msra.mxu0 %v2138
        %2158 = vmatprep.subr.bf16.mxu0 0
        %2159 = vmatpush1.bf16.msra.mxu0 %v2139
        %2160 = vmatprep.subr.bf16.mxu0 0
        %2161 = vmatpush1.bf16.msra.mxu0 %v2140
        %2162 = vmatprep.subr.bf16.mxu0 0
        %2163 = vmatpush1.bf16.msra.mxu0 %v2141
        %2164 = vmatprep.subr.bf16.mxu0 0
        %2165 = vmatpush1.bf16.msra.mxu0 %v2142
        %2166 = vmatprep.subr.bf16.mxu0 0
        %2167 = vmatpush1.bf16.msra.mxu0 %v2143
        %2168 = vmatprep.subr.bf16.mxu0 0
        %2169 = vmatpush1.bf16.msra.mxu0 0
        %2170 = vmatprep.subr.bf16.mxu0 0
        %2171 = vmatpush1.bf16.msra.mxu0 0
        %2172 = vmatprep.subr.bf16.mxu0 0
        %2173 = vmatpush1.bf16.msra.mxu0 0
        %2174 = vmatprep.subr.bf16.mxu0 0
        %2175 = vmatpush1.bf16.msra.mxu0 0
        %2176 = vmatprep.subr.bf16.mxu0 0
        %2177 = vmatpush1.bf16.msra.mxu0 0
        %2178 = vmatprep.subr.bf16.mxu0 0
        %2179 = vmatpush1.bf16.msra.mxu0 0
        %2180 = vmatprep.subr.bf16.mxu0 0
        %2181 = vmatpush1.bf16.msra.mxu0 0
        %2182 = vmatprep.subr.bf16.mxu0 0
        %2183 = vmatpush1.bf16.msra.mxu0 0
        %2184 = vmatprep.mubr.bf16.mxu0 0
        %2185 = vmatmul.mubr.bf16.gmra.mrb[0].mxu0 %v2081
        %v2186 = vpop.f32.mrb[0].mxu0
        %v2187 = vadd.f32 %v2102, %v2186
        %v2188 = vpop.f32.mrb[0].mxu0
        %v2189 = vpop.f32.mrb[0].mxu0
        %v2190 = vpop.f32.mrb[0].mxu0
        %2191 = vdwg.mxu0
        %v2192 = vadd.f32 %v1982, %v2187
        %2193 = vst.msk [vmem:[%s577] sm:$0xff] %vm594, %v2192
        %s2194 = sand.u32 %s403, 1
        %s2195 = scalar_lea.sflag [#allocation4], %s2194
        %s2196 = sand.u32 %s403, 1
        %s2197 = smul.addr %s2196, 8
        %s2198 = scalar_lea.vmem [#allocation8], %s2197
        // Predicated region
        $region101: #{tpu_custom_call.1} parent=87 // pred_check
          %p2199 = pneg %p413
        $region102: #{tpu_custom_call.1} parent=87 // pred_check_branch
          %2201 = sbr.rel (%p2199) target = $region104
        $region103: #{tpu_custom_call.1} parent=87 // pred_region
          %s2203 = ssub.s32 128, 128
          %2204 = vsyncadd %s2195, %s2203
          %s2205 = smul.addr %s33, 128
          %s2206 = scalar_lea.hbm %s17, %s2205
          %s2208 = sshll.u32 %s2198, 4
          %s2209 = int_to_ptr.vmem [resolvable:$true] %s2208
          %2211 = dma.vmem_to_hbm [thread:$0]  %s2209, 128, %s2206, %s2195
        $region104: #{tpu_custom_call.1} parent=87 // pred_fallthru
          _
      $region88: #{tpu_custom_call.1} parent=5 // pred_fallthru
        _
      %p2212 = scmp.le.s32.totalorder 2, %s28
      // Predicated region
      $region105: #{tpu_custom_call.1} parent=5 // pred_check
        %p2213 = pneg %p2212
      $region106: #{tpu_custom_call.1} parent=5 // pred_check_branch
        %2215 = sbr.rel (%p2213) target = $region108
      $region107: #{tpu_custom_call.1} parent=5 // pred_region
        %s2216 = ssub.s32 %s28, 2
        // Predicated region
        $region109: #{tpu_custom_call.1} parent=107 // pred_check
          %p2217 = pneg %p419
        $region110: #{tpu_custom_call.1} parent=107 // pred_check_branch
          %2219 = sbr.rel (%p2217) target = $region112
        $region111: #{tpu_custom_call.1} parent=107 // pred_region
          %s2220 = sand.u32 %s404, 1
          %s2221 = scalar_lea.sflag [#allocation4], %s2220
          %s2222 = sand.u32 %s404, 1
          %s2223 = smul.addr %s2222, 8
          %s2224 = scalar_lea.vmem [#allocation8], %s2223
          %2225 = dma.done %s2221, 128
        $region112: #{tpu_custom_call.1} parent=107 // pred_fallthru
          _
      $region108: #{tpu_custom_call.1} parent=5 // pred_fallthru
        _
    $region6: #{tpu_custom_call.1} parent=1 // loop_footer
      %s32 = sadd.s32 1, %s28
    $region7: #{tpu_custom_call.1} parent=1 // loop_footer_branch
      %27 = sbr.rel target = $region3
    $region8: #{tpu_custom_call.1} parent=1 // loop_exit
      _
    %2226 = vsyncpa [#allocation3], 1
    %s2227 = scalar_lea.sflag [#allocation3], 1
    %2228 = vsyncpa %s2227, 1
    %2229 = vsyncpa [#allocation6], 1
    %2230 = vsyncpa [#allocation4], 1
    %s2231 = scalar_lea.sflag [#allocation4], 1
    %2232 = vsyncpa %s2231, 1

</llo_original>
